<compile_context>
chip_gen: v7x
topology: tpu7x:2x2x1
jax: 0.10.0
libtpu: 0.0.40
codegen_flags: <defaults>
</compile_context>

<pallas_src>
import functools

import jax
import jax.numpy as jnp
import numpy as np
from jax.experimental import pallas as pl
from jax.experimental.pallas import tpu as pltpu

ALPHA = 0.5
SCALES = 4
OUT_LANES = 128          # per-block partial sums packed into one (1, 1, 128) row

_SIGN_BIT = np.int32(-2 ** 31)   # 0x80000000
_ALL_ONES = np.int32(-1)         # 0xFFFFFFFF


def _lower_median(vals, k):
    """Per-row k-th smallest (0-indexed) value of a (TN, HW) f32 tile.

    Bitwise radix select: map f32 bit patterns to keys whose *unsigned* order
    matches float order, then run a 32-step MSB-first count-threshold binary
    search (one compare + one lane reduction per bit)."""
    bits = pltpu.bitcast(vals, jnp.int32)
    key = bits ^ jnp.where(bits < 0, _ALL_ONES, _SIGN_BIT)
    tn = vals.shape[0]
    prefix = jnp.zeros((tn, 1), jnp.int32)
    rank = jnp.full((tn, 1), float(k), jnp.float32)
    for i in range(31, -1, -1):
        bit = _SIGN_BIT if i == 31 else np.int32(1 << i)
        # high bits [31..i+1] equal to prefix AND key's bit i == 0
        match = (key >> i) == (prefix >> i)
        cnt = jnp.sum(match.astype(jnp.float32), axis=1, keepdims=True)
        take = rank >= cnt                       # k-th element has bit i == 1
        prefix = jnp.where(take, prefix | bit, prefix)
        rank = jnp.where(take, rank - cnt, rank)
    med_bits = jnp.where(prefix < 0, prefix ^ _SIGN_BIT, prefix ^ _ALL_ONES)
    return pltpu.bitcast(med_bits, jnp.float32)


def _loss_kernel(sel_ref, pred_ref, tgt_ref, mask_ref, out_ref, *,
                 h, w, num_scales, n_total, ragged):
    """One grid step: TN images in flattened (TN, H*W) lane-dense layout."""
    hw = h * w
    tn = pred_ref.shape[0]
    k_med = (hw - 1) // 2

    pred = pred_ref[...].astype(jnp.float32)       # (TN, HW)
    tgt = tgt_ref[...].astype(jnp.float32)
    mask = mask_ref[...].astype(jnp.float32)
    selv = sel_ref[...].astype(jnp.float32)        # (3*scales, HW) constants

    if ragged:
        # Last block may extend past N: zero garbage rows with a select so
        # NaN/Inf garbage cannot leak through products / reductions.
        base = pl.program_id(0) * tn
        row = base + jax.lax.broadcasted_iota(jnp.int32, (tn, 1), 0)
        ok = row < n_total
        pred = jnp.where(ok, pred, 0.0)
        tgt = jnp.where(ok, tgt, 0.0)
        mask = jnp.where(ok, mask, 0.0)

    # ---- normalize_prediction_robust (median fused, radix select) ----------
    ssum = jnp.sum(mask, axis=1, keepdims=True)                   # (TN, 1)
    valid = ssum > 0.0
    ssum_safe = jnp.where(valid, ssum, 1.0)

    m_p = jnp.where(valid, _lower_median(mask * pred, k_med), 0.0)
    m_t = jnp.where(valid, _lower_median(mask * tgt, k_med), 0.0)

    pc = pred - m_p
    tc = tgt - m_t
    s_p = jnp.where(
        valid,
        jnp.maximum(jnp.sum(mask * jnp.abs(pc), axis=1, keepdims=True)
                    / ssum_safe, 1e-6),
        1.0)
    s_t = jnp.where(
        valid,
        jnp.maximum(jnp.sum(mask * jnp.abs(tc), axis=1, keepdims=True)
                    / ssum_safe, 1e-6),
        1.0)
    p_n = pc * (1.0 / s_p)       # per-image reciprocal + broadcast multiply
    t_n = tc * (1.0 / s_t)

    # ---- TrimmedMAELoss numerator (trim is a no-op in the reference) -------
    data_num = jnp.sum(mask * jnp.abs(p_n - t_n))   # mask assumed {0, 1}
    ssum_total = jnp.sum(ssum)

    # ---- GradientLoss per scale: roll-based neighbour differences ----------
    logp = jnp.log(jnp.where(p_n > 0.0, p_n, 1.0))
    logt = jnp.log(jnp.where(t_n > 0.0, t_n, 1.0))
    diff = mask * (logp - logt)

    grad_vals, msum_vals = [], []
    for s in range(num_scales):
        step = 2 ** s
        if step == 1:
            msum_vals.append(ssum_total)             # full-grid divisor
        else:
            sub = selv[2 * num_scales + s:2 * num_scales + s + 1, :]
            msum_vals.append(jnp.sum(mask * sub))

        contrib = None
        if step < w:   # x-gradient: partner is `step` lanes ahead (same row)
            selx = selv[s:s + 1, :]                   # sub & (c + step < w)
            d_r = pltpu.roll(diff, hw - step, 1)      # d_r[i] = diff[i + step]
            m_r = pltpu.roll(mask, hw - step, 1)
            contrib = jnp.abs(d_r - diff) * (m_r * mask * selx)
        if step < h:   # y-gradient: partner is `step * w` lanes ahead
            sy = step * w
            sely = selv[num_scales + s:num_scales + s + 1, :]   # sub & (r+step<h)
            d_r = pltpu.roll(diff, hw - sy, 1)
            m_r = pltpu.roll(mask, hw - sy, 1)
            dy = jnp.abs(d_r - diff) * (m_r * mask * sely)
            contrib = dy if contrib is None else contrib + dy
        # single cross-lane reduction per scale (x + y fused)
        grad_vals.append(jnp.sum(contrib) if contrib is not None else 0.0)

    # ---- pack per-block partial sums into lanes of the (1, 1, 128) output --
    lane = jax.lax.broadcasted_iota(jnp.int32, (1, 1, OUT_LANES), 2)
    out = jnp.zeros((1, 1, OUT_LANES), jnp.float32)
    for k, v in enumerate([data_num, ssum_total] + grad_vals + msum_vals):
        out = jnp.where(lane == k, v, out)
    out_ref[...] = out


def _build_sel_masks(h, w, scales):
    """Constant (3*scales, H*W) bf16 masks (DMA'd once):
       rows [0, scales)         : x selector  = sub & (c + step < w)
       rows [scales, 2*scales)  : y selector  = sub & (r + step < h)
       rows [2*scales, 3*scales): divisor     = sub
    where sub = (r % step == 0) & (c % step == 0).  The boundary terms kill both
    row-crossing pairs and the pltpu.roll wrap-around."""
    r = np.arange(h, dtype=np.int64).reshape(h, 1)
    c = np.arange(w, dtype=np.int64).reshape(1, w)
    rows = []
    for s in range(scales):
        step = 2 ** s
        sub = ((r % step) == 0) & ((c % step) == 0)
        rows.append((sub & (c + step < w)).reshape(-1))
    for s in range(scales):
        step = 2 ** s
        sub = ((r % step) == 0) & ((c % step) == 0)
        rows.append((sub & (r + step < h)).reshape(-1))
    for s in range(scales):
        step = 2 ** s
        sub = ((r % step) == 0) & ((c % step) == 0)
        rows.append(sub.reshape(-1))
    return jnp.asarray(np.stack(rows).astype(np.float32)).astype(jnp.bfloat16)


def _vmem_capacity_bytes():
    try:
        cap = getattr(pltpu.get_tpu_info(), "vmem_capacity_bytes", None)
        if cap:
            return int(cap)
    except Exception:
        pass
    return 64 * 1024 * 1024   # conservative fallback: v7x per-TensorCore VMEM


def _pick_block_images(n, hw, itemsize, vmem_budget):
    """TN images per grid step, sized from the chip's VMEM budget.

    Working set per step ~ 3 inputs x 2 pipeline buffers (native dtype) plus
    ~8 f32 (TN, HW) body temporaries (diff / rolls / products)."""
    bytes_per_row = hw * (6 * itemsize + 8 * 4)
    tn = vmem_budget // max(bytes_per_row, 1)
    tn = min(tn, 2048, 8 * pl.cdiv(n, 8))
    if n >= 32:
        # keep >= ~4 grid steps so the "parallel" axis can split across v7x's
        # two TensorCores (harmless on single-core v5e/v6e)
        tn = min(tn, max(8, 8 * ((n // 4) // 8)))
    return int(max(8, 8 * (tn // 8)))


def trimmed_procrustes_loss(prediction, target, mask, *, alpha=ALPHA,
                            scales=SCALES, block_images=None):
    b, t, c, h, w = target.shape
    n = b * t * c
    hw = h * w
    # Flatten to (N, H*W): contiguous reshape (free in XLA); native dtypes are
    # kept (kernel upcasts to f32 on load), so bf16 inputs halve HBM traffic.
    pred = prediction.reshape(n, hw)
    tgt = target.reshape(n, hw)
    msk = mask.reshape(n, hw)

    cap = _vmem_capacity_bytes()
    vmem_limit = int(min(cap * 7 // 8, 120 * 1024 * 1024))
    itemsize = max(np.dtype(prediction.dtype).itemsize,
                   np.dtype(target.dtype).itemsize,
                   np.dtype(mask.dtype).itemsize)
    tn = (block_images if block_images is not None
          else _pick_block_images(n, hw, itemsize, vmem_limit - (2 << 20)))
    tn = max(8, 8 * (tn // 8))
    num_blocks = int(pl.cdiv(n, tn))
    ragged = (n % tn) != 0          # no jnp.pad: ragged tail masked in-kernel

    sel = _build_sel_masks(h, w, scales)          # (3*scales, HW) bf16 const

    kernel = functools.partial(_loss_kernel, h=h, w=w, num_scales=scales,
                               n_total=n, ragged=ragged)

    stats = pl.pallas_call(
        kernel,
        out_shape=jax.ShapeDtypeStruct((num_blocks, 1, OUT_LANES), jnp.float32),
        grid=(num_blocks,),
        in_specs=[
            pl.BlockSpec((3 * scales, hw), lambda i: (0, 0)),   # const sel masks
            pl.BlockSpec((tn, hw), lambda i: (i, 0)),           # prediction
            pl.BlockSpec((tn, hw), lambda i: (i, 0)),           # target
            pl.BlockSpec((tn, hw), lambda i: (i, 0)),           # mask
        ],
        out_specs=pl.BlockSpec((1, 1, OUT_LANES), lambda i: (i, 0, 0)),
        compiler_params=pltpu.CompilerParams(
            dimension_semantics=("parallel",),
            vmem_limit_bytes=vmem_limit),
    )(sel, pred, tgt, msk)

    s = jnp.sum(stats[:, 0, :], axis=0)                   # reduce partial sums
    data_num, mask_sum = s[0], s[1]
    gsum = s[2:2 + scales]
    gdiv = s[2 + scales:2 + 2 * scales]

    # TrimmedMAELoss (effective behaviour of the reference code)
    data_loss = data_num / (2.0 * mask_sum)
    # GradientLoss: batch-based reduction per scale, summed over scales
    per_scale = jnp.where(gdiv == 0.0, 0.0,
                          gsum / jnp.where(gdiv == 0.0, 1.0, gdiv))
    return data_loss + alpha * jnp.sum(per_scale)


def reference_loss(prediction, target, mask, *, alpha=ALPHA, scales=SCALES):
    """Pure-JAX reference (same semantics), for a correctness check."""
    b, t, c, h, w = target.shape
    n = b * t * c
    pred = prediction.reshape(n, h, w).astype(jnp.float32)
    tgt = target.reshape(n, h, w).astype(jnp.float32)
    msk = mask.reshape(n, h, w).astype(jnp.float32)

    ssum = msk.sum(axis=(1, 2))
    valid = ssum > 0
    ssum_safe = jnp.where(valid, ssum, 1.0)
    k_med = (h * w - 1) // 2

    def norm(x):
        med = jnp.sort((msk * x).reshape(n, -1), axis=1)[:, k_med]
        m = jnp.where(valid, med, 0.0)
        xc = x - m[:, None, None]
        sq = (msk * jnp.abs(xc)).sum(axis=(1, 2))
        s = jnp.where(valid, jnp.maximum(sq / ssum_safe, 1e-6), 1.0)
        return xc / s[:, None, None]

    p = norm(pred)
    tg = norm(tgt)

    data_loss = jnp.sum(jnp.where(msk != 0.0, jnp.abs(p - tg), 0.0)) / (
        2.0 * msk.sum())

    logp = jnp.where(p > 0.0, jnp.log(p), 0.0)
    logt = jnp.where(tg > 0.0, jnp.log(tg), 0.0)
    diff = msk * (logp - logt)

    total = jnp.float32(0.0)
    for s in range(scales):
        step = 2 ** s
        ds = diff[:, ::step, ::step]
        ms = msk[:, ::step, ::step]
        gx = (jnp.abs(ds[:, :, 1:] - ds[:, :, :-1]) *
              (ms[:, :, 1:] * ms[:, :, :-1])).sum()
        gy = (jnp.abs(ds[:, 1:, :] - ds[:, :-1, :]) *
              (ms[:, 1:, :] * ms[:, :-1, :])).sum()
        g = gx + gy
        div = ms.sum()
        total = total + jnp.where(div == 0.0, 0.0,
                                  g / jnp.where(div == 0.0, 1.0, div))
    return data_loss + alpha * total


if __name__ == "__main__":
    key = jax.random.PRNGKey(0)
    # n = 2*2*5 = 20 images -> 3 grid blocks at TN=8, ragged last block (4 rows)
    b, t, c, h, w = 2, 2, 5, 16, 16
    k1, k2, k3 = jax.random.split(key, 3)
    prediction = jax.random.uniform(k1, (b, t, c, h, w), jnp.float32, 0.1, 2.0)
    target = jax.random.uniform(k2, (b, t, c, h, w), jnp.float32, 0.1, 2.0)
    mask = (jax.random.uniform(k3, (b, t, c, h, w)) > 0.3).astype(jnp.float32)

    loss_fn = jax.jit(functools.partial(trimmed_procrustes_loss,
                                        block_images=8))
    loss = jax.block_until_ready(loss_fn(prediction, target, mask))
    ref = jax.block_until_ready(reference_loss(prediction, target, mask))

    np.testing.assert_allclose(np.asarray(loss), np.asarray(ref),
                               rtol=1e-4, atol=1e-5)
    print("KERNEL_OK")
</pallas_src>

<mosaic_0001>
module attributes {stable_mosaic.version = 11 : i64} {
  func.func @_loss_kernel(%arg0: i32, %arg1: memref<12x256xbf16, #tpu.memory_space<vmem>>, %arg2: memref<8x256xf32, #tpu.memory_space<vmem>>, %arg3: memref<8x256xf32, #tpu.memory_space<vmem>>, %arg4: memref<8x256xf32, #tpu.memory_space<vmem>>, %arg5: memref<1x1x128xf32, #tpu.memory_space<vmem>>) attributes {dimension_semantics = [#tpu.dimension_semantics<parallel>], iteration_bounds = array<i64: 3>, scalar_prefetch = 0 : i64, scratch_operands = 0 : i64, tpu.core_type = #tpu.core_type<tc>, window_params = [{pipeline_mode = #tpu.pipeline_mode<synchronous>, transform_indices = @transform_0, window_bounds = array<i64: 12, 256>}, {transform_indices = @transform_1, window_bounds = array<i64: 8, 256>}, {transform_indices = @transform_2, window_bounds = array<i64: 8, 256>}, {transform_indices = @transform_3, window_bounds = array<i64: 8, 256>}, {transform_indices = @transform_4, window_bounds = array<i64: 1, 1, 128>}]} {
    %c0 = arith.constant 0 : index
    %c0_0 = arith.constant 0 : index
    %0 = vector.load %arg2[%c0, %c0_0] : memref<8x256xf32, #tpu.memory_space<vmem>>, vector<8x256xf32>
    %c0_1 = arith.constant 0 : index
    %c0_2 = arith.constant 0 : index
    %1 = vector.load %arg3[%c0_1, %c0_2] : memref<8x256xf32, #tpu.memory_space<vmem>>, vector<8x256xf32>
    %c0_3 = arith.constant 0 : index
    %c0_4 = arith.constant 0 : index
    %2 = vector.load %arg4[%c0_3, %c0_4] : memref<8x256xf32, #tpu.memory_space<vmem>>, vector<8x256xf32>
    %c0_5 = arith.constant 0 : index
    %c0_6 = arith.constant 0 : index
    %3 = vector.load %arg1[%c0_5, %c0_6] : memref<12x256xbf16, #tpu.memory_space<vmem>>, vector<12x256xbf16>
    %4 = arith.extf %3 : vector<12x256xbf16> to vector<12x256xf32>
    %c8_i32 = arith.constant 8 : i32
    %5 = arith.muli %arg0, %c8_i32 : i32
    %6 = tpu.iota {dimensions = array<i32: 0>} : vector<8x1xi32>
    %7 = vector.broadcast %5 : i32 to vector<8x1xi32>
    %8 = arith.addi %7, %6 : vector<8x1xi32>
    %c20_i32 = arith.constant 20 : i32
    %9 = vector.broadcast %c20_i32 : i32 to vector<8x1xi32>
    %10 = arith.cmpi slt, %8, %9 : vector<8x1xi32>
    %cst = arith.constant 0.000000e+00 : f32
    %11 = vector.shape_cast %10 : vector<8x1xi1> to vector<8x1xi1>
    %12 = vector.broadcast %11 : vector<8x1xi1> to vector<8x256xi1>
    %13 = vector.broadcast %cst : f32 to vector<8x256xf32>
    %14 = arith.select %12, %0, %13 : vector<8x256xi1>, vector<8x256xf32>
    %cst_7 = arith.constant 0.000000e+00 : f32
    %15 = vector.shape_cast %10 : vector<8x1xi1> to vector<8x1xi1>
    %16 = vector.broadcast %15 : vector<8x1xi1> to vector<8x256xi1>
    %17 = vector.broadcast %cst_7 : f32 to vector<8x256xf32>
    %18 = arith.select %16, %1, %17 : vector<8x256xi1>, vector<8x256xf32>
    %cst_8 = arith.constant 0.000000e+00 : f32
    %19 = vector.shape_cast %10 : vector<8x1xi1> to vector<8x1xi1>
    %20 = vector.broadcast %19 : vector<8x1xi1> to vector<8x256xi1>
    %21 = vector.broadcast %cst_8 : f32 to vector<8x256xf32>
    %22 = arith.select %20, %2, %21 : vector<8x256xi1>, vector<8x256xf32>
    %cst_9 = arith.constant dense<0.000000e+00> : vector<8xf32>
    %23 = vector.multi_reduction <add>, %22, %cst_9 [1] : vector<8x256xf32> to vector<8xf32>
    %24 = vector.shape_cast %23 : vector<8xf32> to vector<8x1xf32>
    %cst_10 = arith.constant 0.000000e+00 : f32
    %25 = vector.broadcast %cst_10 : f32 to vector<8x1xf32>
    %26 = arith.cmpf ogt, %24, %25 : vector<8x1xf32>
    %cst_11 = arith.constant 1.000000e+00 : f32
    %27 = vector.broadcast %cst_11 : f32 to vector<8x1xf32>
    %28 = arith.select %26, %24, %27 : vector<8x1xi1>, vector<8x1xf32>
    %29 = arith.mulf %22, %14 : vector<8x256xf32>
    %30 = tpu.bitcast %29 : vector<8x256xf32> -> vector<8x256xi32>
    %c0_i32 = arith.constant 0 : i32
    %31 = vector.broadcast %c0_i32 : i32 to vector<8x256xi32>
    %32 = arith.cmpi slt, %30, %31 : vector<8x256xi32>
    %c-1_i32 = arith.constant -1 : i32
    %c-2147483648_i32 = arith.constant -2147483648 : i32
    %33 = vector.broadcast %c-1_i32 : i32 to vector<8x256xi32>
    %34 = vector.broadcast %c-2147483648_i32 : i32 to vector<8x256xi32>
    %35 = arith.select %32, %33, %34 : vector<8x256xi1>, vector<8x256xi32>
    %36 = arith.xori %30, %35 : vector<8x256xi32>
    %c0_i32_12 = arith.constant 0 : i32
    %37 = vector.broadcast %c0_i32_12 : i32 to vector<8x1xi32>
    %cst_13 = arith.constant 1.270000e+02 : f32
    %38 = vector.broadcast %cst_13 : f32 to vector<8x1xf32>
    %c31_i32 = arith.constant 31 : i32
    %39 = vector.broadcast %c31_i32 : i32 to vector<8x256xi32>
    %40 = arith.shrsi %36, %39 : vector<8x256xi32>
    %c31_i32_14 = arith.constant 31 : i32
    %41 = vector.broadcast %c31_i32_14 : i32 to vector<8x1xi32>
    %42 = arith.shrsi %37, %41 : vector<8x1xi32>
    %43 = vector.broadcast %42 : vector<8x1xi32> to vector<8x256xi32>
    %44 = arith.cmpi eq, %40, %43 : vector<8x256xi32>
    %45 = arith.extui %44 : vector<8x256xi1> to vector<8x256xi32>
    %46 = arith.sitofp %45 : vector<8x256xi32> to vector<8x256xf32>
    %cst_15 = arith.constant dense<0.000000e+00> : vector<8xf32>
    %47 = vector.multi_reduction <add>, %46, %cst_15 [1] : vector<8x256xf32> to vector<8xf32>
    %48 = vector.shape_cast %47 : vector<8xf32> to vector<8x1xf32>
    %49 = arith.cmpf oge, %38, %48 : vector<8x1xf32>
    %c-2147483648_i32_16 = arith.constant -2147483648 : i32
    %50 = vector.broadcast %c-2147483648_i32_16 : i32 to vector<8x1xi32>
    %51 = arith.ori %37, %50 : vector<8x1xi32>
    %52 = arith.select %49, %51, %37 : vector<8x1xi1>, vector<8x1xi32>
    %53 = arith.subf %38, %48 : vector<8x1xf32>
    %54 = arith.select %49, %53, %38 : vector<8x1xi1>, vector<8x1xf32>
    %c30_i32 = arith.constant 30 : i32
    %55 = vector.broadcast %c30_i32 : i32 to vector<8x256xi32>
    %56 = arith.shrsi %36, %55 : vector<8x256xi32>
    %c30_i32_17 = arith.constant 30 : i32
    %57 = vector.broadcast %c30_i32_17 : i32 to vector<8x1xi32>
    %58 = arith.shrsi %52, %57 : vector<8x1xi32>
    %59 = vector.broadcast %58 : vector<8x1xi32> to vector<8x256xi32>
    %60 = arith.cmpi eq, %56, %59 : vector<8x256xi32>
    %61 = arith.extui %60 : vector<8x256xi1> to vector<8x256xi32>
    %62 = arith.sitofp %61 : vector<8x256xi32> to vector<8x256xf32>
    %cst_18 = arith.constant dense<0.000000e+00> : vector<8xf32>
    %63 = vector.multi_reduction <add>, %62, %cst_18 [1] : vector<8x256xf32> to vector<8xf32>
    %64 = vector.shape_cast %63 : vector<8xf32> to vector<8x1xf32>
    %65 = arith.cmpf oge, %54, %64 : vector<8x1xf32>
    %c1073741824_i32 = arith.constant 1073741824 : i32
    %66 = vector.broadcast %c1073741824_i32 : i32 to vector<8x1xi32>
    %67 = arith.ori %52, %66 : vector<8x1xi32>
    %68 = arith.select %65, %67, %52 : vector<8x1xi1>, vector<8x1xi32>
    %69 = arith.subf %54, %64 : vector<8x1xf32>
    %70 = arith.select %65, %69, %54 : vector<8x1xi1>, vector<8x1xf32>
    %c29_i32 = arith.constant 29 : i32
    %71 = vector.broadcast %c29_i32 : i32 to vector<8x256xi32>
    %72 = arith.shrsi %36, %71 : vector<8x256xi32>
    %c29_i32_19 = arith.constant 29 : i32
    %73 = vector.broadcast %c29_i32_19 : i32 to vector<8x1xi32>
    %74 = arith.shrsi %68, %73 : vector<8x1xi32>
    %75 = vector.broadcast %74 : vector<8x1xi32> to vector<8x256xi32>
    %76 = arith.cmpi eq, %72, %75 : vector<8x256xi32>
    %77 = arith.extui %76 : vector<8x256xi1> to vector<8x256xi32>
    %78 = arith.sitofp %77 : vector<8x256xi32> to vector<8x256xf32>
    %cst_20 = arith.constant dense<0.000000e+00> : vector<8xf32>
    %79 = vector.multi_reduction <add>, %78, %cst_20 [1] : vector<8x256xf32> to vector<8xf32>
    %80 = vector.shape_cast %79 : vector<8xf32> to vector<8x1xf32>
    %81 = arith.cmpf oge, %70, %80 : vector<8x1xf32>
    %c536870912_i32 = arith.constant 536870912 : i32
    %82 = vector.broadcast %c536870912_i32 : i32 to vector<8x1xi32>
    %83 = arith.ori %68, %82 : vector<8x1xi32>
    %84 = arith.select %81, %83, %68 : vector<8x1xi1>, vector<8x1xi32>
    %85 = arith.subf %70, %80 : vector<8x1xf32>
    %86 = arith.select %81, %85, %70 : vector<8x1xi1>, vector<8x1xf32>
    %c28_i32 = arith.constant 28 : i32
    %87 = vector.broadcast %c28_i32 : i32 to vector<8x256xi32>
    %88 = arith.shrsi %36, %87 : vector<8x256xi32>
    %c28_i32_21 = arith.constant 28 : i32
    %89 = vector.broadcast %c28_i32_21 : i32 to vector<8x1xi32>
    %90 = arith.shrsi %84, %89 : vector<8x1xi32>
    %91 = vector.broadcast %90 : vector<8x1xi32> to vector<8x256xi32>
    %92 = arith.cmpi eq, %88, %91 : vector<8x256xi32>
    %93 = arith.extui %92 : vector<8x256xi1> to vector<8x256xi32>
    %94 = arith.sitofp %93 : vector<8x256xi32> to vector<8x256xf32>
    %cst_22 = arith.constant dense<0.000000e+00> : vector<8xf32>
    %95 = vector.multi_reduction <add>, %94, %cst_22 [1] : vector<8x256xf32> to vector<8xf32>
    %96 = vector.shape_cast %95 : vector<8xf32> to vector<8x1xf32>
    %97 = arith.cmpf oge, %86, %96 : vector<8x1xf32>
    %c268435456_i32 = arith.constant 268435456 : i32
    %98 = vector.broadcast %c268435456_i32 : i32 to vector<8x1xi32>
    %99 = arith.ori %84, %98 : vector<8x1xi32>
    %100 = arith.select %97, %99, %84 : vector<8x1xi1>, vector<8x1xi32>
    %101 = arith.subf %86, %96 : vector<8x1xf32>
    %102 = arith.select %97, %101, %86 : vector<8x1xi1>, vector<8x1xf32>
    %c27_i32 = arith.constant 27 : i32
    %103 = vector.broadcast %c27_i32 : i32 to vector<8x256xi32>
    %104 = arith.shrsi %36, %103 : vector<8x256xi32>
    %c27_i32_23 = arith.constant 27 : i32
    %105 = vector.broadcast %c27_i32_23 : i32 to vector<8x1xi32>
    %106 = arith.shrsi %100, %105 : vector<8x1xi32>
    %107 = vector.broadcast %106 : vector<8x1xi32> to vector<8x256xi32>
    %108 = arith.cmpi eq, %104, %107 : vector<8x256xi32>
    %109 = arith.extui %108 : vector<8x256xi1> to vector<8x256xi32>
    %110 = arith.sitofp %109 : vector<8x256xi32> to vector<8x256xf32>
    %cst_24 = arith.constant dense<0.000000e+00> : vector<8xf32>
    %111 = vector.multi_reduction <add>, %110, %cst_24 [1] : vector<8x256xf32> to vector<8xf32>
    %112 = vector.shape_cast %111 : vector<8xf32> to vector<8x1xf32>
    %113 = arith.cmpf oge, %102, %112 : vector<8x1xf32>
    %c134217728_i32 = arith.constant 134217728 : i32
    %114 = vector.broadcast %c134217728_i32 : i32 to vector<8x1xi32>
    %115 = arith.ori %100, %114 : vector<8x1xi32>
    %116 = arith.select %113, %115, %100 : vector<8x1xi1>, vector<8x1xi32>
    %117 = arith.subf %102, %112 : vector<8x1xf32>
    %118 = arith.select %113, %117, %102 : vector<8x1xi1>, vector<8x1xf32>
    %c26_i32 = arith.constant 26 : i32
    %119 = vector.broadcast %c26_i32 : i32 to vector<8x256xi32>
    %120 = arith.shrsi %36, %119 : vector<8x256xi32>
    %c26_i32_25 = arith.constant 26 : i32
    %121 = vector.broadcast %c26_i32_25 : i32 to vector<8x1xi32>
    %122 = arith.shrsi %116, %121 : vector<8x1xi32>
    %123 = vector.broadcast %122 : vector<8x1xi32> to vector<8x256xi32>
    %124 = arith.cmpi eq, %120, %123 : vector<8x256xi32>
    %125 = arith.extui %124 : vector<8x256xi1> to vector<8x256xi32>
    %126 = arith.sitofp %125 : vector<8x256xi32> to vector<8x256xf32>
    %cst_26 = arith.constant dense<0.000000e+00> : vector<8xf32>
    %127 = vector.multi_reduction <add>, %126, %cst_26 [1] : vector<8x256xf32> to vector<8xf32>
    %128 = vector.shape_cast %127 : vector<8xf32> to vector<8x1xf32>
    %129 = arith.cmpf oge, %118, %128 : vector<8x1xf32>
    %c67108864_i32 = arith.constant 67108864 : i32
    %130 = vector.broadcast %c67108864_i32 : i32 to vector<8x1xi32>
    %131 = arith.ori %116, %130 : vector<8x1xi32>
    %132 = arith.select %129, %131, %116 : vector<8x1xi1>, vector<8x1xi32>
    %133 = arith.subf %118, %128 : vector<8x1xf32>
    %134 = arith.select %129, %133, %118 : vector<8x1xi1>, vector<8x1xf32>
    %c25_i32 = arith.constant 25 : i32
    %135 = vector.broadcast %c25_i32 : i32 to vector<8x256xi32>
    %136 = arith.shrsi %36, %135 : vector<8x256xi32>
    %c25_i32_27 = arith.constant 25 : i32
    %137 = vector.broadcast %c25_i32_27 : i32 to vector<8x1xi32>
    %138 = arith.shrsi %132, %137 : vector<8x1xi32>
    %139 = vector.broadcast %138 : vector<8x1xi32> to vector<8x256xi32>
    %140 = arith.cmpi eq, %136, %139 : vector<8x256xi32>
    %141 = arith.extui %140 : vector<8x256xi1> to vector<8x256xi32>
    %142 = arith.sitofp %141 : vector<8x256xi32> to vector<8x256xf32>
    %cst_28 = arith.constant dense<0.000000e+00> : vector<8xf32>
    %143 = vector.multi_reduction <add>, %142, %cst_28 [1] : vector<8x256xf32> to vector<8xf32>
    %144 = vector.shape_cast %143 : vector<8xf32> to vector<8x1xf32>
    %145 = arith.cmpf oge, %134, %144 : vector<8x1xf32>
    %c33554432_i32 = arith.constant 33554432 : i32
    %146 = vector.broadcast %c33554432_i32 : i32 to vector<8x1xi32>
    %147 = arith.ori %132, %146 : vector<8x1xi32>
    %148 = arith.select %145, %147, %132 : vector<8x1xi1>, vector<8x1xi32>
    %149 = arith.subf %134, %144 : vector<8x1xf32>
    %150 = arith.select %145, %149, %134 : vector<8x1xi1>, vector<8x1xf32>
    %c24_i32 = arith.constant 24 : i32
    %151 = vector.broadcast %c24_i32 : i32 to vector<8x256xi32>
    %152 = arith.shrsi %36, %151 : vector<8x256xi32>
    %c24_i32_29 = arith.constant 24 : i32
    %153 = vector.broadcast %c24_i32_29 : i32 to vector<8x1xi32>
    %154 = arith.shrsi %148, %153 : vector<8x1xi32>
    %155 = vector.broadcast %154 : vector<8x1xi32> to vector<8x256xi32>
    %156 = arith.cmpi eq, %152, %155 : vector<8x256xi32>
    %157 = arith.extui %156 : vector<8x256xi1> to vector<8x256xi32>
    %158 = arith.sitofp %157 : vector<8x256xi32> to vector<8x256xf32>
    %cst_30 = arith.constant dense<0.000000e+00> : vector<8xf32>
    %159 = vector.multi_reduction <add>, %158, %cst_30 [1] : vector<8x256xf32> to vector<8xf32>
    %160 = vector.shape_cast %159 : vector<8xf32> to vector<8x1xf32>
    %161 = arith.cmpf oge, %150, %160 : vector<8x1xf32>
    %c16777216_i32 = arith.constant 16777216 : i32
    %162 = vector.broadcast %c16777216_i32 : i32 to vector<8x1xi32>
    %163 = arith.ori %148, %162 : vector<8x1xi32>
    %164 = arith.select %161, %163, %148 : vector<8x1xi1>, vector<8x1xi32>
    %165 = arith.subf %150, %160 : vector<8x1xf32>
    %166 = arith.select %161, %165, %150 : vector<8x1xi1>, vector<8x1xf32>
    %c23_i32 = arith.constant 23 : i32
    %167 = vector.broadcast %c23_i32 : i32 to vector<8x256xi32>
    %168 = arith.shrsi %36, %167 : vector<8x256xi32>
    %c23_i32_31 = arith.constant 23 : i32
    %169 = vector.broadcast %c23_i32_31 : i32 to vector<8x1xi32>
    %170 = arith.shrsi %164, %169 : vector<8x1xi32>
    %171 = vector.broadcast %170 : vector<8x1xi32> to vector<8x256xi32>
    %172 = arith.cmpi eq, %168, %171 : vector<8x256xi32>
    %173 = arith.extui %172 : vector<8x256xi1> to vector<8x256xi32>
    %174 = arith.sitofp %173 : vector<8x256xi32> to vector<8x256xf32>
    %cst_32 = arith.constant dense<0.000000e+00> : vector<8xf32>
    %175 = vector.multi_reduction <add>, %174, %cst_32 [1] : vector<8x256xf32> to vector<8xf32>
    %176 = vector.shape_cast %175 : vector<8xf32> to vector<8x1xf32>
    %177 = arith.cmpf oge, %166, %176 : vector<8x1xf32>
    %c8388608_i32 = arith.constant 8388608 : i32
    %178 = vector.broadcast %c8388608_i32 : i32 to vector<8x1xi32>
    %179 = arith.ori %164, %178 : vector<8x1xi32>
    %180 = arith.select %177, %179, %164 : vector<8x1xi1>, vector<8x1xi32>
    %181 = arith.subf %166, %176 : vector<8x1xf32>
    %182 = arith.select %177, %181, %166 : vector<8x1xi1>, vector<8x1xf32>
    %c22_i32 = arith.constant 22 : i32
    %183 = vector.broadcast %c22_i32 : i32 to vector<8x256xi32>
    %184 = arith.shrsi %36, %183 : vector<8x256xi32>
    %c22_i32_33 = arith.constant 22 : i32
    %185 = vector.broadcast %c22_i32_33 : i32 to vector<8x1xi32>
    %186 = arith.shrsi %180, %185 : vector<8x1xi32>
    %187 = vector.broadcast %186 : vector<8x1xi32> to vector<8x256xi32>
    %188 = arith.cmpi eq, %184, %187 : vector<8x256xi32>
    %189 = arith.extui %188 : vector<8x256xi1> to vector<8x256xi32>
    %190 = arith.sitofp %189 : vector<8x256xi32> to vector<8x256xf32>
    %cst_34 = arith.constant dense<0.000000e+00> : vector<8xf32>
    %191 = vector.multi_reduction <add>, %190, %cst_34 [1] : vector<8x256xf32> to vector<8xf32>
    %192 = vector.shape_cast %191 : vector<8xf32> to vector<8x1xf32>
    %193 = arith.cmpf oge, %182, %192 : vector<8x1xf32>
    %c4194304_i32 = arith.constant 4194304 : i32
    %194 = vector.broadcast %c4194304_i32 : i32 to vector<8x1xi32>
    %195 = arith.ori %180, %194 : vector<8x1xi32>
    %196 = arith.select %193, %195, %180 : vector<8x1xi1>, vector<8x1xi32>
    %197 = arith.subf %182, %192 : vector<8x1xf32>
    %198 = arith.select %193, %197, %182 : vector<8x1xi1>, vector<8x1xf32>
    %c21_i32 = arith.constant 21 : i32
    %199 = vector.broadcast %c21_i32 : i32 to vector<8x256xi32>
    %200 = arith.shrsi %36, %199 : vector<8x256xi32>
    %c21_i32_35 = arith.constant 21 : i32
    %201 = vector.broadcast %c21_i32_35 : i32 to vector<8x1xi32>
    %202 = arith.shrsi %196, %201 : vector<8x1xi32>
    %203 = vector.broadcast %202 : vector<8x1xi32> to vector<8x256xi32>
    %204 = arith.cmpi eq, %200, %203 : vector<8x256xi32>
    %205 = arith.extui %204 : vector<8x256xi1> to vector<8x256xi32>
    %206 = arith.sitofp %205 : vector<8x256xi32> to vector<8x256xf32>
    %cst_36 = arith.constant dense<0.000000e+00> : vector<8xf32>
    %207 = vector.multi_reduction <add>, %206, %cst_36 [1] : vector<8x256xf32> to vector<8xf32>
    %208 = vector.shape_cast %207 : vector<8xf32> to vector<8x1xf32>
    %209 = arith.cmpf oge, %198, %208 : vector<8x1xf32>
    %c2097152_i32 = arith.constant 2097152 : i32
    %210 = vector.broadcast %c2097152_i32 : i32 to vector<8x1xi32>
    %211 = arith.ori %196, %210 : vector<8x1xi32>
    %212 = arith.select %209, %211, %196 : vector<8x1xi1>, vector<8x1xi32>
    %213 = arith.subf %198, %208 : vector<8x1xf32>
    %214 = arith.select %209, %213, %198 : vector<8x1xi1>, vector<8x1xf32>
    %c20_i32_37 = arith.constant 20 : i32
    %215 = vector.broadcast %c20_i32_37 : i32 to vector<8x256xi32>
    %216 = arith.shrsi %36, %215 : vector<8x256xi32>
    %c20_i32_38 = arith.constant 20 : i32
    %217 = vector.broadcast %c20_i32_38 : i32 to vector<8x1xi32>
    %218 = arith.shrsi %212, %217 : vector<8x1xi32>
    %219 = vector.broadcast %218 : vector<8x1xi32> to vector<8x256xi32>
    %220 = arith.cmpi eq, %216, %219 : vector<8x256xi32>
    %221 = arith.extui %220 : vector<8x256xi1> to vector<8x256xi32>
    %222 = arith.sitofp %221 : vector<8x256xi32> to vector<8x256xf32>
    %cst_39 = arith.constant dense<0.000000e+00> : vector<8xf32>
    %223 = vector.multi_reduction <add>, %222, %cst_39 [1] : vector<8x256xf32> to vector<8xf32>
    %224 = vector.shape_cast %223 : vector<8xf32> to vector<8x1xf32>
    %225 = arith.cmpf oge, %214, %224 : vector<8x1xf32>
    %c1048576_i32 = arith.constant 1048576 : i32
    %226 = vector.broadcast %c1048576_i32 : i32 to vector<8x1xi32>
    %227 = arith.ori %212, %226 : vector<8x1xi32>
    %228 = arith.select %225, %227, %212 : vector<8x1xi1>, vector<8x1xi32>
    %229 = arith.subf %214, %224 : vector<8x1xf32>
    %230 = arith.select %225, %229, %214 : vector<8x1xi1>, vector<8x1xf32>
    %c19_i32 = arith.constant 19 : i32
    %231 = vector.broadcast %c19_i32 : i32 to vector<8x256xi32>
    %232 = arith.shrsi %36, %231 : vector<8x256xi32>
    %c19_i32_40 = arith.constant 19 : i32
    %233 = vector.broadcast %c19_i32_40 : i32 to vector<8x1xi32>
    %234 = arith.shrsi %228, %233 : vector<8x1xi32>
    %235 = vector.broadcast %234 : vector<8x1xi32> to vector<8x256xi32>
    %236 = arith.cmpi eq, %232, %235 : vector<8x256xi32>
    %237 = arith.extui %236 : vector<8x256xi1> to vector<8x256xi32>
    %238 = arith.sitofp %237 : vector<8x256xi32> to vector<8x256xf32>
    %cst_41 = arith.constant dense<0.000000e+00> : vector<8xf32>
    %239 = vector.multi_reduction <add>, %238, %cst_41 [1] : vector<8x256xf32> to vector<8xf32>
    %240 = vector.shape_cast %239 : vector<8xf32> to vector<8x1xf32>
    %241 = arith.cmpf oge, %230, %240 : vector<8x1xf32>
    %c524288_i32 = arith.constant 524288 : i32
    %242 = vector.broadcast %c524288_i32 : i32 to vector<8x1xi32>
    %243 = arith.ori %228, %242 : vector<8x1xi32>
    %244 = arith.select %241, %243, %228 : vector<8x1xi1>, vector<8x1xi32>
    %245 = arith.subf %230, %240 : vector<8x1xf32>
    %246 = arith.select %241, %245, %230 : vector<8x1xi1>, vector<8x1xf32>
    %c18_i32 = arith.constant 18 : i32
    %247 = vector.broadcast %c18_i32 : i32 to vector<8x256xi32>
    %248 = arith.shrsi %36, %247 : vector<8x256xi32>
    %c18_i32_42 = arith.constant 18 : i32
    %249 = vector.broadcast %c18_i32_42 : i32 to vector<8x1xi32>
    %250 = arith.shrsi %244, %249 : vector<8x1xi32>
    %251 = vector.broadcast %250 : vector<8x1xi32> to vector<8x256xi32>
    %252 = arith.cmpi eq, %248, %251 : vector<8x256xi32>
    %253 = arith.extui %252 : vector<8x256xi1> to vector<8x256xi32>
    %254 = arith.sitofp %253 : vector<8x256xi32> to vector<8x256xf32>
    %cst_43 = arith.constant dense<0.000000e+00> : vector<8xf32>
    %255 = vector.multi_reduction <add>, %254, %cst_43 [1] : vector<8x256xf32> to vector<8xf32>
    %256 = vector.shape_cast %255 : vector<8xf32> to vector<8x1xf32>
    %257 = arith.cmpf oge, %246, %256 : vector<8x1xf32>
    %c262144_i32 = arith.constant 262144 : i32
    %258 = vector.broadcast %c262144_i32 : i32 to vector<8x1xi32>
    %259 = arith.ori %244, %258 : vector<8x1xi32>
    %260 = arith.select %257, %259, %244 : vector<8x1xi1>, vector<8x1xi32>
    %261 = arith.subf %246, %256 : vector<8x1xf32>
    %262 = arith.select %257, %261, %246 : vector<8x1xi1>, vector<8x1xf32>
    %c17_i32 = arith.constant 17 : i32
    %263 = vector.broadcast %c17_i32 : i32 to vector<8x256xi32>
    %264 = arith.shrsi %36, %263 : vector<8x256xi32>
    %c17_i32_44 = arith.constant 17 : i32
    %265 = vector.broadcast %c17_i32_44 : i32 to vector<8x1xi32>
    %266 = arith.shrsi %260, %265 : vector<8x1xi32>
    %267 = vector.broadcast %266 : vector<8x1xi32> to vector<8x256xi32>
    %268 = arith.cmpi eq, %264, %267 : vector<8x256xi32>
    %269 = arith.extui %268 : vector<8x256xi1> to vector<8x256xi32>
    %270 = arith.sitofp %269 : vector<8x256xi32> to vector<8x256xf32>
    %cst_45 = arith.constant dense<0.000000e+00> : vector<8xf32>
    %271 = vector.multi_reduction <add>, %270, %cst_45 [1] : vector<8x256xf32> to vector<8xf32>
    %272 = vector.shape_cast %271 : vector<8xf32> to vector<8x1xf32>
    %273 = arith.cmpf oge, %262, %272 : vector<8x1xf32>
    %c131072_i32 = arith.constant 131072 : i32
    %274 = vector.broadcast %c131072_i32 : i32 to vector<8x1xi32>
    %275 = arith.ori %260, %274 : vector<8x1xi32>
    %276 = arith.select %273, %275, %260 : vector<8x1xi1>, vector<8x1xi32>
    %277 = arith.subf %262, %272 : vector<8x1xf32>
    %278 = arith.select %273, %277, %262 : vector<8x1xi1>, vector<8x1xf32>
    %c16_i32 = arith.constant 16 : i32
    %279 = vector.broadcast %c16_i32 : i32 to vector<8x256xi32>
    %280 = arith.shrsi %36, %279 : vector<8x256xi32>
    %c16_i32_46 = arith.constant 16 : i32
    %281 = vector.broadcast %c16_i32_46 : i32 to vector<8x1xi32>
    %282 = arith.shrsi %276, %281 : vector<8x1xi32>
    %283 = vector.broadcast %282 : vector<8x1xi32> to vector<8x256xi32>
    %284 = arith.cmpi eq, %280, %283 : vector<8x256xi32>
    %285 = arith.extui %284 : vector<8x256xi1> to vector<8x256xi32>
    %286 = arith.sitofp %285 : vector<8x256xi32> to vector<8x256xf32>
    %cst_47 = arith.constant dense<0.000000e+00> : vector<8xf32>
    %287 = vector.multi_reduction <add>, %286, %cst_47 [1] : vector<8x256xf32> to vector<8xf32>
    %288 = vector.shape_cast %287 : vector<8xf32> to vector<8x1xf32>
    %289 = arith.cmpf oge, %278, %288 : vector<8x1xf32>
    %c65536_i32 = arith.constant 65536 : i32
    %290 = vector.broadcast %c65536_i32 : i32 to vector<8x1xi32>
    %291 = arith.ori %276, %290 : vector<8x1xi32>
    %292 = arith.select %289, %291, %276 : vector<8x1xi1>, vector<8x1xi32>
    %293 = arith.subf %278, %288 : vector<8x1xf32>
    %294 = arith.select %289, %293, %278 : vector<8x1xi1>, vector<8x1xf32>
    %c15_i32 = arith.constant 15 : i32
    %295 = vector.broadcast %c15_i32 : i32 to vector<8x256xi32>
    %296 = arith.shrsi %36, %295 : vector<8x256xi32>
    %c15_i32_48 = arith.constant 15 : i32
    %297 = vector.broadcast %c15_i32_48 : i32 to vector<8x1xi32>
    %298 = arith.shrsi %292, %297 : vector<8x1xi32>
    %299 = vector.broadcast %298 : vector<8x1xi32> to vector<8x256xi32>
    %300 = arith.cmpi eq, %296, %299 : vector<8x256xi32>
    %301 = arith.extui %300 : vector<8x256xi1> to vector<8x256xi32>
    %302 = arith.sitofp %301 : vector<8x256xi32> to vector<8x256xf32>
    %cst_49 = arith.constant dense<0.000000e+00> : vector<8xf32>
    %303 = vector.multi_reduction <add>, %302, %cst_49 [1] : vector<8x256xf32> to vector<8xf32>
    %304 = vector.shape_cast %303 : vector<8xf32> to vector<8x1xf32>
    %305 = arith.cmpf oge, %294, %304 : vector<8x1xf32>
    %c32768_i32 = arith.constant 32768 : i32
    %306 = vector.broadcast %c32768_i32 : i32 to vector<8x1xi32>
    %307 = arith.ori %292, %306 : vector<8x1xi32>
    %308 = arith.select %305, %307, %292 : vector<8x1xi1>, vector<8x1xi32>
    %309 = arith.subf %294, %304 : vector<8x1xf32>
    %310 = arith.select %305, %309, %294 : vector<8x1xi1>, vector<8x1xf32>
    %c14_i32 = arith.constant 14 : i32
    %311 = vector.broadcast %c14_i32 : i32 to vector<8x256xi32>
    %312 = arith.shrsi %36, %311 : vector<8x256xi32>
    %c14_i32_50 = arith.constant 14 : i32
    %313 = vector.broadcast %c14_i32_50 : i32 to vector<8x1xi32>
    %314 = arith.shrsi %308, %313 : vector<8x1xi32>
    %315 = vector.broadcast %314 : vector<8x1xi32> to vector<8x256xi32>
    %316 = arith.cmpi eq, %312, %315 : vector<8x256xi32>
    %317 = arith.extui %316 : vector<8x256xi1> to vector<8x256xi32>
    %318 = arith.sitofp %317 : vector<8x256xi32> to vector<8x256xf32>
    %cst_51 = arith.constant dense<0.000000e+00> : vector<8xf32>
    %319 = vector.multi_reduction <add>, %318, %cst_51 [1] : vector<8x256xf32> to vector<8xf32>
    %320 = vector.shape_cast %319 : vector<8xf32> to vector<8x1xf32>
    %321 = arith.cmpf oge, %310, %320 : vector<8x1xf32>
    %c16384_i32 = arith.constant 16384 : i32
    %322 = vector.broadcast %c16384_i32 : i32 to vector<8x1xi32>
    %323 = arith.ori %308, %322 : vector<8x1xi32>
    %324 = arith.select %321, %323, %308 : vector<8x1xi1>, vector<8x1xi32>
    %325 = arith.subf %310, %320 : vector<8x1xf32>
    %326 = arith.select %321, %325, %310 : vector<8x1xi1>, vector<8x1xf32>
    %c13_i32 = arith.constant 13 : i32
    %327 = vector.broadcast %c13_i32 : i32 to vector<8x256xi32>
    %328 = arith.shrsi %36, %327 : vector<8x256xi32>
    %c13_i32_52 = arith.constant 13 : i32
    %329 = vector.broadcast %c13_i32_52 : i32 to vector<8x1xi32>
    %330 = arith.shrsi %324, %329 : vector<8x1xi32>
    %331 = vector.broadcast %330 : vector<8x1xi32> to vector<8x256xi32>
    %332 = arith.cmpi eq, %328, %331 : vector<8x256xi32>
    %333 = arith.extui %332 : vector<8x256xi1> to vector<8x256xi32>
    %334 = arith.sitofp %333 : vector<8x256xi32> to vector<8x256xf32>
    %cst_53 = arith.constant dense<0.000000e+00> : vector<8xf32>
    %335 = vector.multi_reduction <add>, %334, %cst_53 [1] : vector<8x256xf32> to vector<8xf32>
    %336 = vector.shape_cast %335 : vector<8xf32> to vector<8x1xf32>
    %337 = arith.cmpf oge, %326, %336 : vector<8x1xf32>
    %c8192_i32 = arith.constant 8192 : i32
    %338 = vector.broadcast %c8192_i32 : i32 to vector<8x1xi32>
    %339 = arith.ori %324, %338 : vector<8x1xi32>
    %340 = arith.select %337, %339, %324 : vector<8x1xi1>, vector<8x1xi32>
    %341 = arith.subf %326, %336 : vector<8x1xf32>
    %342 = arith.select %337, %341, %326 : vector<8x1xi1>, vector<8x1xf32>
    %c12_i32 = arith.constant 12 : i32
    %343 = vector.broadcast %c12_i32 : i32 to vector<8x256xi32>
    %344 = arith.shrsi %36, %343 : vector<8x256xi32>
    %c12_i32_54 = arith.constant 12 : i32
    %345 = vector.broadcast %c12_i32_54 : i32 to vector<8x1xi32>
    %346 = arith.shrsi %340, %345 : vector<8x1xi32>
    %347 = vector.broadcast %346 : vector<8x1xi32> to vector<8x256xi32>
    %348 = arith.cmpi eq, %344, %347 : vector<8x256xi32>
    %349 = arith.extui %348 : vector<8x256xi1> to vector<8x256xi32>
    %350 = arith.sitofp %349 : vector<8x256xi32> to vector<8x256xf32>
    %cst_55 = arith.constant dense<0.000000e+00> : vector<8xf32>
    %351 = vector.multi_reduction <add>, %350, %cst_55 [1] : vector<8x256xf32> to vector<8xf32>
    %352 = vector.shape_cast %351 : vector<8xf32> to vector<8x1xf32>
    %353 = arith.cmpf oge, %342, %352 : vector<8x1xf32>
    %c4096_i32 = arith.constant 4096 : i32
    %354 = vector.broadcast %c4096_i32 : i32 to vector<8x1xi32>
    %355 = arith.ori %340, %354 : vector<8x1xi32>
    %356 = arith.select %353, %355, %340 : vector<8x1xi1>, vector<8x1xi32>
    %357 = arith.subf %342, %352 : vector<8x1xf32>
    %358 = arith.select %353, %357, %342 : vector<8x1xi1>, vector<8x1xf32>
    %c11_i32 = arith.constant 11 : i32
    %359 = vector.broadcast %c11_i32 : i32 to vector<8x256xi32>
    %360 = arith.shrsi %36, %359 : vector<8x256xi32>
    %c11_i32_56 = arith.constant 11 : i32
    %361 = vector.broadcast %c11_i32_56 : i32 to vector<8x1xi32>
    %362 = arith.shrsi %356, %361 : vector<8x1xi32>
    %363 = vector.broadcast %362 : vector<8x1xi32> to vector<8x256xi32>
    %364 = arith.cmpi eq, %360, %363 : vector<8x256xi32>
    %365 = arith.extui %364 : vector<8x256xi1> to vector<8x256xi32>
    %366 = arith.sitofp %365 : vector<8x256xi32> to vector<8x256xf32>
    %cst_57 = arith.constant dense<0.000000e+00> : vector<8xf32>
    %367 = vector.multi_reduction <add>, %366, %cst_57 [1] : vector<8x256xf32> to vector<8xf32>
    %368 = vector.shape_cast %367 : vector<8xf32> to vector<8x1xf32>
    %369 = arith.cmpf oge, %358, %368 : vector<8x1xf32>
    %c2048_i32 = arith.constant 2048 : i32
    %370 = vector.broadcast %c2048_i32 : i32 to vector<8x1xi32>
    %371 = arith.ori %356, %370 : vector<8x1xi32>
    %372 = arith.select %369, %371, %356 : vector<8x1xi1>, vector<8x1xi32>
    %373 = arith.subf %358, %368 : vector<8x1xf32>
    %374 = arith.select %369, %373, %358 : vector<8x1xi1>, vector<8x1xf32>
    %c10_i32 = arith.constant 10 : i32
    %375 = vector.broadcast %c10_i32 : i32 to vector<8x256xi32>
    %376 = arith.shrsi %36, %375 : vector<8x256xi32>
    %c10_i32_58 = arith.constant 10 : i32
    %377 = vector.broadcast %c10_i32_58 : i32 to vector<8x1xi32>
    %378 = arith.shrsi %372, %377 : vector<8x1xi32>
    %379 = vector.broadcast %378 : vector<8x1xi32> to vector<8x256xi32>
    %380 = arith.cmpi eq, %376, %379 : vector<8x256xi32>
    %381 = arith.extui %380 : vector<8x256xi1> to vector<8x256xi32>
    %382 = arith.sitofp %381 : vector<8x256xi32> to vector<8x256xf32>
    %cst_59 = arith.constant dense<0.000000e+00> : vector<8xf32>
    %383 = vector.multi_reduction <add>, %382, %cst_59 [1] : vector<8x256xf32> to vector<8xf32>
    %384 = vector.shape_cast %383 : vector<8xf32> to vector<8x1xf32>
    %385 = arith.cmpf oge, %374, %384 : vector<8x1xf32>
    %c1024_i32 = arith.constant 1024 : i32
    %386 = vector.broadcast %c1024_i32 : i32 to vector<8x1xi32>
    %387 = arith.ori %372, %386 : vector<8x1xi32>
    %388 = arith.select %385, %387, %372 : vector<8x1xi1>, vector<8x1xi32>
    %389 = arith.subf %374, %384 : vector<8x1xf32>
    %390 = arith.select %385, %389, %374 : vector<8x1xi1>, vector<8x1xf32>
    %c9_i32 = arith.constant 9 : i32
    %391 = vector.broadcast %c9_i32 : i32 to vector<8x256xi32>
    %392 = arith.shrsi %36, %391 : vector<8x256xi32>
    %c9_i32_60 = arith.constant 9 : i32
    %393 = vector.broadcast %c9_i32_60 : i32 to vector<8x1xi32>
    %394 = arith.shrsi %388, %393 : vector<8x1xi32>
    %395 = vector.broadcast %394 : vector<8x1xi32> to vector<8x256xi32>
    %396 = arith.cmpi eq, %392, %395 : vector<8x256xi32>
    %397 = arith.extui %396 : vector<8x256xi1> to vector<8x256xi32>
    %398 = arith.sitofp %397 : vector<8x256xi32> to vector<8x256xf32>
    %cst_61 = arith.constant dense<0.000000e+00> : vector<8xf32>
    %399 = vector.multi_reduction <add>, %398, %cst_61 [1] : vector<8x256xf32> to vector<8xf32>
    %400 = vector.shape_cast %399 : vector<8xf32> to vector<8x1xf32>
    %401 = arith.cmpf oge, %390, %400 : vector<8x1xf32>
    %c512_i32 = arith.constant 512 : i32
    %402 = vector.broadcast %c512_i32 : i32 to vector<8x1xi32>
    %403 = arith.ori %388, %402 : vector<8x1xi32>
    %404 = arith.select %401, %403, %388 : vector<8x1xi1>, vector<8x1xi32>
    %405 = arith.subf %390, %400 : vector<8x1xf32>
    %406 = arith.select %401, %405, %390 : vector<8x1xi1>, vector<8x1xf32>
    %c8_i32_62 = arith.constant 8 : i32
    %407 = vector.broadcast %c8_i32_62 : i32 to vector<8x256xi32>
    %408 = arith.shrsi %36, %407 : vector<8x256xi32>
    %c8_i32_63 = arith.constant 8 : i32
    %409 = vector.broadcast %c8_i32_63 : i32 to vector<8x1xi32>
    %410 = arith.shrsi %404, %409 : vector<8x1xi32>
    %411 = vector.broadcast %410 : vector<8x1xi32> to vector<8x256xi32>
    %412 = arith.cmpi eq, %408, %411 : vector<8x256xi32>
    %413 = arith.extui %412 : vector<8x256xi1> to vector<8x256xi32>
    %414 = arith.sitofp %413 : vector<8x256xi32> to vector<8x256xf32>
    %cst_64 = arith.constant dense<0.000000e+00> : vector<8xf32>
    %415 = vector.multi_reduction <add>, %414, %cst_64 [1] : vector<8x256xf32> to vector<8xf32>
    %416 = vector.shape_cast %415 : vector<8xf32> to vector<8x1xf32>
    %417 = arith.cmpf oge, %406, %416 : vector<8x1xf32>
    %c256_i32 = arith.constant 256 : i32
    %418 = vector.broadcast %c256_i32 : i32 to vector<8x1xi32>
    %419 = arith.ori %404, %418 : vector<8x1xi32>
    %420 = arith.select %417, %419, %404 : vector<8x1xi1>, vector<8x1xi32>
    %421 = arith.subf %406, %416 : vector<8x1xf32>
    %422 = arith.select %417, %421, %406 : vector<8x1xi1>, vector<8x1xf32>
    %c7_i32 = arith.constant 7 : i32
    %423 = vector.broadcast %c7_i32 : i32 to vector<8x256xi32>
    %424 = arith.shrsi %36, %423 : vector<8x256xi32>
    %c7_i32_65 = arith.constant 7 : i32
    %425 = vector.broadcast %c7_i32_65 : i32 to vector<8x1xi32>
    %426 = arith.shrsi %420, %425 : vector<8x1xi32>
    %427 = vector.broadcast %426 : vector<8x1xi32> to vector<8x256xi32>
    %428 = arith.cmpi eq, %424, %427 : vector<8x256xi32>
    %429 = arith.extui %428 : vector<8x256xi1> to vector<8x256xi32>
    %430 = arith.sitofp %429 : vector<8x256xi32> to vector<8x256xf32>
    %cst_66 = arith.constant dense<0.000000e+00> : vector<8xf32>
    %431 = vector.multi_reduction <add>, %430, %cst_66 [1] : vector<8x256xf32> to vector<8xf32>
    %432 = vector.shape_cast %431 : vector<8xf32> to vector<8x1xf32>
    %433 = arith.cmpf oge, %422, %432 : vector<8x1xf32>
    %c128_i32 = arith.constant 128 : i32
    %434 = vector.broadcast %c128_i32 : i32 to vector<8x1xi32>
    %435 = arith.ori %420, %434 : vector<8x1xi32>
    %436 = arith.select %433, %435, %420 : vector<8x1xi1>, vector<8x1xi32>
    %437 = arith.subf %422, %432 : vector<8x1xf32>
    %438 = arith.select %433, %437, %422 : vector<8x1xi1>, vector<8x1xf32>
    %c6_i32 = arith.constant 6 : i32
    %439 = vector.broadcast %c6_i32 : i32 to vector<8x256xi32>
    %440 = arith.shrsi %36, %439 : vector<8x256xi32>
    %c6_i32_67 = arith.constant 6 : i32
    %441 = vector.broadcast %c6_i32_67 : i32 to vector<8x1xi32>
    %442 = arith.shrsi %436, %441 : vector<8x1xi32>
    %443 = vector.broadcast %442 : vector<8x1xi32> to vector<8x256xi32>
    %444 = arith.cmpi eq, %440, %443 : vector<8x256xi32>
    %445 = arith.extui %444 : vector<8x256xi1> to vector<8x256xi32>
    %446 = arith.sitofp %445 : vector<8x256xi32> to vector<8x256xf32>
    %cst_68 = arith.constant dense<0.000000e+00> : vector<8xf32>
    %447 = vector.multi_reduction <add>, %446, %cst_68 [1] : vector<8x256xf32> to vector<8xf32>
    %448 = vector.shape_cast %447 : vector<8xf32> to vector<8x1xf32>
    %449 = arith.cmpf oge, %438, %448 : vector<8x1xf32>
    %c64_i32 = arith.constant 64 : i32
    %450 = vector.broadcast %c64_i32 : i32 to vector<8x1xi32>
    %451 = arith.ori %436, %450 : vector<8x1xi32>
    %452 = arith.select %449, %451, %436 : vector<8x1xi1>, vector<8x1xi32>
    %453 = arith.subf %438, %448 : vector<8x1xf32>
    %454 = arith.select %449, %453, %438 : vector<8x1xi1>, vector<8x1xf32>
    %c5_i32 = arith.constant 5 : i32
    %455 = vector.broadcast %c5_i32 : i32 to vector<8x256xi32>
    %456 = arith.shrsi %36, %455 : vector<8x256xi32>
    %c5_i32_69 = arith.constant 5 : i32
    %457 = vector.broadcast %c5_i32_69 : i32 to vector<8x1xi32>
    %458 = arith.shrsi %452, %457 : vector<8x1xi32>
    %459 = vector.broadcast %458 : vector<8x1xi32> to vector<8x256xi32>
    %460 = arith.cmpi eq, %456, %459 : vector<8x256xi32>
    %461 = arith.extui %460 : vector<8x256xi1> to vector<8x256xi32>
    %462 = arith.sitofp %461 : vector<8x256xi32> to vector<8x256xf32>
    %cst_70 = arith.constant dense<0.000000e+00> : vector<8xf32>
    %463 = vector.multi_reduction <add>, %462, %cst_70 [1] : vector<8x256xf32> to vector<8xf32>
    %464 = vector.shape_cast %463 : vector<8xf32> to vector<8x1xf32>
    %465 = arith.cmpf oge, %454, %464 : vector<8x1xf32>
    %c32_i32 = arith.constant 32 : i32
    %466 = vector.broadcast %c32_i32 : i32 to vector<8x1xi32>
    %467 = arith.ori %452, %466 : vector<8x1xi32>
    %468 = arith.select %465, %467, %452 : vector<8x1xi1>, vector<8x1xi32>
    %469 = arith.subf %454, %464 : vector<8x1xf32>
    %470 = arith.select %465, %469, %454 : vector<8x1xi1>, vector<8x1xf32>
    %c4_i32 = arith.constant 4 : i32
    %471 = vector.broadcast %c4_i32 : i32 to vector<8x256xi32>
    %472 = arith.shrsi %36, %471 : vector<8x256xi32>
    %c4_i32_71 = arith.constant 4 : i32
    %473 = vector.broadcast %c4_i32_71 : i32 to vector<8x1xi32>
    %474 = arith.shrsi %468, %473 : vector<8x1xi32>
    %475 = vector.broadcast %474 : vector<8x1xi32> to vector<8x256xi32>
    %476 = arith.cmpi eq, %472, %475 : vector<8x256xi32>
    %477 = arith.extui %476 : vector<8x256xi1> to vector<8x256xi32>
    %478 = arith.sitofp %477 : vector<8x256xi32> to vector<8x256xf32>
    %cst_72 = arith.constant dense<0.000000e+00> : vector<8xf32>
    %479 = vector.multi_reduction <add>, %478, %cst_72 [1] : vector<8x256xf32> to vector<8xf32>
    %480 = vector.shape_cast %479 : vector<8xf32> to vector<8x1xf32>
    %481 = arith.cmpf oge, %470, %480 : vector<8x1xf32>
    %c16_i32_73 = arith.constant 16 : i32
    %482 = vector.broadcast %c16_i32_73 : i32 to vector<8x1xi32>
    %483 = arith.ori %468, %482 : vector<8x1xi32>
    %484 = arith.select %481, %483, %468 : vector<8x1xi1>, vector<8x1xi32>
    %485 = arith.subf %470, %480 : vector<8x1xf32>
    %486 = arith.select %481, %485, %470 : vector<8x1xi1>, vector<8x1xf32>
    %c3_i32 = arith.constant 3 : i32
    %487 = vector.broadcast %c3_i32 : i32 to vector<8x256xi32>
    %488 = arith.shrsi %36, %487 : vector<8x256xi32>
    %c3_i32_74 = arith.constant 3 : i32
    %489 = vector.broadcast %c3_i32_74 : i32 to vector<8x1xi32>
    %490 = arith.shrsi %484, %489 : vector<8x1xi32>
    %491 = vector.broadcast %490 : vector<8x1xi32> to vector<8x256xi32>
    %492 = arith.cmpi eq, %488, %491 : vector<8x256xi32>
    %493 = arith.extui %492 : vector<8x256xi1> to vector<8x256xi32>
    %494 = arith.sitofp %493 : vector<8x256xi32> to vector<8x256xf32>
    %cst_75 = arith.constant dense<0.000000e+00> : vector<8xf32>
    %495 = vector.multi_reduction <add>, %494, %cst_75 [1] : vector<8x256xf32> to vector<8xf32>
    %496 = vector.shape_cast %495 : vector<8xf32> to vector<8x1xf32>
    %497 = arith.cmpf oge, %486, %496 : vector<8x1xf32>
    %c8_i32_76 = arith.constant 8 : i32
    %498 = vector.broadcast %c8_i32_76 : i32 to vector<8x1xi32>
    %499 = arith.ori %484, %498 : vector<8x1xi32>
    %500 = arith.select %497, %499, %484 : vector<8x1xi1>, vector<8x1xi32>
    %501 = arith.subf %486, %496 : vector<8x1xf32>
    %502 = arith.select %497, %501, %486 : vector<8x1xi1>, vector<8x1xf32>
    %c2_i32 = arith.constant 2 : i32
    %503 = vector.broadcast %c2_i32 : i32 to vector<8x256xi32>
    %504 = arith.shrsi %36, %503 : vector<8x256xi32>
    %c2_i32_77 = arith.constant 2 : i32
    %505 = vector.broadcast %c2_i32_77 : i32 to vector<8x1xi32>
    %506 = arith.shrsi %500, %505 : vector<8x1xi32>
    %507 = vector.broadcast %506 : vector<8x1xi32> to vector<8x256xi32>
    %508 = arith.cmpi eq, %504, %507 : vector<8x256xi32>
    %509 = arith.extui %508 : vector<8x256xi1> to vector<8x256xi32>
    %510 = arith.sitofp %509 : vector<8x256xi32> to vector<8x256xf32>
    %cst_78 = arith.constant dense<0.000000e+00> : vector<8xf32>
    %511 = vector.multi_reduction <add>, %510, %cst_78 [1] : vector<8x256xf32> to vector<8xf32>
    %512 = vector.shape_cast %511 : vector<8xf32> to vector<8x1xf32>
    %513 = arith.cmpf oge, %502, %512 : vector<8x1xf32>
    %c4_i32_79 = arith.constant 4 : i32
    %514 = vector.broadcast %c4_i32_79 : i32 to vector<8x1xi32>
    %515 = arith.ori %500, %514 : vector<8x1xi32>
    %516 = arith.select %513, %515, %500 : vector<8x1xi1>, vector<8x1xi32>
    %517 = arith.subf %502, %512 : vector<8x1xf32>
    %518 = arith.select %513, %517, %502 : vector<8x1xi1>, vector<8x1xf32>
    %c1_i32 = arith.constant 1 : i32
    %519 = vector.broadcast %c1_i32 : i32 to vector<8x256xi32>
    %520 = arith.shrsi %36, %519 : vector<8x256xi32>
    %c1_i32_80 = arith.constant 1 : i32
    %521 = vector.broadcast %c1_i32_80 : i32 to vector<8x1xi32>
    %522 = arith.shrsi %516, %521 : vector<8x1xi32>
    %523 = vector.broadcast %522 : vector<8x1xi32> to vector<8x256xi32>
    %524 = arith.cmpi eq, %520, %523 : vector<8x256xi32>
    %525 = arith.extui %524 : vector<8x256xi1> to vector<8x256xi32>
    %526 = arith.sitofp %525 : vector<8x256xi32> to vector<8x256xf32>
    %cst_81 = arith.constant dense<0.000000e+00> : vector<8xf32>
    %527 = vector.multi_reduction <add>, %526, %cst_81 [1] : vector<8x256xf32> to vector<8xf32>
    %528 = vector.shape_cast %527 : vector<8xf32> to vector<8x1xf32>
    %529 = arith.cmpf oge, %518, %528 : vector<8x1xf32>
    %c2_i32_82 = arith.constant 2 : i32
    %530 = vector.broadcast %c2_i32_82 : i32 to vector<8x1xi32>
    %531 = arith.ori %516, %530 : vector<8x1xi32>
    %532 = arith.select %529, %531, %516 : vector<8x1xi1>, vector<8x1xi32>
    %533 = arith.subf %518, %528 : vector<8x1xf32>
    %534 = arith.select %529, %533, %518 : vector<8x1xi1>, vector<8x1xf32>
    %c0_i32_83 = arith.constant 0 : i32
    %535 = vector.broadcast %c0_i32_83 : i32 to vector<8x256xi32>
    %536 = arith.shrsi %36, %535 : vector<8x256xi32>
    %c0_i32_84 = arith.constant 0 : i32
    %537 = vector.broadcast %c0_i32_84 : i32 to vector<8x1xi32>
    %538 = arith.shrsi %532, %537 : vector<8x1xi32>
    %539 = vector.broadcast %538 : vector<8x1xi32> to vector<8x256xi32>
    %540 = arith.cmpi eq, %536, %539 : vector<8x256xi32>
    %541 = arith.extui %540 : vector<8x256xi1> to vector<8x256xi32>
    %542 = arith.sitofp %541 : vector<8x256xi32> to vector<8x256xf32>
    %cst_85 = arith.constant dense<0.000000e+00> : vector<8xf32>
    %543 = vector.multi_reduction <add>, %542, %cst_85 [1] : vector<8x256xf32> to vector<8xf32>
    %544 = vector.shape_cast %543 : vector<8xf32> to vector<8x1xf32>
    %545 = arith.cmpf oge, %534, %544 : vector<8x1xf32>
    %c1_i32_86 = arith.constant 1 : i32
    %546 = vector.broadcast %c1_i32_86 : i32 to vector<8x1xi32>
    %547 = arith.ori %532, %546 : vector<8x1xi32>
    %548 = arith.select %545, %547, %532 : vector<8x1xi1>, vector<8x1xi32>
    %c0_i32_87 = arith.constant 0 : i32
    %549 = vector.broadcast %c0_i32_87 : i32 to vector<8x1xi32>
    %550 = arith.cmpi slt, %548, %549 : vector<8x1xi32>
    %c-2147483648_i32_88 = arith.constant -2147483648 : i32
    %551 = vector.broadcast %c-2147483648_i32_88 : i32 to vector<8x1xi32>
    %552 = arith.xori %548, %551 : vector<8x1xi32>
    %c-1_i32_89 = arith.constant -1 : i32
    %553 = vector.broadcast %c-1_i32_89 : i32 to vector<8x1xi32>
    %554 = arith.xori %548, %553 : vector<8x1xi32>
    %555 = arith.select %550, %552, %554 : vector<8x1xi1>, vector<8x1xi32>
    %556 = tpu.bitcast %555 : vector<8x1xi32> -> vector<8x1xf32>
    %cst_90 = arith.constant 0.000000e+00 : f32
    %557 = vector.broadcast %cst_90 : f32 to vector<8x1xf32>
    %558 = arith.select %26, %556, %557 : vector<8x1xi1>, vector<8x1xf32>
    %559 = arith.mulf %22, %18 : vector<8x256xf32>
    %560 = tpu.bitcast %559 : vector<8x256xf32> -> vector<8x256xi32>
    %c0_i32_91 = arith.constant 0 : i32
    %561 = vector.broadcast %c0_i32_91 : i32 to vector<8x256xi32>
    %562 = arith.cmpi slt, %560, %561 : vector<8x256xi32>
    %c-1_i32_92 = arith.constant -1 : i32
    %c-2147483648_i32_93 = arith.constant -2147483648 : i32
    %563 = vector.broadcast %c-1_i32_92 : i32 to vector<8x256xi32>
    %564 = vector.broadcast %c-2147483648_i32_93 : i32 to vector<8x256xi32>
    %565 = arith.select %562, %563, %564 : vector<8x256xi1>, vector<8x256xi32>
    %566 = arith.xori %560, %565 : vector<8x256xi32>
    %c0_i32_94 = arith.constant 0 : i32
    %567 = vector.broadcast %c0_i32_94 : i32 to vector<8x1xi32>
    %cst_95 = arith.constant 1.270000e+02 : f32
    %568 = vector.broadcast %cst_95 : f32 to vector<8x1xf32>
    %c31_i32_96 = arith.constant 31 : i32
    %569 = vector.broadcast %c31_i32_96 : i32 to vector<8x256xi32>
    %570 = arith.shrsi %566, %569 : vector<8x256xi32>
    %c31_i32_97 = arith.constant 31 : i32
    %571 = vector.broadcast %c31_i32_97 : i32 to vector<8x1xi32>
    %572 = arith.shrsi %567, %571 : vector<8x1xi32>
    %573 = vector.broadcast %572 : vector<8x1xi32> to vector<8x256xi32>
    %574 = arith.cmpi eq, %570, %573 : vector<8x256xi32>
    %575 = arith.extui %574 : vector<8x256xi1> to vector<8x256xi32>
    %576 = arith.sitofp %575 : vector<8x256xi32> to vector<8x256xf32>
    %cst_98 = arith.constant dense<0.000000e+00> : vector<8xf32>
    %577 = vector.multi_reduction <add>, %576, %cst_98 [1] : vector<8x256xf32> to vector<8xf32>
    %578 = vector.shape_cast %577 : vector<8xf32> to vector<8x1xf32>
    %579 = arith.cmpf oge, %568, %578 : vector<8x1xf32>
    %c-2147483648_i32_99 = arith.constant -2147483648 : i32
    %580 = vector.broadcast %c-2147483648_i32_99 : i32 to vector<8x1xi32>
    %581 = arith.ori %567, %580 : vector<8x1xi32>
    %582 = arith.select %579, %581, %567 : vector<8x1xi1>, vector<8x1xi32>
    %583 = arith.subf %568, %578 : vector<8x1xf32>
    %584 = arith.select %579, %583, %568 : vector<8x1xi1>, vector<8x1xf32>
    %c30_i32_100 = arith.constant 30 : i32
    %585 = vector.broadcast %c30_i32_100 : i32 to vector<8x256xi32>
    %586 = arith.shrsi %566, %585 : vector<8x256xi32>
    %c30_i32_101 = arith.constant 30 : i32
    %587 = vector.broadcast %c30_i32_101 : i32 to vector<8x1xi32>
    %588 = arith.shrsi %582, %587 : vector<8x1xi32>
    %589 = vector.broadcast %588 : vector<8x1xi32> to vector<8x256xi32>
    %590 = arith.cmpi eq, %586, %589 : vector<8x256xi32>
    %591 = arith.extui %590 : vector<8x256xi1> to vector<8x256xi32>
    %592 = arith.sitofp %591 : vector<8x256xi32> to vector<8x256xf32>
    %cst_102 = arith.constant dense<0.000000e+00> : vector<8xf32>
    %593 = vector.multi_reduction <add>, %592, %cst_102 [1] : vector<8x256xf32> to vector<8xf32>
    %594 = vector.shape_cast %593 : vector<8xf32> to vector<8x1xf32>
    %595 = arith.cmpf oge, %584, %594 : vector<8x1xf32>
    %c1073741824_i32_103 = arith.constant 1073741824 : i32
    %596 = vector.broadcast %c1073741824_i32_103 : i32 to vector<8x1xi32>
    %597 = arith.ori %582, %596 : vector<8x1xi32>
    %598 = arith.select %595, %597, %582 : vector<8x1xi1>, vector<8x1xi32>
    %599 = arith.subf %584, %594 : vector<8x1xf32>
    %600 = arith.select %595, %599, %584 : vector<8x1xi1>, vector<8x1xf32>
    %c29_i32_104 = arith.constant 29 : i32
    %601 = vector.broadcast %c29_i32_104 : i32 to vector<8x256xi32>
    %602 = arith.shrsi %566, %601 : vector<8x256xi32>
    %c29_i32_105 = arith.constant 29 : i32
    %603 = vector.broadcast %c29_i32_105 : i32 to vector<8x1xi32>
    %604 = arith.shrsi %598, %603 : vector<8x1xi32>
    %605 = vector.broadcast %604 : vector<8x1xi32> to vector<8x256xi32>
    %606 = arith.cmpi eq, %602, %605 : vector<8x256xi32>
    %607 = arith.extui %606 : vector<8x256xi1> to vector<8x256xi32>
    %608 = arith.sitofp %607 : vector<8x256xi32> to vector<8x256xf32>
    %cst_106 = arith.constant dense<0.000000e+00> : vector<8xf32>
    %609 = vector.multi_reduction <add>, %608, %cst_106 [1] : vector<8x256xf32> to vector<8xf32>
    %610 = vector.shape_cast %609 : vector<8xf32> to vector<8x1xf32>
    %611 = arith.cmpf oge, %600, %610 : vector<8x1xf32>
    %c536870912_i32_107 = arith.constant 536870912 : i32
    %612 = vector.broadcast %c536870912_i32_107 : i32 to vector<8x1xi32>
    %613 = arith.ori %598, %612 : vector<8x1xi32>
    %614 = arith.select %611, %613, %598 : vector<8x1xi1>, vector<8x1xi32>
    %615 = arith.subf %600, %610 : vector<8x1xf32>
    %616 = arith.select %611, %615, %600 : vector<8x1xi1>, vector<8x1xf32>
    %c28_i32_108 = arith.constant 28 : i32
    %617 = vector.broadcast %c28_i32_108 : i32 to vector<8x256xi32>
    %618 = arith.shrsi %566, %617 : vector<8x256xi32>
    %c28_i32_109 = arith.constant 28 : i32
    %619 = vector.broadcast %c28_i32_109 : i32 to vector<8x1xi32>
    %620 = arith.shrsi %614, %619 : vector<8x1xi32>
    %621 = vector.broadcast %620 : vector<8x1xi32> to vector<8x256xi32>
    %622 = arith.cmpi eq, %618, %621 : vector<8x256xi32>
    %623 = arith.extui %622 : vector<8x256xi1> to vector<8x256xi32>
    %624 = arith.sitofp %623 : vector<8x256xi32> to vector<8x256xf32>
    %cst_110 = arith.constant dense<0.000000e+00> : vector<8xf32>
    %625 = vector.multi_reduction <add>, %624, %cst_110 [1] : vector<8x256xf32> to vector<8xf32>
    %626 = vector.shape_cast %625 : vector<8xf32> to vector<8x1xf32>
    %627 = arith.cmpf oge, %616, %626 : vector<8x1xf32>
    %c268435456_i32_111 = arith.constant 268435456 : i32
    %628 = vector.broadcast %c268435456_i32_111 : i32 to vector<8x1xi32>
    %629 = arith.ori %614, %628 : vector<8x1xi32>
    %630 = arith.select %627, %629, %614 : vector<8x1xi1>, vector<8x1xi32>
    %631 = arith.subf %616, %626 : vector<8x1xf32>
    %632 = arith.select %627, %631, %616 : vector<8x1xi1>, vector<8x1xf32>
    %c27_i32_112 = arith.constant 27 : i32
    %633 = vector.broadcast %c27_i32_112 : i32 to vector<8x256xi32>
    %634 = arith.shrsi %566, %633 : vector<8x256xi32>
    %c27_i32_113 = arith.constant 27 : i32
    %635 = vector.broadcast %c27_i32_113 : i32 to vector<8x1xi32>
    %636 = arith.shrsi %630, %635 : vector<8x1xi32>
    %637 = vector.broadcast %636 : vector<8x1xi32> to vector<8x256xi32>
    %638 = arith.cmpi eq, %634, %637 : vector<8x256xi32>
    %639 = arith.extui %638 : vector<8x256xi1> to vector<8x256xi32>
    %640 = arith.sitofp %639 : vector<8x256xi32> to vector<8x256xf32>
    %cst_114 = arith.constant dense<0.000000e+00> : vector<8xf32>
    %641 = vector.multi_reduction <add>, %640, %cst_114 [1] : vector<8x256xf32> to vector<8xf32>
    %642 = vector.shape_cast %641 : vector<8xf32> to vector<8x1xf32>
    %643 = arith.cmpf oge, %632, %642 : vector<8x1xf32>
    %c134217728_i32_115 = arith.constant 134217728 : i32
    %644 = vector.broadcast %c134217728_i32_115 : i32 to vector<8x1xi32>
    %645 = arith.ori %630, %644 : vector<8x1xi32>
    %646 = arith.select %643, %645, %630 : vector<8x1xi1>, vector<8x1xi32>
    %647 = arith.subf %632, %642 : vector<8x1xf32>
    %648 = arith.select %643, %647, %632 : vector<8x1xi1>, vector<8x1xf32>
    %c26_i32_116 = arith.constant 26 : i32
    %649 = vector.broadcast %c26_i32_116 : i32 to vector<8x256xi32>
    %650 = arith.shrsi %566, %649 : vector<8x256xi32>
    %c26_i32_117 = arith.constant 26 : i32
    %651 = vector.broadcast %c26_i32_117 : i32 to vector<8x1xi32>
    %652 = arith.shrsi %646, %651 : vector<8x1xi32>
    %653 = vector.broadcast %652 : vector<8x1xi32> to vector<8x256xi32>
    %654 = arith.cmpi eq, %650, %653 : vector<8x256xi32>
    %655 = arith.extui %654 : vector<8x256xi1> to vector<8x256xi32>
    %656 = arith.sitofp %655 : vector<8x256xi32> to vector<8x256xf32>
    %cst_118 = arith.constant dense<0.000000e+00> : vector<8xf32>
    %657 = vector.multi_reduction <add>, %656, %cst_118 [1] : vector<8x256xf32> to vector<8xf32>
    %658 = vector.shape_cast %657 : vector<8xf32> to vector<8x1xf32>
    %659 = arith.cmpf oge, %648, %658 : vector<8x1xf32>
    %c67108864_i32_119 = arith.constant 67108864 : i32
    %660 = vector.broadcast %c67108864_i32_119 : i32 to vector<8x1xi32>
    %661 = arith.ori %646, %660 : vector<8x1xi32>
    %662 = arith.select %659, %661, %646 : vector<8x1xi1>, vector<8x1xi32>
    %663 = arith.subf %648, %658 : vector<8x1xf32>
    %664 = arith.select %659, %663, %648 : vector<8x1xi1>, vector<8x1xf32>
    %c25_i32_120 = arith.constant 25 : i32
    %665 = vector.broadcast %c25_i32_120 : i32 to vector<8x256xi32>
    %666 = arith.shrsi %566, %665 : vector<8x256xi32>
    %c25_i32_121 = arith.constant 25 : i32
    %667 = vector.broadcast %c25_i32_121 : i32 to vector<8x1xi32>
    %668 = arith.shrsi %662, %667 : vector<8x1xi32>
    %669 = vector.broadcast %668 : vector<8x1xi32> to vector<8x256xi32>
    %670 = arith.cmpi eq, %666, %669 : vector<8x256xi32>
    %671 = arith.extui %670 : vector<8x256xi1> to vector<8x256xi32>
    %672 = arith.sitofp %671 : vector<8x256xi32> to vector<8x256xf32>
    %cst_122 = arith.constant dense<0.000000e+00> : vector<8xf32>
    %673 = vector.multi_reduction <add>, %672, %cst_122 [1] : vector<8x256xf32> to vector<8xf32>
    %674 = vector.shape_cast %673 : vector<8xf32> to vector<8x1xf32>
    %675 = arith.cmpf oge, %664, %674 : vector<8x1xf32>
    %c33554432_i32_123 = arith.constant 33554432 : i32
    %676 = vector.broadcast %c33554432_i32_123 : i32 to vector<8x1xi32>
    %677 = arith.ori %662, %676 : vector<8x1xi32>
    %678 = arith.select %675, %677, %662 : vector<8x1xi1>, vector<8x1xi32>
    %679 = arith.subf %664, %674 : vector<8x1xf32>
    %680 = arith.select %675, %679, %664 : vector<8x1xi1>, vector<8x1xf32>
    %c24_i32_124 = arith.constant 24 : i32
    %681 = vector.broadcast %c24_i32_124 : i32 to vector<8x256xi32>
    %682 = arith.shrsi %566, %681 : vector<8x256xi32>
    %c24_i32_125 = arith.constant 24 : i32
    %683 = vector.broadcast %c24_i32_125 : i32 to vector<8x1xi32>
    %684 = arith.shrsi %678, %683 : vector<8x1xi32>
    %685 = vector.broadcast %684 : vector<8x1xi32> to vector<8x256xi32>
    %686 = arith.cmpi eq, %682, %685 : vector<8x256xi32>
    %687 = arith.extui %686 : vector<8x256xi1> to vector<8x256xi32>
    %688 = arith.sitofp %687 : vector<8x256xi32> to vector<8x256xf32>
    %cst_126 = arith.constant dense<0.000000e+00> : vector<8xf32>
    %689 = vector.multi_reduction <add>, %688, %cst_126 [1] : vector<8x256xf32> to vector<8xf32>
    %690 = vector.shape_cast %689 : vector<8xf32> to vector<8x1xf32>
    %691 = arith.cmpf oge, %680, %690 : vector<8x1xf32>
    %c16777216_i32_127 = arith.constant 16777216 : i32
    %692 = vector.broadcast %c16777216_i32_127 : i32 to vector<8x1xi32>
    %693 = arith.ori %678, %692 : vector<8x1xi32>
    %694 = arith.select %691, %693, %678 : vector<8x1xi1>, vector<8x1xi32>
    %695 = arith.subf %680, %690 : vector<8x1xf32>
    %696 = arith.select %691, %695, %680 : vector<8x1xi1>, vector<8x1xf32>
    %c23_i32_128 = arith.constant 23 : i32
    %697 = vector.broadcast %c23_i32_128 : i32 to vector<8x256xi32>
    %698 = arith.shrsi %566, %697 : vector<8x256xi32>
    %c23_i32_129 = arith.constant 23 : i32
    %699 = vector.broadcast %c23_i32_129 : i32 to vector<8x1xi32>
    %700 = arith.shrsi %694, %699 : vector<8x1xi32>
    %701 = vector.broadcast %700 : vector<8x1xi32> to vector<8x256xi32>
    %702 = arith.cmpi eq, %698, %701 : vector<8x256xi32>
    %703 = arith.extui %702 : vector<8x256xi1> to vector<8x256xi32>
    %704 = arith.sitofp %703 : vector<8x256xi32> to vector<8x256xf32>
    %cst_130 = arith.constant dense<0.000000e+00> : vector<8xf32>
    %705 = vector.multi_reduction <add>, %704, %cst_130 [1] : vector<8x256xf32> to vector<8xf32>
    %706 = vector.shape_cast %705 : vector<8xf32> to vector<8x1xf32>
    %707 = arith.cmpf oge, %696, %706 : vector<8x1xf32>
    %c8388608_i32_131 = arith.constant 8388608 : i32
    %708 = vector.broadcast %c8388608_i32_131 : i32 to vector<8x1xi32>
    %709 = arith.ori %694, %708 : vector<8x1xi32>
    %710 = arith.select %707, %709, %694 : vector<8x1xi1>, vector<8x1xi32>
    %711 = arith.subf %696, %706 : vector<8x1xf32>
    %712 = arith.select %707, %711, %696 : vector<8x1xi1>, vector<8x1xf32>
    %c22_i32_132 = arith.constant 22 : i32
    %713 = vector.broadcast %c22_i32_132 : i32 to vector<8x256xi32>
    %714 = arith.shrsi %566, %713 : vector<8x256xi32>
    %c22_i32_133 = arith.constant 22 : i32
    %715 = vector.broadcast %c22_i32_133 : i32 to vector<8x1xi32>
    %716 = arith.shrsi %710, %715 : vector<8x1xi32>
    %717 = vector.broadcast %716 : vector<8x1xi32> to vector<8x256xi32>
    %718 = arith.cmpi eq, %714, %717 : vector<8x256xi32>
    %719 = arith.extui %718 : vector<8x256xi1> to vector<8x256xi32>
    %720 = arith.sitofp %719 : vector<8x256xi32> to vector<8x256xf32>
    %cst_134 = arith.constant dense<0.000000e+00> : vector<8xf32>
    %721 = vector.multi_reduction <add>, %720, %cst_134 [1] : vector<8x256xf32> to vector<8xf32>
    %722 = vector.shape_cast %721 : vector<8xf32> to vector<8x1xf32>
    %723 = arith.cmpf oge, %712, %722 : vector<8x1xf32>
    %c4194304_i32_135 = arith.constant 4194304 : i32
    %724 = vector.broadcast %c4194304_i32_135 : i32 to vector<8x1xi32>
    %725 = arith.ori %710, %724 : vector<8x1xi32>
    %726 = arith.select %723, %725, %710 : vector<8x1xi1>, vector<8x1xi32>
    %727 = arith.subf %712, %722 : vector<8x1xf32>
    %728 = arith.select %723, %727, %712 : vector<8x1xi1>, vector<8x1xf32>
    %c21_i32_136 = arith.constant 21 : i32
    %729 = vector.broadcast %c21_i32_136 : i32 to vector<8x256xi32>
    %730 = arith.shrsi %566, %729 : vector<8x256xi32>
    %c21_i32_137 = arith.constant 21 : i32
    %731 = vector.broadcast %c21_i32_137 : i32 to vector<8x1xi32>
    %732 = arith.shrsi %726, %731 : vector<8x1xi32>
    %733 = vector.broadcast %732 : vector<8x1xi32> to vector<8x256xi32>
    %734 = arith.cmpi eq, %730, %733 : vector<8x256xi32>
    %735 = arith.extui %734 : vector<8x256xi1> to vector<8x256xi32>
    %736 = arith.sitofp %735 : vector<8x256xi32> to vector<8x256xf32>
    %cst_138 = arith.constant dense<0.000000e+00> : vector<8xf32>
    %737 = vector.multi_reduction <add>, %736, %cst_138 [1] : vector<8x256xf32> to vector<8xf32>
    %738 = vector.shape_cast %737 : vector<8xf32> to vector<8x1xf32>
    %739 = arith.cmpf oge, %728, %738 : vector<8x1xf32>
    %c2097152_i32_139 = arith.constant 2097152 : i32
    %740 = vector.broadcast %c2097152_i32_139 : i32 to vector<8x1xi32>
    %741 = arith.ori %726, %740 : vector<8x1xi32>
    %742 = arith.select %739, %741, %726 : vector<8x1xi1>, vector<8x1xi32>
    %743 = arith.subf %728, %738 : vector<8x1xf32>
    %744 = arith.select %739, %743, %728 : vector<8x1xi1>, vector<8x1xf32>
    %c20_i32_140 = arith.constant 20 : i32
    %745 = vector.broadcast %c20_i32_140 : i32 to vector<8x256xi32>
    %746 = arith.shrsi %566, %745 : vector<8x256xi32>
    %c20_i32_141 = arith.constant 20 : i32
    %747 = vector.broadcast %c20_i32_141 : i32 to vector<8x1xi32>
    %748 = arith.shrsi %742, %747 : vector<8x1xi32>
    %749 = vector.broadcast %748 : vector<8x1xi32> to vector<8x256xi32>
    %750 = arith.cmpi eq, %746, %749 : vector<8x256xi32>
    %751 = arith.extui %750 : vector<8x256xi1> to vector<8x256xi32>
    %752 = arith.sitofp %751 : vector<8x256xi32> to vector<8x256xf32>
    %cst_142 = arith.constant dense<0.000000e+00> : vector<8xf32>
    %753 = vector.multi_reduction <add>, %752, %cst_142 [1] : vector<8x256xf32> to vector<8xf32>
    %754 = vector.shape_cast %753 : vector<8xf32> to vector<8x1xf32>
    %755 = arith.cmpf oge, %744, %754 : vector<8x1xf32>
    %c1048576_i32_143 = arith.constant 1048576 : i32
    %756 = vector.broadcast %c1048576_i32_143 : i32 to vector<8x1xi32>
    %757 = arith.ori %742, %756 : vector<8x1xi32>
    %758 = arith.select %755, %757, %742 : vector<8x1xi1>, vector<8x1xi32>
    %759 = arith.subf %744, %754 : vector<8x1xf32>
    %760 = arith.select %755, %759, %744 : vector<8x1xi1>, vector<8x1xf32>
    %c19_i32_144 = arith.constant 19 : i32
    %761 = vector.broadcast %c19_i32_144 : i32 to vector<8x256xi32>
    %762 = arith.shrsi %566, %761 : vector<8x256xi32>
    %c19_i32_145 = arith.constant 19 : i32
    %763 = vector.broadcast %c19_i32_145 : i32 to vector<8x1xi32>
    %764 = arith.shrsi %758, %763 : vector<8x1xi32>
    %765 = vector.broadcast %764 : vector<8x1xi32> to vector<8x256xi32>
    %766 = arith.cmpi eq, %762, %765 : vector<8x256xi32>
    %767 = arith.extui %766 : vector<8x256xi1> to vector<8x256xi32>
    %768 = arith.sitofp %767 : vector<8x256xi32> to vector<8x256xf32>
    %cst_146 = arith.constant dense<0.000000e+00> : vector<8xf32>
    %769 = vector.multi_reduction <add>, %768, %cst_146 [1] : vector<8x256xf32> to vector<8xf32>
    %770 = vector.shape_cast %769 : vector<8xf32> to vector<8x1xf32>
    %771 = arith.cmpf oge, %760, %770 : vector<8x1xf32>
    %c524288_i32_147 = arith.constant 524288 : i32
    %772 = vector.broadcast %c524288_i32_147 : i32 to vector<8x1xi32>
    %773 = arith.ori %758, %772 : vector<8x1xi32>
    %774 = arith.select %771, %773, %758 : vector<8x1xi1>, vector<8x1xi32>
    %775 = arith.subf %760, %770 : vector<8x1xf32>
    %776 = arith.select %771, %775, %760 : vector<8x1xi1>, vector<8x1xf32>
    %c18_i32_148 = arith.constant 18 : i32
    %777 = vector.broadcast %c18_i32_148 : i32 to vector<8x256xi32>
    %778 = arith.shrsi %566, %777 : vector<8x256xi32>
    %c18_i32_149 = arith.constant 18 : i32
    %779 = vector.broadcast %c18_i32_149 : i32 to vector<8x1xi32>
    %780 = arith.shrsi %774, %779 : vector<8x1xi32>
    %781 = vector.broadcast %780 : vector<8x1xi32> to vector<8x256xi32>
    %782 = arith.cmpi eq, %778, %781 : vector<8x256xi32>
    %783 = arith.extui %782 : vector<8x256xi1> to vector<8x256xi32>
    %784 = arith.sitofp %783 : vector<8x256xi32> to vector<8x256xf32>
    %cst_150 = arith.constant dense<0.000000e+00> : vector<8xf32>
    %785 = vector.multi_reduction <add>, %784, %cst_150 [1] : vector<8x256xf32> to vector<8xf32>
    %786 = vector.shape_cast %785 : vector<8xf32> to vector<8x1xf32>
    %787 = arith.cmpf oge, %776, %786 : vector<8x1xf32>
    %c262144_i32_151 = arith.constant 262144 : i32
    %788 = vector.broadcast %c262144_i32_151 : i32 to vector<8x1xi32>
    %789 = arith.ori %774, %788 : vector<8x1xi32>
    %790 = arith.select %787, %789, %774 : vector<8x1xi1>, vector<8x1xi32>
    %791 = arith.subf %776, %786 : vector<8x1xf32>
    %792 = arith.select %787, %791, %776 : vector<8x1xi1>, vector<8x1xf32>
    %c17_i32_152 = arith.constant 17 : i32
    %793 = vector.broadcast %c17_i32_152 : i32 to vector<8x256xi32>
    %794 = arith.shrsi %566, %793 : vector<8x256xi32>
    %c17_i32_153 = arith.constant 17 : i32
    %795 = vector.broadcast %c17_i32_153 : i32 to vector<8x1xi32>
    %796 = arith.shrsi %790, %795 : vector<8x1xi32>
    %797 = vector.broadcast %796 : vector<8x1xi32> to vector<8x256xi32>
    %798 = arith.cmpi eq, %794, %797 : vector<8x256xi32>
    %799 = arith.extui %798 : vector<8x256xi1> to vector<8x256xi32>
    %800 = arith.sitofp %799 : vector<8x256xi32> to vector<8x256xf32>
    %cst_154 = arith.constant dense<0.000000e+00> : vector<8xf32>
    %801 = vector.multi_reduction <add>, %800, %cst_154 [1] : vector<8x256xf32> to vector<8xf32>
    %802 = vector.shape_cast %801 : vector<8xf32> to vector<8x1xf32>
    %803 = arith.cmpf oge, %792, %802 : vector<8x1xf32>
    %c131072_i32_155 = arith.constant 131072 : i32
    %804 = vector.broadcast %c131072_i32_155 : i32 to vector<8x1xi32>
    %805 = arith.ori %790, %804 : vector<8x1xi32>
    %806 = arith.select %803, %805, %790 : vector<8x1xi1>, vector<8x1xi32>
    %807 = arith.subf %792, %802 : vector<8x1xf32>
    %808 = arith.select %803, %807, %792 : vector<8x1xi1>, vector<8x1xf32>
    %c16_i32_156 = arith.constant 16 : i32
    %809 = vector.broadcast %c16_i32_156 : i32 to vector<8x256xi32>
    %810 = arith.shrsi %566, %809 : vector<8x256xi32>
    %c16_i32_157 = arith.constant 16 : i32
    %811 = vector.broadcast %c16_i32_157 : i32 to vector<8x1xi32>
    %812 = arith.shrsi %806, %811 : vector<8x1xi32>
    %813 = vector.broadcast %812 : vector<8x1xi32> to vector<8x256xi32>
    %814 = arith.cmpi eq, %810, %813 : vector<8x256xi32>
    %815 = arith.extui %814 : vector<8x256xi1> to vector<8x256xi32>
    %816 = arith.sitofp %815 : vector<8x256xi32> to vector<8x256xf32>
    %cst_158 = arith.constant dense<0.000000e+00> : vector<8xf32>
    %817 = vector.multi_reduction <add>, %816, %cst_158 [1] : vector<8x256xf32> to vector<8xf32>
    %818 = vector.shape_cast %817 : vector<8xf32> to vector<8x1xf32>
    %819 = arith.cmpf oge, %808, %818 : vector<8x1xf32>
    %c65536_i32_159 = arith.constant 65536 : i32
    %820 = vector.broadcast %c65536_i32_159 : i32 to vector<8x1xi32>
    %821 = arith.ori %806, %820 : vector<8x1xi32>
    %822 = arith.select %819, %821, %806 : vector<8x1xi1>, vector<8x1xi32>
    %823 = arith.subf %808, %818 : vector<8x1xf32>
    %824 = arith.select %819, %823, %808 : vector<8x1xi1>, vector<8x1xf32>
    %c15_i32_160 = arith.constant 15 : i32
    %825 = vector.broadcast %c15_i32_160 : i32 to vector<8x256xi32>
    %826 = arith.shrsi %566, %825 : vector<8x256xi32>
    %c15_i32_161 = arith.constant 15 : i32
    %827 = vector.broadcast %c15_i32_161 : i32 to vector<8x1xi32>
    %828 = arith.shrsi %822, %827 : vector<8x1xi32>
    %829 = vector.broadcast %828 : vector<8x1xi32> to vector<8x256xi32>
    %830 = arith.cmpi eq, %826, %829 : vector<8x256xi32>
    %831 = arith.extui %830 : vector<8x256xi1> to vector<8x256xi32>
    %832 = arith.sitofp %831 : vector<8x256xi32> to vector<8x256xf32>
    %cst_162 = arith.constant dense<0.000000e+00> : vector<8xf32>
    %833 = vector.multi_reduction <add>, %832, %cst_162 [1] : vector<8x256xf32> to vector<8xf32>
    %834 = vector.shape_cast %833 : vector<8xf32> to vector<8x1xf32>
    %835 = arith.cmpf oge, %824, %834 : vector<8x1xf32>
    %c32768_i32_163 = arith.constant 32768 : i32
    %836 = vector.broadcast %c32768_i32_163 : i32 to vector<8x1xi32>
    %837 = arith.ori %822, %836 : vector<8x1xi32>
    %838 = arith.select %835, %837, %822 : vector<8x1xi1>, vector<8x1xi32>
    %839 = arith.subf %824, %834 : vector<8x1xf32>
    %840 = arith.select %835, %839, %824 : vector<8x1xi1>, vector<8x1xf32>
    %c14_i32_164 = arith.constant 14 : i32
    %841 = vector.broadcast %c14_i32_164 : i32 to vector<8x256xi32>
    %842 = arith.shrsi %566, %841 : vector<8x256xi32>
    %c14_i32_165 = arith.constant 14 : i32
    %843 = vector.broadcast %c14_i32_165 : i32 to vector<8x1xi32>
    %844 = arith.shrsi %838, %843 : vector<8x1xi32>
    %845 = vector.broadcast %844 : vector<8x1xi32> to vector<8x256xi32>
    %846 = arith.cmpi eq, %842, %845 : vector<8x256xi32>
    %847 = arith.extui %846 : vector<8x256xi1> to vector<8x256xi32>
    %848 = arith.sitofp %847 : vector<8x256xi32> to vector<8x256xf32>
    %cst_166 = arith.constant dense<0.000000e+00> : vector<8xf32>
    %849 = vector.multi_reduction <add>, %848, %cst_166 [1] : vector<8x256xf32> to vector<8xf32>
    %850 = vector.shape_cast %849 : vector<8xf32> to vector<8x1xf32>
    %851 = arith.cmpf oge, %840, %850 : vector<8x1xf32>
    %c16384_i32_167 = arith.constant 16384 : i32
    %852 = vector.broadcast %c16384_i32_167 : i32 to vector<8x1xi32>
    %853 = arith.ori %838, %852 : vector<8x1xi32>
    %854 = arith.select %851, %853, %838 : vector<8x1xi1>, vector<8x1xi32>
    %855 = arith.subf %840, %850 : vector<8x1xf32>
    %856 = arith.select %851, %855, %840 : vector<8x1xi1>, vector<8x1xf32>
    %c13_i32_168 = arith.constant 13 : i32
    %857 = vector.broadcast %c13_i32_168 : i32 to vector<8x256xi32>
    %858 = arith.shrsi %566, %857 : vector<8x256xi32>
    %c13_i32_169 = arith.constant 13 : i32
    %859 = vector.broadcast %c13_i32_169 : i32 to vector<8x1xi32>
    %860 = arith.shrsi %854, %859 : vector<8x1xi32>
    %861 = vector.broadcast %860 : vector<8x1xi32> to vector<8x256xi32>
    %862 = arith.cmpi eq, %858, %861 : vector<8x256xi32>
    %863 = arith.extui %862 : vector<8x256xi1> to vector<8x256xi32>
    %864 = arith.sitofp %863 : vector<8x256xi32> to vector<8x256xf32>
    %cst_170 = arith.constant dense<0.000000e+00> : vector<8xf32>
    %865 = vector.multi_reduction <add>, %864, %cst_170 [1] : vector<8x256xf32> to vector<8xf32>
    %866 = vector.shape_cast %865 : vector<8xf32> to vector<8x1xf32>
    %867 = arith.cmpf oge, %856, %866 : vector<8x1xf32>
    %c8192_i32_171 = arith.constant 8192 : i32
    %868 = vector.broadcast %c8192_i32_171 : i32 to vector<8x1xi32>
    %869 = arith.ori %854, %868 : vector<8x1xi32>
    %870 = arith.select %867, %869, %854 : vector<8x1xi1>, vector<8x1xi32>
    %871 = arith.subf %856, %866 : vector<8x1xf32>
    %872 = arith.select %867, %871, %856 : vector<8x1xi1>, vector<8x1xf32>
    %c12_i32_172 = arith.constant 12 : i32
    %873 = vector.broadcast %c12_i32_172 : i32 to vector<8x256xi32>
    %874 = arith.shrsi %566, %873 : vector<8x256xi32>
    %c12_i32_173 = arith.constant 12 : i32
    %875 = vector.broadcast %c12_i32_173 : i32 to vector<8x1xi32>
    %876 = arith.shrsi %870, %875 : vector<8x1xi32>
    %877 = vector.broadcast %876 : vector<8x1xi32> to vector<8x256xi32>
    %878 = arith.cmpi eq, %874, %877 : vector<8x256xi32>
    %879 = arith.extui %878 : vector<8x256xi1> to vector<8x256xi32>
    %880 = arith.sitofp %879 : vector<8x256xi32> to vector<8x256xf32>
    %cst_174 = arith.constant dense<0.000000e+00> : vector<8xf32>
    %881 = vector.multi_reduction <add>, %880, %cst_174 [1] : vector<8x256xf32> to vector<8xf32>
    %882 = vector.shape_cast %881 : vector<8xf32> to vector<8x1xf32>
    %883 = arith.cmpf oge, %872, %882 : vector<8x1xf32>
    %c4096_i32_175 = arith.constant 4096 : i32
    %884 = vector.broadcast %c4096_i32_175 : i32 to vector<8x1xi32>
    %885 = arith.ori %870, %884 : vector<8x1xi32>
    %886 = arith.select %883, %885, %870 : vector<8x1xi1>, vector<8x1xi32>
    %887 = arith.subf %872, %882 : vector<8x1xf32>
    %888 = arith.select %883, %887, %872 : vector<8x1xi1>, vector<8x1xf32>
    %c11_i32_176 = arith.constant 11 : i32
    %889 = vector.broadcast %c11_i32_176 : i32 to vector<8x256xi32>
    %890 = arith.shrsi %566, %889 : vector<8x256xi32>
    %c11_i32_177 = arith.constant 11 : i32
    %891 = vector.broadcast %c11_i32_177 : i32 to vector<8x1xi32>
    %892 = arith.shrsi %886, %891 : vector<8x1xi32>
    %893 = vector.broadcast %892 : vector<8x1xi32> to vector<8x256xi32>
    %894 = arith.cmpi eq, %890, %893 : vector<8x256xi32>
    %895 = arith.extui %894 : vector<8x256xi1> to vector<8x256xi32>
    %896 = arith.sitofp %895 : vector<8x256xi32> to vector<8x256xf32>
    %cst_178 = arith.constant dense<0.000000e+00> : vector<8xf32>
    %897 = vector.multi_reduction <add>, %896, %cst_178 [1] : vector<8x256xf32> to vector<8xf32>
    %898 = vector.shape_cast %897 : vector<8xf32> to vector<8x1xf32>
    %899 = arith.cmpf oge, %888, %898 : vector<8x1xf32>
    %c2048_i32_179 = arith.constant 2048 : i32
    %900 = vector.broadcast %c2048_i32_179 : i32 to vector<8x1xi32>
    %901 = arith.ori %886, %900 : vector<8x1xi32>
    %902 = arith.select %899, %901, %886 : vector<8x1xi1>, vector<8x1xi32>
    %903 = arith.subf %888, %898 : vector<8x1xf32>
    %904 = arith.select %899, %903, %888 : vector<8x1xi1>, vector<8x1xf32>
    %c10_i32_180 = arith.constant 10 : i32
    %905 = vector.broadcast %c10_i32_180 : i32 to vector<8x256xi32>
    %906 = arith.shrsi %566, %905 : vector<8x256xi32>
    %c10_i32_181 = arith.constant 10 : i32
    %907 = vector.broadcast %c10_i32_181 : i32 to vector<8x1xi32>
    %908 = arith.shrsi %902, %907 : vector<8x1xi32>
    %909 = vector.broadcast %908 : vector<8x1xi32> to vector<8x256xi32>
    %910 = arith.cmpi eq, %906, %909 : vector<8x256xi32>
    %911 = arith.extui %910 : vector<8x256xi1> to vector<8x256xi32>
    %912 = arith.sitofp %911 : vector<8x256xi32> to vector<8x256xf32>
    %cst_182 = arith.constant dense<0.000000e+00> : vector<8xf32>
    %913 = vector.multi_reduction <add>, %912, %cst_182 [1] : vector<8x256xf32> to vector<8xf32>
    %914 = vector.shape_cast %913 : vector<8xf32> to vector<8x1xf32>
    %915 = arith.cmpf oge, %904, %914 : vector<8x1xf32>
    %c1024_i32_183 = arith.constant 1024 : i32
    %916 = vector.broadcast %c1024_i32_183 : i32 to vector<8x1xi32>
    %917 = arith.ori %902, %916 : vector<8x1xi32>
    %918 = arith.select %915, %917, %902 : vector<8x1xi1>, vector<8x1xi32>
    %919 = arith.subf %904, %914 : vector<8x1xf32>
    %920 = arith.select %915, %919, %904 : vector<8x1xi1>, vector<8x1xf32>
    %c9_i32_184 = arith.constant 9 : i32
    %921 = vector.broadcast %c9_i32_184 : i32 to vector<8x256xi32>
    %922 = arith.shrsi %566, %921 : vector<8x256xi32>
    %c9_i32_185 = arith.constant 9 : i32
    %923 = vector.broadcast %c9_i32_185 : i32 to vector<8x1xi32>
    %924 = arith.shrsi %918, %923 : vector<8x1xi32>
    %925 = vector.broadcast %924 : vector<8x1xi32> to vector<8x256xi32>
    %926 = arith.cmpi eq, %922, %925 : vector<8x256xi32>
    %927 = arith.extui %926 : vector<8x256xi1> to vector<8x256xi32>
    %928 = arith.sitofp %927 : vector<8x256xi32> to vector<8x256xf32>
    %cst_186 = arith.constant dense<0.000000e+00> : vector<8xf32>
    %929 = vector.multi_reduction <add>, %928, %cst_186 [1] : vector<8x256xf32> to vector<8xf32>
    %930 = vector.shape_cast %929 : vector<8xf32> to vector<8x1xf32>
    %931 = arith.cmpf oge, %920, %930 : vector<8x1xf32>
    %c512_i32_187 = arith.constant 512 : i32
    %932 = vector.broadcast %c512_i32_187 : i32 to vector<8x1xi32>
    %933 = arith.ori %918, %932 : vector<8x1xi32>
    %934 = arith.select %931, %933, %918 : vector<8x1xi1>, vector<8x1xi32>
    %935 = arith.subf %920, %930 : vector<8x1xf32>
    %936 = arith.select %931, %935, %920 : vector<8x1xi1>, vector<8x1xf32>
    %c8_i32_188 = arith.constant 8 : i32
    %937 = vector.broadcast %c8_i32_188 : i32 to vector<8x256xi32>
    %938 = arith.shrsi %566, %937 : vector<8x256xi32>
    %c8_i32_189 = arith.constant 8 : i32
    %939 = vector.broadcast %c8_i32_189 : i32 to vector<8x1xi32>
    %940 = arith.shrsi %934, %939 : vector<8x1xi32>
    %941 = vector.broadcast %940 : vector<8x1xi32> to vector<8x256xi32>
    %942 = arith.cmpi eq, %938, %941 : vector<8x256xi32>
    %943 = arith.extui %942 : vector<8x256xi1> to vector<8x256xi32>
    %944 = arith.sitofp %943 : vector<8x256xi32> to vector<8x256xf32>
    %cst_190 = arith.constant dense<0.000000e+00> : vector<8xf32>
    %945 = vector.multi_reduction <add>, %944, %cst_190 [1] : vector<8x256xf32> to vector<8xf32>
    %946 = vector.shape_cast %945 : vector<8xf32> to vector<8x1xf32>
    %947 = arith.cmpf oge, %936, %946 : vector<8x1xf32>
    %c256_i32_191 = arith.constant 256 : i32
    %948 = vector.broadcast %c256_i32_191 : i32 to vector<8x1xi32>
    %949 = arith.ori %934, %948 : vector<8x1xi32>
    %950 = arith.select %947, %949, %934 : vector<8x1xi1>, vector<8x1xi32>
    %951 = arith.subf %936, %946 : vector<8x1xf32>
    %952 = arith.select %947, %951, %936 : vector<8x1xi1>, vector<8x1xf32>
    %c7_i32_192 = arith.constant 7 : i32
    %953 = vector.broadcast %c7_i32_192 : i32 to vector<8x256xi32>
    %954 = arith.shrsi %566, %953 : vector<8x256xi32>
    %c7_i32_193 = arith.constant 7 : i32
    %955 = vector.broadcast %c7_i32_193 : i32 to vector<8x1xi32>
    %956 = arith.shrsi %950, %955 : vector<8x1xi32>
    %957 = vector.broadcast %956 : vector<8x1xi32> to vector<8x256xi32>
    %958 = arith.cmpi eq, %954, %957 : vector<8x256xi32>
    %959 = arith.extui %958 : vector<8x256xi1> to vector<8x256xi32>
    %960 = arith.sitofp %959 : vector<8x256xi32> to vector<8x256xf32>
    %cst_194 = arith.constant dense<0.000000e+00> : vector<8xf32>
    %961 = vector.multi_reduction <add>, %960, %cst_194 [1] : vector<8x256xf32> to vector<8xf32>
    %962 = vector.shape_cast %961 : vector<8xf32> to vector<8x1xf32>
    %963 = arith.cmpf oge, %952, %962 : vector<8x1xf32>
    %c128_i32_195 = arith.constant 128 : i32
    %964 = vector.broadcast %c128_i32_195 : i32 to vector<8x1xi32>
    %965 = arith.ori %950, %964 : vector<8x1xi32>
    %966 = arith.select %963, %965, %950 : vector<8x1xi1>, vector<8x1xi32>
    %967 = arith.subf %952, %962 : vector<8x1xf32>
    %968 = arith.select %963, %967, %952 : vector<8x1xi1>, vector<8x1xf32>
    %c6_i32_196 = arith.constant 6 : i32
    %969 = vector.broadcast %c6_i32_196 : i32 to vector<8x256xi32>
    %970 = arith.shrsi %566, %969 : vector<8x256xi32>
    %c6_i32_197 = arith.constant 6 : i32
    %971 = vector.broadcast %c6_i32_197 : i32 to vector<8x1xi32>
    %972 = arith.shrsi %966, %971 : vector<8x1xi32>
    %973 = vector.broadcast %972 : vector<8x1xi32> to vector<8x256xi32>
    %974 = arith.cmpi eq, %970, %973 : vector<8x256xi32>
    %975 = arith.extui %974 : vector<8x256xi1> to vector<8x256xi32>
    %976 = arith.sitofp %975 : vector<8x256xi32> to vector<8x256xf32>
    %cst_198 = arith.constant dense<0.000000e+00> : vector<8xf32>
    %977 = vector.multi_reduction <add>, %976, %cst_198 [1] : vector<8x256xf32> to vector<8xf32>
    %978 = vector.shape_cast %977 : vector<8xf32> to vector<8x1xf32>
    %979 = arith.cmpf oge, %968, %978 : vector<8x1xf32>
    %c64_i32_199 = arith.constant 64 : i32
    %980 = vector.broadcast %c64_i32_199 : i32 to vector<8x1xi32>
    %981 = arith.ori %966, %980 : vector<8x1xi32>
    %982 = arith.select %979, %981, %966 : vector<8x1xi1>, vector<8x1xi32>
    %983 = arith.subf %968, %978 : vector<8x1xf32>
    %984 = arith.select %979, %983, %968 : vector<8x1xi1>, vector<8x1xf32>
    %c5_i32_200 = arith.constant 5 : i32
    %985 = vector.broadcast %c5_i32_200 : i32 to vector<8x256xi32>
    %986 = arith.shrsi %566, %985 : vector<8x256xi32>
    %c5_i32_201 = arith.constant 5 : i32
    %987 = vector.broadcast %c5_i32_201 : i32 to vector<8x1xi32>
    %988 = arith.shrsi %982, %987 : vector<8x1xi32>
    %989 = vector.broadcast %988 : vector<8x1xi32> to vector<8x256xi32>
    %990 = arith.cmpi eq, %986, %989 : vector<8x256xi32>
    %991 = arith.extui %990 : vector<8x256xi1> to vector<8x256xi32>
    %992 = arith.sitofp %991 : vector<8x256xi32> to vector<8x256xf32>
    %cst_202 = arith.constant dense<0.000000e+00> : vector<8xf32>
    %993 = vector.multi_reduction <add>, %992, %cst_202 [1] : vector<8x256xf32> to vector<8xf32>
    %994 = vector.shape_cast %993 : vector<8xf32> to vector<8x1xf32>
    %995 = arith.cmpf oge, %984, %994 : vector<8x1xf32>
    %c32_i32_203 = arith.constant 32 : i32
    %996 = vector.broadcast %c32_i32_203 : i32 to vector<8x1xi32>
    %997 = arith.ori %982, %996 : vector<8x1xi32>
    %998 = arith.select %995, %997, %982 : vector<8x1xi1>, vector<8x1xi32>
    %999 = arith.subf %984, %994 : vector<8x1xf32>
    %1000 = arith.select %995, %999, %984 : vector<8x1xi1>, vector<8x1xf32>
    %c4_i32_204 = arith.constant 4 : i32
    %1001 = vector.broadcast %c4_i32_204 : i32 to vector<8x256xi32>
    %1002 = arith.shrsi %566, %1001 : vector<8x256xi32>
    %c4_i32_205 = arith.constant 4 : i32
    %1003 = vector.broadcast %c4_i32_205 : i32 to vector<8x1xi32>
    %1004 = arith.shrsi %998, %1003 : vector<8x1xi32>
    %1005 = vector.broadcast %1004 : vector<8x1xi32> to vector<8x256xi32>
    %1006 = arith.cmpi eq, %1002, %1005 : vector<8x256xi32>
    %1007 = arith.extui %1006 : vector<8x256xi1> to vector<8x256xi32>
    %1008 = arith.sitofp %1007 : vector<8x256xi32> to vector<8x256xf32>
    %cst_206 = arith.constant dense<0.000000e+00> : vector<8xf32>
    %1009 = vector.multi_reduction <add>, %1008, %cst_206 [1] : vector<8x256xf32> to vector<8xf32>
    %1010 = vector.shape_cast %1009 : vector<8xf32> to vector<8x1xf32>
    %1011 = arith.cmpf oge, %1000, %1010 : vector<8x1xf32>
    %c16_i32_207 = arith.constant 16 : i32
    %1012 = vector.broadcast %c16_i32_207 : i32 to vector<8x1xi32>
    %1013 = arith.ori %998, %1012 : vector<8x1xi32>
    %1014 = arith.select %1011, %1013, %998 : vector<8x1xi1>, vector<8x1xi32>
    %1015 = arith.subf %1000, %1010 : vector<8x1xf32>
    %1016 = arith.select %1011, %1015, %1000 : vector<8x1xi1>, vector<8x1xf32>
    %c3_i32_208 = arith.constant 3 : i32
    %1017 = vector.broadcast %c3_i32_208 : i32 to vector<8x256xi32>
    %1018 = arith.shrsi %566, %1017 : vector<8x256xi32>
    %c3_i32_209 = arith.constant 3 : i32
    %1019 = vector.broadcast %c3_i32_209 : i32 to vector<8x1xi32>
    %1020 = arith.shrsi %1014, %1019 : vector<8x1xi32>
    %1021 = vector.broadcast %1020 : vector<8x1xi32> to vector<8x256xi32>
    %1022 = arith.cmpi eq, %1018, %1021 : vector<8x256xi32>
    %1023 = arith.extui %1022 : vector<8x256xi1> to vector<8x256xi32>
    %1024 = arith.sitofp %1023 : vector<8x256xi32> to vector<8x256xf32>
    %cst_210 = arith.constant dense<0.000000e+00> : vector<8xf32>
    %1025 = vector.multi_reduction <add>, %1024, %cst_210 [1] : vector<8x256xf32> to vector<8xf32>
    %1026 = vector.shape_cast %1025 : vector<8xf32> to vector<8x1xf32>
    %1027 = arith.cmpf oge, %1016, %1026 : vector<8x1xf32>
    %c8_i32_211 = arith.constant 8 : i32
    %1028 = vector.broadcast %c8_i32_211 : i32 to vector<8x1xi32>
    %1029 = arith.ori %1014, %1028 : vector<8x1xi32>
    %1030 = arith.select %1027, %1029, %1014 : vector<8x1xi1>, vector<8x1xi32>
    %1031 = arith.subf %1016, %1026 : vector<8x1xf32>
    %1032 = arith.select %1027, %1031, %1016 : vector<8x1xi1>, vector<8x1xf32>
    %c2_i32_212 = arith.constant 2 : i32
    %1033 = vector.broadcast %c2_i32_212 : i32 to vector<8x256xi32>
    %1034 = arith.shrsi %566, %1033 : vector<8x256xi32>
    %c2_i32_213 = arith.constant 2 : i32
    %1035 = vector.broadcast %c2_i32_213 : i32 to vector<8x1xi32>
    %1036 = arith.shrsi %1030, %1035 : vector<8x1xi32>
    %1037 = vector.broadcast %1036 : vector<8x1xi32> to vector<8x256xi32>
    %1038 = arith.cmpi eq, %1034, %1037 : vector<8x256xi32>
    %1039 = arith.extui %1038 : vector<8x256xi1> to vector<8x256xi32>
    %1040 = arith.sitofp %1039 : vector<8x256xi32> to vector<8x256xf32>
    %cst_214 = arith.constant dense<0.000000e+00> : vector<8xf32>
    %1041 = vector.multi_reduction <add>, %1040, %cst_214 [1] : vector<8x256xf32> to vector<8xf32>
    %1042 = vector.shape_cast %1041 : vector<8xf32> to vector<8x1xf32>
    %1043 = arith.cmpf oge, %1032, %1042 : vector<8x1xf32>
    %c4_i32_215 = arith.constant 4 : i32
    %1044 = vector.broadcast %c4_i32_215 : i32 to vector<8x1xi32>
    %1045 = arith.ori %1030, %1044 : vector<8x1xi32>
    %1046 = arith.select %1043, %1045, %1030 : vector<8x1xi1>, vector<8x1xi32>
    %1047 = arith.subf %1032, %1042 : vector<8x1xf32>
    %1048 = arith.select %1043, %1047, %1032 : vector<8x1xi1>, vector<8x1xf32>
    %c1_i32_216 = arith.constant 1 : i32
    %1049 = vector.broadcast %c1_i32_216 : i32 to vector<8x256xi32>
    %1050 = arith.shrsi %566, %1049 : vector<8x256xi32>
    %c1_i32_217 = arith.constant 1 : i32
    %1051 = vector.broadcast %c1_i32_217 : i32 to vector<8x1xi32>
    %1052 = arith.shrsi %1046, %1051 : vector<8x1xi32>
    %1053 = vector.broadcast %1052 : vector<8x1xi32> to vector<8x256xi32>
    %1054 = arith.cmpi eq, %1050, %1053 : vector<8x256xi32>
    %1055 = arith.extui %1054 : vector<8x256xi1> to vector<8x256xi32>
    %1056 = arith.sitofp %1055 : vector<8x256xi32> to vector<8x256xf32>
    %cst_218 = arith.constant dense<0.000000e+00> : vector<8xf32>
    %1057 = vector.multi_reduction <add>, %1056, %cst_218 [1] : vector<8x256xf32> to vector<8xf32>
    %1058 = vector.shape_cast %1057 : vector<8xf32> to vector<8x1xf32>
    %1059 = arith.cmpf oge, %1048, %1058 : vector<8x1xf32>
    %c2_i32_219 = arith.constant 2 : i32
    %1060 = vector.broadcast %c2_i32_219 : i32 to vector<8x1xi32>
    %1061 = arith.ori %1046, %1060 : vector<8x1xi32>
    %1062 = arith.select %1059, %1061, %1046 : vector<8x1xi1>, vector<8x1xi32>
    %1063 = arith.subf %1048, %1058 : vector<8x1xf32>
    %1064 = arith.select %1059, %1063, %1048 : vector<8x1xi1>, vector<8x1xf32>
    %c0_i32_220 = arith.constant 0 : i32
    %1065 = vector.broadcast %c0_i32_220 : i32 to vector<8x256xi32>
    %1066 = arith.shrsi %566, %1065 : vector<8x256xi32>
    %c0_i32_221 = arith.constant 0 : i32
    %1067 = vector.broadcast %c0_i32_221 : i32 to vector<8x1xi32>
    %1068 = arith.shrsi %1062, %1067 : vector<8x1xi32>
    %1069 = vector.broadcast %1068 : vector<8x1xi32> to vector<8x256xi32>
    %1070 = arith.cmpi eq, %1066, %1069 : vector<8x256xi32>
    %1071 = arith.extui %1070 : vector<8x256xi1> to vector<8x256xi32>
    %1072 = arith.sitofp %1071 : vector<8x256xi32> to vector<8x256xf32>
    %cst_222 = arith.constant dense<0.000000e+00> : vector<8xf32>
    %1073 = vector.multi_reduction <add>, %1072, %cst_222 [1] : vector<8x256xf32> to vector<8xf32>
    %1074 = vector.shape_cast %1073 : vector<8xf32> to vector<8x1xf32>
    %1075 = arith.cmpf oge, %1064, %1074 : vector<8x1xf32>
    %c1_i32_223 = arith.constant 1 : i32
    %1076 = vector.broadcast %c1_i32_223 : i32 to vector<8x1xi32>
    %1077 = arith.ori %1062, %1076 : vector<8x1xi32>
    %1078 = arith.select %1075, %1077, %1062 : vector<8x1xi1>, vector<8x1xi32>
    %c0_i32_224 = arith.constant 0 : i32
    %1079 = vector.broadcast %c0_i32_224 : i32 to vector<8x1xi32>
    %1080 = arith.cmpi slt, %1078, %1079 : vector<8x1xi32>
    %c-2147483648_i32_225 = arith.constant -2147483648 : i32
    %1081 = vector.broadcast %c-2147483648_i32_225 : i32 to vector<8x1xi32>
    %1082 = arith.xori %1078, %1081 : vector<8x1xi32>
    %c-1_i32_226 = arith.constant -1 : i32
    %1083 = vector.broadcast %c-1_i32_226 : i32 to vector<8x1xi32>
    %1084 = arith.xori %1078, %1083 : vector<8x1xi32>
    %1085 = arith.select %1080, %1082, %1084 : vector<8x1xi1>, vector<8x1xi32>
    %1086 = tpu.bitcast %1085 : vector<8x1xi32> -> vector<8x1xf32>
    %cst_227 = arith.constant 0.000000e+00 : f32
    %1087 = vector.broadcast %cst_227 : f32 to vector<8x1xf32>
    %1088 = arith.select %26, %1086, %1087 : vector<8x1xi1>, vector<8x1xf32>
    %1089 = vector.broadcast %558 : vector<8x1xf32> to vector<8x256xf32>
    %1090 = arith.subf %14, %1089 : vector<8x256xf32>
    %1091 = vector.broadcast %1088 : vector<8x1xf32> to vector<8x256xf32>
    %1092 = arith.subf %18, %1091 : vector<8x256xf32>
    %1093 = math.absf %1090 : vector<8x256xf32>
    %1094 = arith.mulf %22, %1093 : vector<8x256xf32>
    %cst_228 = arith.constant dense<0.000000e+00> : vector<8xf32>
    %1095 = vector.multi_reduction <add>, %1094, %cst_228 [1] : vector<8x256xf32> to vector<8xf32>
    %1096 = vector.shape_cast %1095 : vector<8xf32> to vector<8x1xf32>
    %1097 = arith.divf %1096, %28 : vector<8x1xf32>
    %cst_229 = arith.constant 9.99999997E-7 : f32
    %1098 = vector.broadcast %cst_229 : f32 to vector<8x1xf32>
    %1099 = arith.maximumf %1097, %1098 : vector<8x1xf32>
    %cst_230 = arith.constant 1.000000e+00 : f32
    %1100 = vector.broadcast %cst_230 : f32 to vector<8x1xf32>
    %1101 = arith.select %26, %1099, %1100 : vector<8x1xi1>, vector<8x1xf32>
    %1102 = math.absf %1092 : vector<8x256xf32>
    %1103 = arith.mulf %22, %1102 : vector<8x256xf32>
    %cst_231 = arith.constant dense<0.000000e+00> : vector<8xf32>
    %1104 = vector.multi_reduction <add>, %1103, %cst_231 [1] : vector<8x256xf32> to vector<8xf32>
    %1105 = vector.shape_cast %1104 : vector<8xf32> to vector<8x1xf32>
    %1106 = arith.divf %1105, %28 : vector<8x1xf32>
    %cst_232 = arith.constant 9.99999997E-7 : f32
    %1107 = vector.broadcast %cst_232 : f32 to vector<8x1xf32>
    %1108 = arith.maximumf %1106, %1107 : vector<8x1xf32>
    %cst_233 = arith.constant 1.000000e+00 : f32
    %1109 = vector.broadcast %cst_233 : f32 to vector<8x1xf32>
    %1110 = arith.select %26, %1108, %1109 : vector<8x1xi1>, vector<8x1xf32>
    %cst_234 = arith.constant 1.000000e+00 : f32
    %1111 = vector.broadcast %cst_234 : f32 to vector<8x1xf32>
    %1112 = arith.divf %1111, %1101 : vector<8x1xf32>
    %1113 = vector.broadcast %1112 : vector<8x1xf32> to vector<8x256xf32>
    %1114 = arith.mulf %1090, %1113 : vector<8x256xf32>
    %cst_235 = arith.constant 1.000000e+00 : f32
    %1115 = vector.broadcast %cst_235 : f32 to vector<8x1xf32>
    %1116 = arith.divf %1115, %1110 : vector<8x1xf32>
    %1117 = vector.broadcast %1116 : vector<8x1xf32> to vector<8x256xf32>
    %1118 = arith.mulf %1092, %1117 : vector<8x256xf32>
    %1119 = arith.subf %1114, %1118 : vector<8x256xf32>
    %1120 = math.absf %1119 : vector<8x256xf32>
    %1121 = arith.mulf %22, %1120 : vector<8x256xf32>
    %1122 = vector.shape_cast %1121 : vector<8x256xf32> to vector<1x8x256xf32>
    %cst_236 = arith.constant dense<0.000000e+00> : vector<1xf32>
    %1123 = vector.multi_reduction <add>, %1122, %cst_236 [1, 2] : vector<1x8x256xf32> to vector<1xf32>
    %1124 = vector.shape_cast %1123 : vector<1xf32> to vector<1x1x1xf32>
    %1125 = vector.extract %1124[0, 0, 0] : f32 from vector<1x1x1xf32>
    %1126 = vector.shape_cast %24 : vector<8x1xf32> to vector<1x8x1xf32>
    %cst_237 = arith.constant dense<0.000000e+00> : vector<1xf32>
    %1127 = vector.multi_reduction <add>, %1126, %cst_237 [1, 2] : vector<1x8x1xf32> to vector<1xf32>
    %1128 = vector.shape_cast %1127 : vector<1xf32> to vector<1x1x1xf32>
    %1129 = vector.extract %1128[0, 0, 0] : f32 from vector<1x1x1xf32>
    %cst_238 = arith.constant 0.000000e+00 : f32
    %1130 = vector.broadcast %cst_238 : f32 to vector<8x256xf32>
    %1131 = arith.cmpf ogt, %1114, %1130 : vector<8x256xf32>
    %cst_239 = arith.constant 1.000000e+00 : f32
    %1132 = vector.broadcast %cst_239 : f32 to vector<8x256xf32>
    %1133 = arith.select %1131, %1114, %1132 : vector<8x256xi1>, vector<8x256xf32>
    %1134 = math.log %1133 : vector<8x256xf32>
    %cst_240 = arith.constant 0.000000e+00 : f32
    %1135 = vector.broadcast %cst_240 : f32 to vector<8x256xf32>
    %1136 = arith.cmpf ogt, %1118, %1135 : vector<8x256xf32>
    %cst_241 = arith.constant 1.000000e+00 : f32
    %1137 = vector.broadcast %cst_241 : f32 to vector<8x256xf32>
    %1138 = arith.select %1136, %1118, %1137 : vector<8x256xi1>, vector<8x256xf32>
    %1139 = math.log %1138 : vector<8x256xf32>
    %1140 = arith.subf %1134, %1139 : vector<8x256xf32>
    %1141 = arith.mulf %22, %1140 : vector<8x256xf32>
    %1142 = vector.extract_strided_slice %4 {offsets = [0, 0], sizes = [1, 256], strides = [1, 1]} : vector<12x256xf32> to vector<1x256xf32>
    %c255_i32 = arith.constant 255 : i32
    %1143 = tpu.dynamic_rotate %1141 by %c255_i32 dim 1 : vector<8x256xf32>, i32 -> vector<8x256xf32>
    %c255_i32_242 = arith.constant 255 : i32
    %1144 = tpu.dynamic_rotate %22 by %c255_i32_242 dim 1 : vector<8x256xf32>, i32 -> vector<8x256xf32>
    %1145 = arith.subf %1143, %1141 : vector<8x256xf32>
    %1146 = math.absf %1145 : vector<8x256xf32>
    %1147 = arith.mulf %1144, %22 : vector<8x256xf32>
    %1148 = vector.broadcast %1142 : vector<1x256xf32> to vector<8x256xf32>
    %1149 = arith.mulf %1147, %1148 : vector<8x256xf32>
    %1150 = arith.mulf %1146, %1149 : vector<8x256xf32>
    %1151 = vector.extract_strided_slice %4 {offsets = [4, 0], sizes = [1, 256], strides = [1, 1]} : vector<12x256xf32> to vector<1x256xf32>
    %c240_i32 = arith.constant 240 : i32
    %1152 = tpu.dynamic_rotate %1141 by %c240_i32 dim 1 : vector<8x256xf32>, i32 -> vector<8x256xf32>
    %c240_i32_243 = arith.constant 240 : i32
    %1153 = tpu.dynamic_rotate %22 by %c240_i32_243 dim 1 : vector<8x256xf32>, i32 -> vector<8x256xf32>
    %1154 = arith.subf %1152, %1141 : vector<8x256xf32>
    %1155 = math.absf %1154 : vector<8x256xf32>
    %1156 = arith.mulf %1153, %22 : vector<8x256xf32>
    %1157 = vector.broadcast %1151 : vector<1x256xf32> to vector<8x256xf32>
    %1158 = arith.mulf %1156, %1157 : vector<8x256xf32>
    %1159 = arith.mulf %1155, %1158 : vector<8x256xf32>
    %1160 = arith.addf %1150, %1159 : vector<8x256xf32>
    %1161 = vector.shape_cast %1160 : vector<8x256xf32> to vector<1x8x256xf32>
    %cst_244 = arith.constant dense<0.000000e+00> : vector<1xf32>
    %1162 = vector.multi_reduction <add>, %1161, %cst_244 [1, 2] : vector<1x8x256xf32> to vector<1xf32>
    %1163 = vector.shape_cast %1162 : vector<1xf32> to vector<1x1x1xf32>
    %1164 = vector.extract %1163[0, 0, 0] : f32 from vector<1x1x1xf32>
    %1165 = vector.extract_strided_slice %4 {offsets = [9, 0], sizes = [1, 256], strides = [1, 1]} : vector<12x256xf32> to vector<1x256xf32>
    %1166 = vector.broadcast %1165 : vector<1x256xf32> to vector<8x256xf32>
    %1167 = arith.mulf %22, %1166 : vector<8x256xf32>
    %1168 = vector.shape_cast %1167 : vector<8x256xf32> to vector<1x8x256xf32>
    %cst_245 = arith.constant dense<0.000000e+00> : vector<1xf32>
    %1169 = vector.multi_reduction <add>, %1168, %cst_245 [1, 2] : vector<1x8x256xf32> to vector<1xf32>
    %1170 = vector.shape_cast %1169 : vector<1xf32> to vector<1x1x1xf32>
    %1171 = vector.extract %1170[0, 0, 0] : f32 from vector<1x1x1xf32>
    %1172 = vector.extract_strided_slice %4 {offsets = [1, 0], sizes = [1, 256], strides = [1, 1]} : vector<12x256xf32> to vector<1x256xf32>
    %c254_i32 = arith.constant 254 : i32
    %1173 = tpu.dynamic_rotate %1141 by %c254_i32 dim 1 : vector<8x256xf32>, i32 -> vector<8x256xf32>
    %c254_i32_246 = arith.constant 254 : i32
    %1174 = tpu.dynamic_rotate %22 by %c254_i32_246 dim 1 : vector<8x256xf32>, i32 -> vector<8x256xf32>
    %1175 = arith.subf %1173, %1141 : vector<8x256xf32>
    %1176 = math.absf %1175 : vector<8x256xf32>
    %1177 = arith.mulf %1174, %22 : vector<8x256xf32>
    %1178 = vector.broadcast %1172 : vector<1x256xf32> to vector<8x256xf32>
    %1179 = arith.mulf %1177, %1178 : vector<8x256xf32>
    %1180 = arith.mulf %1176, %1179 : vector<8x256xf32>
    %1181 = vector.extract_strided_slice %4 {offsets = [5, 0], sizes = [1, 256], strides = [1, 1]} : vector<12x256xf32> to vector<1x256xf32>
    %c224_i32 = arith.constant 224 : i32
    %1182 = tpu.dynamic_rotate %1141 by %c224_i32 dim 1 : vector<8x256xf32>, i32 -> vector<8x256xf32>
    %c224_i32_247 = arith.constant 224 : i32
    %1183 = tpu.dynamic_rotate %22 by %c224_i32_247 dim 1 : vector<8x256xf32>, i32 -> vector<8x256xf32>
    %1184 = arith.subf %1182, %1141 : vector<8x256xf32>
    %1185 = math.absf %1184 : vector<8x256xf32>
    %1186 = arith.mulf %1183, %22 : vector<8x256xf32>
    %1187 = vector.broadcast %1181 : vector<1x256xf32> to vector<8x256xf32>
    %1188 = arith.mulf %1186, %1187 : vector<8x256xf32>
    %1189 = arith.mulf %1185, %1188 : vector<8x256xf32>
    %1190 = arith.addf %1180, %1189 : vector<8x256xf32>
    %1191 = vector.shape_cast %1190 : vector<8x256xf32> to vector<1x8x256xf32>
    %cst_248 = arith.constant dense<0.000000e+00> : vector<1xf32>
    %1192 = vector.multi_reduction <add>, %1191, %cst_248 [1, 2] : vector<1x8x256xf32> to vector<1xf32>
    %1193 = vector.shape_cast %1192 : vector<1xf32> to vector<1x1x1xf32>
    %1194 = vector.extract %1193[0, 0, 0] : f32 from vector<1x1x1xf32>
    %1195 = vector.extract_strided_slice %4 {offsets = [10, 0], sizes = [1, 256], strides = [1, 1]} : vector<12x256xf32> to vector<1x256xf32>
    %1196 = vector.broadcast %1195 : vector<1x256xf32> to vector<8x256xf32>
    %1197 = arith.mulf %22, %1196 : vector<8x256xf32>
    %1198 = vector.shape_cast %1197 : vector<8x256xf32> to vector<1x8x256xf32>
    %cst_249 = arith.constant dense<0.000000e+00> : vector<1xf32>
    %1199 = vector.multi_reduction <add>, %1198, %cst_249 [1, 2] : vector<1x8x256xf32> to vector<1xf32>
    %1200 = vector.shape_cast %1199 : vector<1xf32> to vector<1x1x1xf32>
    %1201 = vector.extract %1200[0, 0, 0] : f32 from vector<1x1x1xf32>
    %1202 = vector.extract_strided_slice %4 {offsets = [2, 0], sizes = [1, 256], strides = [1, 1]} : vector<12x256xf32> to vector<1x256xf32>
    %c252_i32 = arith.constant 252 : i32
    %1203 = tpu.dynamic_rotate %1141 by %c252_i32 dim 1 : vector<8x256xf32>, i32 -> vector<8x256xf32>
    %c252_i32_250 = arith.constant 252 : i32
    %1204 = tpu.dynamic_rotate %22 by %c252_i32_250 dim 1 : vector<8x256xf32>, i32 -> vector<8x256xf32>
    %1205 = arith.subf %1203, %1141 : vector<8x256xf32>
    %1206 = math.absf %1205 : vector<8x256xf32>
    %1207 = arith.mulf %1204, %22 : vector<8x256xf32>
    %1208 = vector.broadcast %1202 : vector<1x256xf32> to vector<8x256xf32>
    %1209 = arith.mulf %1207, %1208 : vector<8x256xf32>
    %1210 = arith.mulf %1206, %1209 : vector<8x256xf32>
    %1211 = vector.extract_strided_slice %4 {offsets = [6, 0], sizes = [1, 256], strides = [1, 1]} : vector<12x256xf32> to vector<1x256xf32>
    %c192_i32 = arith.constant 192 : i32
    %1212 = tpu.dynamic_rotate %1141 by %c192_i32 dim 1 : vector<8x256xf32>, i32 -> vector<8x256xf32>
    %c192_i32_251 = arith.constant 192 : i32
    %1213 = tpu.dynamic_rotate %22 by %c192_i32_251 dim 1 : vector<8x256xf32>, i32 -> vector<8x256xf32>
    %1214 = arith.subf %1212, %1141 : vector<8x256xf32>
    %1215 = math.absf %1214 : vector<8x256xf32>
    %1216 = arith.mulf %1213, %22 : vector<8x256xf32>
    %1217 = vector.broadcast %1211 : vector<1x256xf32> to vector<8x256xf32>
    %1218 = arith.mulf %1216, %1217 : vector<8x256xf32>
    %1219 = arith.mulf %1215, %1218 : vector<8x256xf32>
    %1220 = arith.addf %1210, %1219 : vector<8x256xf32>
    %1221 = vector.shape_cast %1220 : vector<8x256xf32> to vector<1x8x256xf32>
    %cst_252 = arith.constant dense<0.000000e+00> : vector<1xf32>
    %1222 = vector.multi_reduction <add>, %1221, %cst_252 [1, 2] : vector<1x8x256xf32> to vector<1xf32>
    %1223 = vector.shape_cast %1222 : vector<1xf32> to vector<1x1x1xf32>
    %1224 = vector.extract %1223[0, 0, 0] : f32 from vector<1x1x1xf32>
    %1225 = vector.extract_strided_slice %4 {offsets = [11, 0], sizes = [1, 256], strides = [1, 1]} : vector<12x256xf32> to vector<1x256xf32>
    %1226 = vector.broadcast %1225 : vector<1x256xf32> to vector<8x256xf32>
    %1227 = arith.mulf %22, %1226 : vector<8x256xf32>
    %1228 = vector.shape_cast %1227 : vector<8x256xf32> to vector<1x8x256xf32>
    %cst_253 = arith.constant dense<0.000000e+00> : vector<1xf32>
    %1229 = vector.multi_reduction <add>, %1228, %cst_253 [1, 2] : vector<1x8x256xf32> to vector<1xf32>
    %1230 = vector.shape_cast %1229 : vector<1xf32> to vector<1x1x1xf32>
    %1231 = vector.extract %1230[0, 0, 0] : f32 from vector<1x1x1xf32>
    %1232 = vector.extract_strided_slice %4 {offsets = [3, 0], sizes = [1, 256], strides = [1, 1]} : vector<12x256xf32> to vector<1x256xf32>
    %c248_i32 = arith.constant 248 : i32
    %1233 = tpu.dynamic_rotate %1141 by %c248_i32 dim 1 : vector<8x256xf32>, i32 -> vector<8x256xf32>
    %c248_i32_254 = arith.constant 248 : i32
    %1234 = tpu.dynamic_rotate %22 by %c248_i32_254 dim 1 : vector<8x256xf32>, i32 -> vector<8x256xf32>
    %1235 = arith.subf %1233, %1141 : vector<8x256xf32>
    %1236 = math.absf %1235 : vector<8x256xf32>
    %1237 = arith.mulf %1234, %22 : vector<8x256xf32>
    %1238 = vector.broadcast %1232 : vector<1x256xf32> to vector<8x256xf32>
    %1239 = arith.mulf %1237, %1238 : vector<8x256xf32>
    %1240 = arith.mulf %1236, %1239 : vector<8x256xf32>
    %1241 = vector.extract_strided_slice %4 {offsets = [7, 0], sizes = [1, 256], strides = [1, 1]} : vector<12x256xf32> to vector<1x256xf32>
    %c128_i32_255 = arith.constant 128 : i32
    %1242 = tpu.dynamic_rotate %1141 by %c128_i32_255 dim 1 : vector<8x256xf32>, i32 -> vector<8x256xf32>
    %c128_i32_256 = arith.constant 128 : i32
    %1243 = tpu.dynamic_rotate %22 by %c128_i32_256 dim 1 : vector<8x256xf32>, i32 -> vector<8x256xf32>
    %1244 = arith.subf %1242, %1141 : vector<8x256xf32>
    %1245 = math.absf %1244 : vector<8x256xf32>
    %1246 = arith.mulf %1243, %22 : vector<8x256xf32>
    %1247 = vector.broadcast %1241 : vector<1x256xf32> to vector<8x256xf32>
    %1248 = arith.mulf %1246, %1247 : vector<8x256xf32>
    %1249 = arith.mulf %1245, %1248 : vector<8x256xf32>
    %1250 = arith.addf %1240, %1249 : vector<8x256xf32>
    %1251 = vector.shape_cast %1250 : vector<8x256xf32> to vector<1x8x256xf32>
    %cst_257 = arith.constant dense<0.000000e+00> : vector<1xf32>
    %1252 = vector.multi_reduction <add>, %1251, %cst_257 [1, 2] : vector<1x8x256xf32> to vector<1xf32>
    %1253 = vector.shape_cast %1252 : vector<1xf32> to vector<1x1x1xf32>
    %1254 = vector.extract %1253[0, 0, 0] : f32 from vector<1x1x1xf32>
    %1255 = tpu.iota {dimensions = array<i32: 2>} : vector<1x1x128xi32>
    %cst_258 = arith.constant 0.000000e+00 : f32
    %1256 = vector.broadcast %cst_258 : f32 to vector<1x1x128xf32>
    %c0_i32_259 = arith.constant 0 : i32
    %1257 = vector.broadcast %c0_i32_259 : i32 to vector<1x1x128xi32>
    %1258 = arith.cmpi eq, %1255, %1257 : vector<1x1x128xi32>
    %1259 = vector.broadcast %1125 : f32 to vector<1x1x128xf32>
    %1260 = arith.select %1258, %1259, %1256 : vector<1x1x128xi1>, vector<1x1x128xf32>
    %c1_i32_260 = arith.constant 1 : i32
    %1261 = vector.broadcast %c1_i32_260 : i32 to vector<1x1x128xi32>
    %1262 = arith.cmpi eq, %1255, %1261 : vector<1x1x128xi32>
    %1263 = vector.broadcast %1129 : f32 to vector<1x1x128xf32>
    %1264 = arith.select %1262, %1263, %1260 : vector<1x1x128xi1>, vector<1x1x128xf32>
    %c2_i32_261 = arith.constant 2 : i32
    %1265 = vector.broadcast %c2_i32_261 : i32 to vector<1x1x128xi32>
    %1266 = arith.cmpi eq, %1255, %1265 : vector<1x1x128xi32>
    %1267 = vector.broadcast %1164 : f32 to vector<1x1x128xf32>
    %1268 = arith.select %1266, %1267, %1264 : vector<1x1x128xi1>, vector<1x1x128xf32>
    %c3_i32_262 = arith.constant 3 : i32
    %1269 = vector.broadcast %c3_i32_262 : i32 to vector<1x1x128xi32>
    %1270 = arith.cmpi eq, %1255, %1269 : vector<1x1x128xi32>
    %1271 = vector.broadcast %1194 : f32 to vector<1x1x128xf32>
    %1272 = arith.select %1270, %1271, %1268 : vector<1x1x128xi1>, vector<1x1x128xf32>
    %c4_i32_263 = arith.constant 4 : i32
    %1273 = vector.broadcast %c4_i32_263 : i32 to vector<1x1x128xi32>
    %1274 = arith.cmpi eq, %1255, %1273 : vector<1x1x128xi32>
    %1275 = vector.broadcast %1224 : f32 to vector<1x1x128xf32>
    %1276 = arith.select %1274, %1275, %1272 : vector<1x1x128xi1>, vector<1x1x128xf32>
    %c5_i32_264 = arith.constant 5 : i32
    %1277 = vector.broadcast %c5_i32_264 : i32 to vector<1x1x128xi32>
    %1278 = arith.cmpi eq, %1255, %1277 : vector<1x1x128xi32>
    %1279 = vector.broadcast %1254 : f32 to vector<1x1x128xf32>
    %1280 = arith.select %1278, %1279, %1276 : vector<1x1x128xi1>, vector<1x1x128xf32>
    %c6_i32_265 = arith.constant 6 : i32
    %1281 = vector.broadcast %c6_i32_265 : i32 to vector<1x1x128xi32>
    %1282 = arith.cmpi eq, %1255, %1281 : vector<1x1x128xi32>
    %1283 = vector.broadcast %1129 : f32 to vector<1x1x128xf32>
    %1284 = arith.select %1282, %1283, %1280 : vector<1x1x128xi1>, vector<1x1x128xf32>
    %c7_i32_266 = arith.constant 7 : i32
    %1285 = vector.broadcast %c7_i32_266 : i32 to vector<1x1x128xi32>
    %1286 = arith.cmpi eq, %1255, %1285 : vector<1x1x128xi32>
    %1287 = vector.broadcast %1171 : f32 to vector<1x1x128xf32>
    %1288 = arith.select %1286, %1287, %1284 : vector<1x1x128xi1>, vector<1x1x128xf32>
    %c8_i32_267 = arith.constant 8 : i32
    %1289 = vector.broadcast %c8_i32_267 : i32 to vector<1x1x128xi32>
    %1290 = arith.cmpi eq, %1255, %1289 : vector<1x1x128xi32>
    %1291 = vector.broadcast %1201 : f32 to vector<1x1x128xf32>
    %1292 = arith.select %1290, %1291, %1288 : vector<1x1x128xi1>, vector<1x1x128xf32>
    %c9_i32_268 = arith.constant 9 : i32
    %1293 = vector.broadcast %c9_i32_268 : i32 to vector<1x1x128xi32>
    %1294 = arith.cmpi eq, %1255, %1293 : vector<1x1x128xi32>
    %1295 = vector.broadcast %1231 : f32 to vector<1x1x128xf32>
    %1296 = arith.select %1294, %1295, %1292 : vector<1x1x128xi1>, vector<1x1x128xf32>
    %c0_269 = arith.constant 0 : index
    %c0_270 = arith.constant 0 : index
    %c0_271 = arith.constant 0 : index
    %1297 = vector.load %arg5[%c0_269, %c0_270, %c0_271] : memref<1x1x128xf32, #tpu.memory_space<vmem>>, vector<1x1x128xf32>
    tpu.vector_store %arg5[%c0_269, %c0_270, %c0_271], %1296 {strides = array<i32>} : memref<1x1x128xf32, #tpu.memory_space<vmem>>, vector<1x1x128xf32>,
    return
  }
  func.func @transform_0(%arg0: i32) -> (i32, i32) {
    %c0_i32 = arith.constant 0 : i32
    %c0_i32_0 = arith.constant 0 : i32
    %c0_i32_1 = arith.constant 0 : i32
    return %c0_i32, %c0_i32_0 : i32, i32
  }
  func.func @transform_1(%arg0: i32) -> (i32, i32) {
    %c0_i32 = arith.constant 0 : i32
    %c0_i32_0 = arith.constant 0 : i32
    return %arg0, %c0_i32 : i32, i32
  }
  func.func @transform_2(%arg0: i32) -> (i32, i32) {
    %c0_i32 = arith.constant 0 : i32
    %c0_i32_0 = arith.constant 0 : i32
    return %arg0, %c0_i32 : i32, i32
  }
  func.func @transform_3(%arg0: i32) -> (i32, i32) {
    %c0_i32 = arith.constant 0 : i32
    %c0_i32_0 = arith.constant 0 : i32
    return %arg0, %c0_i32 : i32, i32
  }
  func.func @transform_4(%arg0: i32) -> (i32, i32, i32) {
    %c0_i32 = arith.constant 0 : i32
    %c0_i32_0 = arith.constant 0 : i32
    %c0_i32_1 = arith.constant 0 : i32
    return %arg0, %c0_i32, %c0_i32_0 : i32, i32, i32
  }
}

</mosaic_0001>

<llo_original>
// kernel: trimmed_procrustes_loss.1
$region0: #{trimmed_procrustes_loss.1}
  #allocation0 [shape = 'u32[]', space=smem, size = 0x4, offset = 0x4, fixed_abs, tag = 'smem constant byte address 0x4 - core index']
  #allocation1 [shape = 'u32[144,128]{1,0:T(1,128)}', space=vmem, size = 0x12000, scoped, tag = 'internal scratch']
  %s0 = inlined_call_operand.vmem [shape: bf16[12,256], index: 0, kind: input, shape index: {}]
  %s1 = inlined_call_operand.vmem [shape: f32[20,256], index: 1, kind: input, shape index: {}]
  %s2 = inlined_call_operand.vmem [shape: f32[20,256], index: 2, kind: input, shape index: {}]
  %s3 = inlined_call_operand.vmem [shape: f32[20,256], index: 3, kind: input, shape index: {}]
  %s4 = inlined_call_operand.vmem [shape: f32[3,1,128], index: 4, kind: output, shape index: {}]
  %s5 = sld [smem:[#allocation0]]
  $region49: #{trimmed_procrustes_loss.1} parent=0
    _
  %s7 = ssub.s32 1, %s5
  %s8 = scalar_select 0, %s7, %s5
  loop: start=0, step=1, limit=5
  $region2: #{trimmed_procrustes_loss.1} parent=0 // loop_pre_header
    _
  $region3: #{trimmed_procrustes_loss.1} parent=0 // loop_header
    %s10 = sphi 0, %s14
    %p11 = scmp.ge.s32.totalorder %s10, 5
    %s18 = sphi 0, %s18
    %s20 = sphi 0, %s18
    %s21 = sphi 0, %s20
    %s35 = sphi 0, %s21
    %s41 = sphi 0, %s43
    %s44 = sphi 0, %s41
    %s45 = sphi 0, %s44
    %s61 = sphi 0, %s45
    %s67 = sphi 0, %s69
    %s70 = sphi 0, %s67
    %s71 = sphi 0, %s70
    %s87 = sphi 0, %s71
    %s93 = sphi 0, %s95
    %s96 = sphi 0, %s93
    %s97 = sphi 0, %s96
    %s113 = sphi 0, %s97
    %s119 = sphi 0, %s121
    %s122 = sphi 0, %s119
    %s123 = sphi 0, %s122
    %s139 = sphi 0, %s123
  $region4: #{trimmed_procrustes_loss.1} parent=0 // loop_header_branch
    %13 = sbr.rel (%p11) target = $region8
  $region5: #{trimmed_procrustes_loss.1} parent=0 // loop_body
    %s15 = ssub.s32 %s10, 1
    %s16 = ssub.s32 %s10, 2
    %s17 = sadd.s32 %s10, 1
    %s19 = sadd.s32 %s18, 1
    %p22 = scmp.eq.s32.totalorder %s10, 2
    %p23 = scmp.ne.s32.totalorder %s18, %s20
    %p24 = scmp.eq.s32.totalorder %s10, 0
    %p25 = por %p23, %p24
    %p26 = scmp.ne.s32.totalorder %s18, %s20
    %p27 = scmp.eq.s32.totalorder %s15, 2
    %p28 = por %p26, %p27
    %p29 = scmp.ne.s32.totalorder %s20, %s21
    %p30 = scmp.eq.s32.totalorder %s15, 0
    %p31 = por %p29, %p30
    %p32 = scmp.ne.s32.totalorder %s20, %s21
    %p33 = scmp.eq.s32.totalorder %s16, 2
    %p34 = por %p32, %p33
    %p36 = scmp.ne.s32.totalorder %s21, %s35
    %p37 = scmp.eq.s32.totalorder %s16, 0
    %p38 = por %p36, %p37
    %s39 = ssub.s32 %s10, %s17
    %p40 = scmp.eq.s32.totalorder %s39, 0
    %s42 = sadd.s32 %s41, 1
    %s43 = scalar_select %p40, %s41, %s42
    %p46 = pneg %p40
    %p47 = scmp.eq.s32.totalorder %s10, 2
    %p48 = por %p46, %p47
    %p49 = scmp.ne.s32.totalorder %s41, %s44
    %p50 = scmp.eq.s32.totalorder %s10, 0
    %p51 = por %p49, %p50
    %p52 = scmp.ne.s32.totalorder %s41, %s44
    %p53 = scmp.eq.s32.totalorder %s15, 2
    %p54 = por %p52, %p53
    %p55 = scmp.ne.s32.totalorder %s44, %s45
    %p56 = scmp.eq.s32.totalorder %s15, 0
    %p57 = por %p55, %p56
    %p58 = scmp.ne.s32.totalorder %s44, %s45
    %p59 = scmp.eq.s32.totalorder %s16, 2
    %p60 = por %p58, %p59
    %p62 = scmp.ne.s32.totalorder %s45, %s61
    %p63 = scmp.eq.s32.totalorder %s16, 0
    %p64 = por %p62, %p63
    %s65 = ssub.s32 %s10, %s17
    %p66 = scmp.eq.s32.totalorder %s65, 0
    %s68 = sadd.s32 %s67, 1
    %s69 = scalar_select %p66, %s67, %s68
    %p72 = pneg %p66
    %p73 = scmp.eq.s32.totalorder %s10, 2
    %p74 = por %p72, %p73
    %p75 = scmp.ne.s32.totalorder %s67, %s70
    %p76 = scmp.eq.s32.totalorder %s10, 0
    %p77 = por %p75, %p76
    %p78 = scmp.ne.s32.totalorder %s67, %s70
    %p79 = scmp.eq.s32.totalorder %s15, 2
    %p80 = por %p78, %p79
    %p81 = scmp.ne.s32.totalorder %s70, %s71
    %p82 = scmp.eq.s32.totalorder %s15, 0
    %p83 = por %p81, %p82
    %p84 = scmp.ne.s32.totalorder %s70, %s71
    %p85 = scmp.eq.s32.totalorder %s16, 2
    %p86 = por %p84, %p85
    %p88 = scmp.ne.s32.totalorder %s71, %s87
    %p89 = scmp.eq.s32.totalorder %s16, 0
    %p90 = por %p88, %p89
    %s91 = ssub.s32 %s10, %s17
    %p92 = scmp.eq.s32.totalorder %s91, 0
    %s94 = sadd.s32 %s93, 1
    %s95 = scalar_select %p92, %s93, %s94
    %p98 = pneg %p92
    %p99 = scmp.eq.s32.totalorder %s10, 2
    %p100 = por %p98, %p99
    %p101 = scmp.ne.s32.totalorder %s93, %s96
    %p102 = scmp.eq.s32.totalorder %s10, 0
    %p103 = por %p101, %p102
    %p104 = scmp.ne.s32.totalorder %s93, %s96
    %p105 = scmp.eq.s32.totalorder %s15, 2
    %p106 = por %p104, %p105
    %p107 = scmp.ne.s32.totalorder %s96, %s97
    %p108 = scmp.eq.s32.totalorder %s15, 0
    %p109 = por %p107, %p108
    %p110 = scmp.ne.s32.totalorder %s96, %s97
    %p111 = scmp.eq.s32.totalorder %s16, 2
    %p112 = por %p110, %p111
    %p114 = scmp.ne.s32.totalorder %s97, %s113
    %p115 = scmp.eq.s32.totalorder %s16, 0
    %p116 = por %p114, %p115
    %s117 = ssub.s32 %s10, %s17
    %p118 = scmp.eq.s32.totalorder %s117, 0
    %s120 = sadd.s32 %s119, 1
    %s121 = scalar_select %p118, %s119, %s120
    %p124 = pneg %p118
    %p125 = scmp.eq.s32.totalorder %s10, 2
    %p126 = por %p124, %p125
    %p127 = scmp.ne.s32.totalorder %s119, %s122
    %p128 = scmp.eq.s32.totalorder %s10, 0
    %p129 = por %p127, %p128
    %p130 = scmp.ne.s32.totalorder %s119, %s122
    %p131 = scmp.eq.s32.totalorder %s15, 2
    %p132 = por %p130, %p131
    %p133 = scmp.ne.s32.totalorder %s122, %s123
    %p134 = scmp.eq.s32.totalorder %s15, 0
    %p135 = por %p133, %p134
    %p136 = scmp.ne.s32.totalorder %s122, %s123
    %p137 = scmp.eq.s32.totalorder %s16, 2
    %p138 = por %p136, %p137
    %p140 = scmp.ne.s32.totalorder %s123, %s139
    %p141 = scmp.eq.s32.totalorder %s16, 0
    %p142 = por %p140, %p141
    %p143 = scmp.le.s32.totalorder 1, %s10
    %p144 = scmp.lt.s32.totalorder %s10, 4
    %p145 = pnand %p143, %p144
    %p146 = pneg %p145
    // Predicated region
    $region9: #{trimmed_procrustes_loss.1} parent=5 // pred_check
      _
    $region10: #{trimmed_procrustes_loss.1} parent=5 // pred_check_branch
      %148 = sbr.rel (%p145) target = $region12
    $region11: #{trimmed_procrustes_loss.1} parent=5 // pred_region
      %s149 = ssub.s32 %s10, 1
      // Predicated region
      $region13: #{trimmed_procrustes_loss.1} parent=11 // pred_check
        %p150 = pneg %p31
      $region14: #{trimmed_procrustes_loss.1} parent=11 // pred_check_branch
        %152 = sbr.rel (%p150) target = $region16
      $region15: #{trimmed_procrustes_loss.1} parent=11 // pred_region
        _
      $region16: #{trimmed_procrustes_loss.1} parent=11 // pred_fallthru
        _
    $region12: #{trimmed_procrustes_loss.1} parent=5 // pred_fallthru
      _
    %p153 = scmp.lt.s32.totalorder %s10, 3
    // Predicated region
    $region17: #{trimmed_procrustes_loss.1} parent=5 // pred_check
      %p154 = pneg %p153
    $region18: #{trimmed_procrustes_loss.1} parent=5 // pred_check_branch
      %156 = sbr.rel (%p154) target = $region20
    $region19: #{trimmed_procrustes_loss.1} parent=5 // pred_region
      // Predicated region
      $region21: #{trimmed_procrustes_loss.1} parent=19 // pred_check
        %p157 = pneg %p51
      $region22: #{trimmed_procrustes_loss.1} parent=19 // pred_check_branch
        %159 = sbr.rel (%p157) target = $region24
      $region23: #{trimmed_procrustes_loss.1} parent=19 // pred_region
        %p160 = scmp.lt.s32.totalorder %s10, 2
        %s161 = scalar_select %p160, %s10, 2
        %s162 = smul.addr %s161, 2
        %s163 = smul.addr %s162, 8
        %s164 = scalar_lea.vmem %s1, %s163
      $region24: #{trimmed_procrustes_loss.1} parent=19 // pred_fallthru
        _
      // Predicated region
      $region25: #{trimmed_procrustes_loss.1} parent=19 // pred_check
        %p165 = pneg %p77
      $region26: #{trimmed_procrustes_loss.1} parent=19 // pred_check_branch
        %167 = sbr.rel (%p165) target = $region28
      $region27: #{trimmed_procrustes_loss.1} parent=19 // pred_region
        %p168 = scmp.lt.s32.totalorder %s10, 2
        %s169 = scalar_select %p168, %s10, 2
        %s170 = smul.addr %s169, 2
        %s171 = smul.addr %s170, 8
        %s172 = scalar_lea.vmem %s2, %s171
      $region28: #{trimmed_procrustes_loss.1} parent=19 // pred_fallthru
        _
      // Predicated region
      $region29: #{trimmed_procrustes_loss.1} parent=19 // pred_check
        %p173 = pneg %p103
      $region30: #{trimmed_procrustes_loss.1} parent=19 // pred_check_branch
        %175 = sbr.rel (%p173) target = $region32
      $region31: #{trimmed_procrustes_loss.1} parent=19 // pred_region
        %p176 = scmp.lt.s32.totalorder %s10, 2
        %s177 = scalar_select %p176, %s10, 2
        %s178 = smul.addr %s177, 2
        %s179 = smul.addr %s178, 8
        %s180 = scalar_lea.vmem %s3, %s179
      $region32: #{trimmed_procrustes_loss.1} parent=19 // pred_fallthru
        _
    $region20: #{trimmed_procrustes_loss.1} parent=5 // pred_fallthru
      _
    %p181 = scmp.le.s32.totalorder 1, %s10
    %p182 = scmp.lt.s32.totalorder %s10, 4
    %p183 = pnand %p181, %p182
    %p184 = pneg %p183
    // Predicated region
    $region33: #{trimmed_procrustes_loss.1} parent=5 // pred_check
      _
    $region34: #{trimmed_procrustes_loss.1} parent=5 // pred_check_branch
      %186 = sbr.rel (%p183) target = $region36
    $region35: #{trimmed_procrustes_loss.1} parent=5 // pred_region
      %s187 = ssub.s32 %s10, 1
      %p188 = pneg %p31
      %p189 = pneg %p28
      %p190 = scmp.lt.s32.totalorder %s15, 2
      %s191 = scalar_select %p190, %s15, 2
      %s192 = smul.addr %s191, 2
      %s193 = smul.addr %s192, 8
      %s194 = scalar_lea.vmem %s1, %s193
      %p195 = pneg %p57
      %p196 = pneg %p54
      %p197 = scmp.lt.s32.totalorder %s15, 2
      %s198 = scalar_select %p197, %s15, 2
      %s199 = smul.addr %s198, 2
      %s200 = smul.addr %s199, 8
      %s201 = scalar_lea.vmem %s2, %s200
      %p202 = pneg %p83
      %p203 = pneg %p80
      %p204 = scmp.lt.s32.totalorder %s15, 2
      %s205 = scalar_select %p204, %s15, 2
      %s206 = smul.addr %s205, 2
      %s207 = smul.addr %s206, 8
      %s208 = scalar_lea.vmem %s3, %s207
      %p209 = pneg %p109
      %p210 = pneg %p106
      %p211 = pneg %p135
      %p212 = pneg %p132
      %p213 = scmp.lt.s32.totalorder %s15, 2
      %s214 = scalar_select %p213, %s15, 2
      %s215 = scalar_lea.vmem %s4, %s214
      %p216 = scmp.lt.s32.totalorder %s15, 2
      %s217 = scalar_select %p216, %s15, 2
      %s218 = smul.addr %s217, 2
      %s219 = smul.addr %s218, 8
      %s220 = scalar_lea.vmem %s1, %s219
      %p221 = scmp.lt.s32.totalorder %s15, 2
      %s222 = scalar_select %p221, %s15, 2
      %s223 = smul.addr %s222, 2
      %s224 = smul.addr %s223, 8
      %s225 = scalar_lea.vmem %s2, %s224
      %p226 = scmp.lt.s32.totalorder %s15, 2
      %s227 = scalar_select %p226, %s15, 2
      %s228 = smul.addr %s227, 2
      %s229 = smul.addr %s228, 8
      %s230 = scalar_lea.vmem %s3, %s229
      %p231 = scmp.lt.s32.totalorder %s15, 2
      %s232 = scalar_select %p231, %s15, 2
      %s233 = scalar_lea.vmem %s4, %s232
      %v234 = vld [vmem:[%s220] sm:$0xff]
      %v235 = vld [vmem:[%s220 + $0x8] sm:$0xff]
      %v236 = vld [vmem:[%s225] sm:$0xff]
      %v237 = vld [vmem:[%s225 + $0x8] sm:$0xff]
      %v238 = vld [vmem:[%s230] sm:$0xff]
      %v239 = vld [vmem:[%s230 + $0x8] sm:$0xff]
      %v240 = vld [vmem:[%s0] sm:$0xff]
      %v241 = vld [vmem:[%s0 + $0x8] sm:$0x33]
      %v242 = vunpack.c.l.bf16 %v240
      %v243 = vunpack.c.h.bf16 %v240
      %v244 = vunpack.c.l.bf16 %v241
      %v245 = vunpack.c.h.bf16 %v241
      %s246 = smul.u32 %s15, 8
      %v247 = vlaneseq
      %v248 = vshrl.u32 %v247, 7
      %v249 = vstv %s246
      %v250 = vadd.s32 %v249, %v248
      %vm251 = vcmp.lt.s32.totalorder %v250, 20
      %v252 = vsel %vm251, 1, 0
      %vm253 = vcmp.eq.s32.totalorder %v252, 1
      %v254 = vsel %vm253, %v234, 0.0
      %v255 = vsel %vm253, %v235, 0.0
      %v256 = vsel %vm253, %v236, 0.0
      %v257 = vsel %vm253, %v237, 0.0
      %v258 = vsel %vm253, %v238, 0.0
      %v259 = vsel %vm253, %v239, 0.0
      %v260 = vadd.f32 %v258, %v259
      %261 = vadd.xlane.f32.xlu0 %v260
      %v262 = vpop.xlane.xlu0 %261
      %vm263 = vcmp.gt.f32.partialorder %v262, 0.0
      %v264 = vsel %vm263, %v262, 1.0
      %v265 = vmul.f32 %v258, %v254
      %v266 = vmul.f32 %v259, %v255
      %vm269 = vcmp.lt.s32.totalorder %v265, 0
      %vm270 = vcmp.lt.s32.totalorder %v266, 0
      %v271 = vsel %vm269, 4294967295, 2147483648
      %v272 = vsel %vm270, 4294967295, 2147483648
      %v273 = vxor.u32 %v265, %v271
      %v274 = vxor.u32 %v266, %v272
      %v275 = vshra.s32 %v273, 31
      %v276 = vshra.s32 %v274, 31
      %vm277 = vcmp.eq.s32.totalorder %v275, 0
      %vm278 = vcmp.eq.s32.totalorder %v276, 0
      %v279 = vsel %vm277, 1, 0
      %v280 = vsel %vm278, 1, 0
      %v281 = vcvt.s32.f32 %v279
      %v282 = vcvt.s32.f32 %v280
      %v283 = vadd.f32 %v281, %v282
      %284 = vadd.xlane.f32.xlu0 %v283
      %v285 = vpop.xlane.xlu0 %284
      %vm286 = vcmp.ge.f32.partialorder 127.0, %v285
      %v287 = vsel %vm286, 2147483648, 0
      %v288 = vsub.f32 127.0, %v285
      %v289 = vsel %vm286, %v288, 127.0
      %v290 = vshra.s32 %v273, 30
      %v291 = vshra.s32 %v274, 30
      %v292 = vshra.s32 %v287, 30
      %vm293 = vcmp.eq.s32.totalorder %v290, %v292
      %vm294 = vcmp.eq.s32.totalorder %v291, %v292
      %v295 = vsel %vm293, 1, 0
      %v296 = vsel %vm294, 1, 0
      %v297 = vcvt.s32.f32 %v295
      %v298 = vcvt.s32.f32 %v296
      %v299 = vadd.f32 %v297, %v298
      %300 = vadd.xlane.f32.xlu0 %v299
      %v301 = vpop.xlane.xlu0 %300
      %vm302 = vcmp.ge.f32.partialorder %v289, %v301
      %v303 = vor.u32 %v287, 1073741824
      %v304 = vsel %vm302, %v303, %v287
      %v305 = vsub.f32 %v289, %v301
      %v306 = vsel %vm302, %v305, %v289
      %v307 = vshra.s32 %v273, 29
      %v308 = vshra.s32 %v274, 29
      %v309 = vshra.s32 %v304, 29
      %vm310 = vcmp.eq.s32.totalorder %v307, %v309
      %vm311 = vcmp.eq.s32.totalorder %v308, %v309
      %v312 = vsel %vm310, 1, 0
      %v313 = vsel %vm311, 1, 0
      %v314 = vcvt.s32.f32 %v312
      %v315 = vcvt.s32.f32 %v313
      %v316 = vadd.f32 %v314, %v315
      %317 = vadd.xlane.f32.xlu0 %v316
      %v318 = vpop.xlane.xlu0 %317
      %vm319 = vcmp.ge.f32.partialorder %v306, %v318
      %v320 = vor.u32 %v304, 536870912
      %v321 = vsel %vm319, %v320, %v304
      %v322 = vsub.f32 %v306, %v318
      %v323 = vsel %vm319, %v322, %v306
      %v324 = vshra.s32 %v273, 28
      %v325 = vshra.s32 %v274, 28
      %v326 = vshra.s32 %v321, 28
      %vm327 = vcmp.eq.s32.totalorder %v324, %v326
      %vm328 = vcmp.eq.s32.totalorder %v325, %v326
      %v329 = vsel %vm327, 1, 0
      %v330 = vsel %vm328, 1, 0
      %v331 = vcvt.s32.f32 %v329
      %v332 = vcvt.s32.f32 %v330
      %v333 = vadd.f32 %v331, %v332
      %334 = vadd.xlane.f32.xlu0 %v333
      %v335 = vpop.xlane.xlu0 %334
      %vm336 = vcmp.ge.f32.partialorder %v323, %v335
      %v337 = vor.u32 %v321, 268435456
      %v338 = vsel %vm336, %v337, %v321
      %v339 = vsub.f32 %v323, %v335
      %v340 = vsel %vm336, %v339, %v323
      %v341 = vshra.s32 %v273, 27
      %v342 = vshra.s32 %v274, 27
      %v343 = vshra.s32 %v338, 27
      %vm344 = vcmp.eq.s32.totalorder %v341, %v343
      %vm345 = vcmp.eq.s32.totalorder %v342, %v343
      %v346 = vsel %vm344, 1, 0
      %v347 = vsel %vm345, 1, 0
      %v348 = vcvt.s32.f32 %v346
      %v349 = vcvt.s32.f32 %v347
      %v350 = vadd.f32 %v348, %v349
      %351 = vadd.xlane.f32.xlu0 %v350
      %v352 = vpop.xlane.xlu0 %351
      %vm353 = vcmp.ge.f32.partialorder %v340, %v352
      %v354 = vor.u32 %v338, 134217728
      %v355 = vsel %vm353, %v354, %v338
      %v356 = vsub.f32 %v340, %v352
      %v357 = vsel %vm353, %v356, %v340
      %v358 = vshra.s32 %v273, 26
      %v359 = vshra.s32 %v274, 26
      %v360 = vshra.s32 %v355, 26
      %vm361 = vcmp.eq.s32.totalorder %v358, %v360
      %vm362 = vcmp.eq.s32.totalorder %v359, %v360
      %v363 = vsel %vm361, 1, 0
      %v364 = vsel %vm362, 1, 0
      %v365 = vcvt.s32.f32 %v363
      %v366 = vcvt.s32.f32 %v364
      %v367 = vadd.f32 %v365, %v366
      %368 = vadd.xlane.f32.xlu0 %v367
      %v369 = vpop.xlane.xlu0 %368
      %vm370 = vcmp.ge.f32.partialorder %v357, %v369
      %v371 = vor.u32 %v355, 67108864
      %v372 = vsel %vm370, %v371, %v355
      %v373 = vsub.f32 %v357, %v369
      %v374 = vsel %vm370, %v373, %v357
      %v375 = vshra.s32 %v273, 25
      %v376 = vshra.s32 %v274, 25
      %v377 = vshra.s32 %v372, 25
      %vm378 = vcmp.eq.s32.totalorder %v375, %v377
      %vm379 = vcmp.eq.s32.totalorder %v376, %v377
      %v380 = vsel %vm378, 1, 0
      %v381 = vsel %vm379, 1, 0
      %v382 = vcvt.s32.f32 %v380
      %v383 = vcvt.s32.f32 %v381
      %v384 = vadd.f32 %v382, %v383
      %385 = vadd.xlane.f32.xlu0 %v384
      %v386 = vpop.xlane.xlu0 %385
      %vm387 = vcmp.ge.f32.partialorder %v374, %v386
      %v388 = vor.u32 %v372, 33554432
      %v389 = vsel %vm387, %v388, %v372
      %v390 = vsub.f32 %v374, %v386
      %v391 = vsel %vm387, %v390, %v374
      %v392 = vshra.s32 %v273, 24
      %v393 = vshra.s32 %v274, 24
      %v394 = vshra.s32 %v389, 24
      %vm395 = vcmp.eq.s32.totalorder %v392, %v394
      %vm396 = vcmp.eq.s32.totalorder %v393, %v394
      %v397 = vsel %vm395, 1, 0
      %v398 = vsel %vm396, 1, 0
      %v399 = vcvt.s32.f32 %v397
      %v400 = vcvt.s32.f32 %v398
      %v401 = vadd.f32 %v399, %v400
      %402 = vadd.xlane.f32.xlu0 %v401
      %v403 = vpop.xlane.xlu0 %402
      %vm404 = vcmp.ge.f32.partialorder %v391, %v403
      %v405 = vor.u32 %v389, 16777216
      %v406 = vsel %vm404, %v405, %v389
      %v407 = vsub.f32 %v391, %v403
      %v408 = vsel %vm404, %v407, %v391
      %v409 = vshra.s32 %v273, 23
      %v410 = vshra.s32 %v274, 23
      %v411 = vshra.s32 %v406, 23
      %vm412 = vcmp.eq.s32.totalorder %v409, %v411
      %vm413 = vcmp.eq.s32.totalorder %v410, %v411
      %v414 = vsel %vm412, 1, 0
      %v415 = vsel %vm413, 1, 0
      %v416 = vcvt.s32.f32 %v414
      %v417 = vcvt.s32.f32 %v415
      %v418 = vadd.f32 %v416, %v417
      %419 = vadd.xlane.f32.xlu0 %v418
      %v420 = vpop.xlane.xlu0 %419
      %vm421 = vcmp.ge.f32.partialorder %v408, %v420
      %v422 = vor.u32 %v406, 8388608
      %v423 = vsel %vm421, %v422, %v406
      %v424 = vsub.f32 %v408, %v420
      %v425 = vsel %vm421, %v424, %v408
      %v426 = vshra.s32 %v273, 22
      %v427 = vshra.s32 %v274, 22
      %v428 = vshra.s32 %v423, 22
      %vm429 = vcmp.eq.s32.totalorder %v426, %v428
      %vm430 = vcmp.eq.s32.totalorder %v427, %v428
      %v431 = vsel %vm429, 1, 0
      %v432 = vsel %vm430, 1, 0
      %v433 = vcvt.s32.f32 %v431
      %v434 = vcvt.s32.f32 %v432
      %v435 = vadd.f32 %v433, %v434
      %436 = vadd.xlane.f32.xlu0 %v435
      %v437 = vpop.xlane.xlu0 %436
      %vm438 = vcmp.ge.f32.partialorder %v425, %v437
      %v439 = vor.u32 %v423, 4194304
      %v440 = vsel %vm438, %v439, %v423
      %v441 = vsub.f32 %v425, %v437
      %v442 = vsel %vm438, %v441, %v425
      %v443 = vshra.s32 %v273, 21
      %v444 = vshra.s32 %v274, 21
      %v445 = vshra.s32 %v440, 21
      %vm446 = vcmp.eq.s32.totalorder %v443, %v445
      %vm447 = vcmp.eq.s32.totalorder %v444, %v445
      %v448 = vsel %vm446, 1, 0
      %v449 = vsel %vm447, 1, 0
      %v450 = vcvt.s32.f32 %v448
      %v451 = vcvt.s32.f32 %v449
      %v452 = vadd.f32 %v450, %v451
      %453 = vadd.xlane.f32.xlu0 %v452
      %v454 = vpop.xlane.xlu0 %453
      %vm455 = vcmp.ge.f32.partialorder %v442, %v454
      %v456 = vor.u32 %v440, 2097152
      %v457 = vsel %vm455, %v456, %v440
      %v458 = vsub.f32 %v442, %v454
      %v459 = vsel %vm455, %v458, %v442
      %v460 = vshra.s32 %v273, 20
      %v461 = vshra.s32 %v274, 20
      %v462 = vshra.s32 %v457, 20
      %vm463 = vcmp.eq.s32.totalorder %v460, %v462
      %vm464 = vcmp.eq.s32.totalorder %v461, %v462
      %v465 = vsel %vm463, 1, 0
      %v466 = vsel %vm464, 1, 0
      %v467 = vcvt.s32.f32 %v465
      %v468 = vcvt.s32.f32 %v466
      %v469 = vadd.f32 %v467, %v468
      %470 = vadd.xlane.f32.xlu0 %v469
      %v471 = vpop.xlane.xlu0 %470
      %vm472 = vcmp.ge.f32.partialorder %v459, %v471
      %v473 = vor.u32 %v457, 1048576
      %v474 = vsel %vm472, %v473, %v457
      %v475 = vsub.f32 %v459, %v471
      %v476 = vsel %vm472, %v475, %v459
      %v477 = vshra.s32 %v273, 19
      %v478 = vshra.s32 %v274, 19
      %v479 = vshra.s32 %v474, 19
      %vm480 = vcmp.eq.s32.totalorder %v477, %v479
      %vm481 = vcmp.eq.s32.totalorder %v478, %v479
      %v482 = vsel %vm480, 1, 0
      %v483 = vsel %vm481, 1, 0
      %v484 = vcvt.s32.f32 %v482
      %v485 = vcvt.s32.f32 %v483
      %v486 = vadd.f32 %v484, %v485
      %487 = vadd.xlane.f32.xlu0 %v486
      %v488 = vpop.xlane.xlu0 %487
      %vm489 = vcmp.ge.f32.partialorder %v476, %v488
      %v490 = vor.u32 %v474, 524288
      %v491 = vsel %vm489, %v490, %v474
      %v492 = vsub.f32 %v476, %v488
      %v493 = vsel %vm489, %v492, %v476
      %v494 = vshra.s32 %v273, 18
      %v495 = vshra.s32 %v274, 18
      %v496 = vshra.s32 %v491, 18
      %vm497 = vcmp.eq.s32.totalorder %v494, %v496
      %vm498 = vcmp.eq.s32.totalorder %v495, %v496
      %v499 = vsel %vm497, 1, 0
      %v500 = vsel %vm498, 1, 0
      %v501 = vcvt.s32.f32 %v499
      %v502 = vcvt.s32.f32 %v500
      %v503 = vadd.f32 %v501, %v502
      %504 = vadd.xlane.f32.xlu0 %v503
      %v505 = vpop.xlane.xlu0 %504
      %vm506 = vcmp.ge.f32.partialorder %v493, %v505
      %v507 = vor.u32 %v491, 262144
      %v508 = vsel %vm506, %v507, %v491
      %v509 = vsub.f32 %v493, %v505
      %v510 = vsel %vm506, %v509, %v493
      %v511 = vshra.s32 %v273, 17
      %v512 = vshra.s32 %v274, 17
      %v513 = vshra.s32 %v508, 17
      %vm514 = vcmp.eq.s32.totalorder %v511, %v513
      %vm515 = vcmp.eq.s32.totalorder %v512, %v513
      %v516 = vsel %vm514, 1, 0
      %v517 = vsel %vm515, 1, 0
      %v518 = vcvt.s32.f32 %v516
      %v519 = vcvt.s32.f32 %v517
      %v520 = vadd.f32 %v518, %v519
      %521 = vadd.xlane.f32.xlu0 %v520
      %v522 = vpop.xlane.xlu0 %521
      %vm523 = vcmp.ge.f32.partialorder %v510, %v522
      %v524 = vor.u32 %v508, 131072
      %v525 = vsel %vm523, %v524, %v508
      %v526 = vsub.f32 %v510, %v522
      %v527 = vsel %vm523, %v526, %v510
      %v528 = vshra.s32 %v273, 16
      %v529 = vshra.s32 %v274, 16
      %v530 = vshra.s32 %v525, 16
      %vm531 = vcmp.eq.s32.totalorder %v528, %v530
      %vm532 = vcmp.eq.s32.totalorder %v529, %v530
      %v533 = vsel %vm531, 1, 0
      %v534 = vsel %vm532, 1, 0
      %v535 = vcvt.s32.f32 %v533
      %v536 = vcvt.s32.f32 %v534
      %v537 = vadd.f32 %v535, %v536
      %538 = vadd.xlane.f32.xlu0 %v537
      %v539 = vpop.xlane.xlu0 %538
      %vm540 = vcmp.ge.f32.partialorder %v527, %v539
      %v541 = vor.u32 %v525, 65536
      %v542 = vsel %vm540, %v541, %v525
      %v543 = vsub.f32 %v527, %v539
      %v544 = vsel %vm540, %v543, %v527
      %v545 = vshra.s32 %v273, 15
      %v546 = vshra.s32 %v274, 15
      %v547 = vshra.s32 %v542, 15
      %vm548 = vcmp.eq.s32.totalorder %v545, %v547
      %vm549 = vcmp.eq.s32.totalorder %v546, %v547
      %v550 = vsel %vm548, 1, 0
      %v551 = vsel %vm549, 1, 0
      %v552 = vcvt.s32.f32 %v550
      %v553 = vcvt.s32.f32 %v551
      %v554 = vadd.f32 %v552, %v553
      %555 = vadd.xlane.f32.xlu0 %v554
      %v556 = vpop.xlane.xlu0 %555
      %vm557 = vcmp.ge.f32.partialorder %v544, %v556
      %v558 = vor.u32 %v542, 32768
      %v559 = vsel %vm557, %v558, %v542
      %v560 = vsub.f32 %v544, %v556
      %v561 = vsel %vm557, %v560, %v544
      %v562 = vshra.s32 %v273, 14
      %v563 = vshra.s32 %v274, 14
      %v564 = vshra.s32 %v559, 14
      %vm565 = vcmp.eq.s32.totalorder %v562, %v564
      %vm566 = vcmp.eq.s32.totalorder %v563, %v564
      %v567 = vsel %vm565, 1, 0
      %v568 = vsel %vm566, 1, 0
      %v569 = vcvt.s32.f32 %v567
      %v570 = vcvt.s32.f32 %v568
      %v571 = vadd.f32 %v569, %v570
      %572 = vadd.xlane.f32.xlu0 %v571
      %v573 = vpop.xlane.xlu0 %572
      %vm574 = vcmp.ge.f32.partialorder %v561, %v573
      %v575 = vor.u32 %v559, 16384
      %v576 = vsel %vm574, %v575, %v559
      %v577 = vsub.f32 %v561, %v573
      %v578 = vsel %vm574, %v577, %v561
      %v579 = vshra.s32 %v273, 13
      %v580 = vshra.s32 %v274, 13
      %v581 = vshra.s32 %v576, 13
      %vm582 = vcmp.eq.s32.totalorder %v579, %v581
      %vm583 = vcmp.eq.s32.totalorder %v580, %v581
      %v584 = vsel %vm582, 1, 0
      %v585 = vsel %vm583, 1, 0
      %v586 = vcvt.s32.f32 %v584
      %v587 = vcvt.s32.f32 %v585
      %v588 = vadd.f32 %v586, %v587
      %589 = vadd.xlane.f32.xlu0 %v588
      %v590 = vpop.xlane.xlu0 %589
      %vm591 = vcmp.ge.f32.partialorder %v578, %v590
      %v592 = vor.u32 %v576, 8192
      %v593 = vsel %vm591, %v592, %v576
      %v594 = vsub.f32 %v578, %v590
      %v595 = vsel %vm591, %v594, %v578
      %v596 = vshra.s32 %v273, 12
      %v597 = vshra.s32 %v274, 12
      %v598 = vshra.s32 %v593, 12
      %vm599 = vcmp.eq.s32.totalorder %v596, %v598
      %vm600 = vcmp.eq.s32.totalorder %v597, %v598
      %v601 = vsel %vm599, 1, 0
      %v602 = vsel %vm600, 1, 0
      %v603 = vcvt.s32.f32 %v601
      %v604 = vcvt.s32.f32 %v602
      %v605 = vadd.f32 %v603, %v604
      %606 = vadd.xlane.f32.xlu0 %v605
      %v607 = vpop.xlane.xlu0 %606
      %vm608 = vcmp.ge.f32.partialorder %v595, %v607
      %v609 = vor.u32 %v593, 4096
      %v610 = vsel %vm608, %v609, %v593
      %v611 = vsub.f32 %v595, %v607
      %v612 = vsel %vm608, %v611, %v595
      %v613 = vshra.s32 %v273, 11
      %v614 = vshra.s32 %v274, 11
      %v615 = vshra.s32 %v610, 11
      %vm616 = vcmp.eq.s32.totalorder %v613, %v615
      %vm617 = vcmp.eq.s32.totalorder %v614, %v615
      %v618 = vsel %vm616, 1, 0
      %v619 = vsel %vm617, 1, 0
      %v620 = vcvt.s32.f32 %v618
      %v621 = vcvt.s32.f32 %v619
      %v622 = vadd.f32 %v620, %v621
      %623 = vadd.xlane.f32.xlu0 %v622
      %v624 = vpop.xlane.xlu0 %623
      %vm625 = vcmp.ge.f32.partialorder %v612, %v624
      %v626 = vor.u32 %v610, 2048
      %v627 = vsel %vm625, %v626, %v610
      %v628 = vsub.f32 %v612, %v624
      %v629 = vsel %vm625, %v628, %v612
      %v630 = vshra.s32 %v273, 10
      %v631 = vshra.s32 %v274, 10
      %v632 = vshra.s32 %v627, 10
      %vm633 = vcmp.eq.s32.totalorder %v630, %v632
      %vm634 = vcmp.eq.s32.totalorder %v631, %v632
      %v635 = vsel %vm633, 1, 0
      %v636 = vsel %vm634, 1, 0
      %v637 = vcvt.s32.f32 %v635
      %v638 = vcvt.s32.f32 %v636
      %v639 = vadd.f32 %v637, %v638
      %640 = vadd.xlane.f32.xlu0 %v639
      %v641 = vpop.xlane.xlu0 %640
      %vm642 = vcmp.ge.f32.partialorder %v629, %v641
      %v643 = vor.u32 %v627, 1024
      %v644 = vsel %vm642, %v643, %v627
      %v645 = vsub.f32 %v629, %v641
      %v646 = vsel %vm642, %v645, %v629
      %v647 = vshra.s32 %v273, 9
      %v648 = vshra.s32 %v274, 9
      %v649 = vshra.s32 %v644, 9
      %vm650 = vcmp.eq.s32.totalorder %v647, %v649
      %vm651 = vcmp.eq.s32.totalorder %v648, %v649
      %v652 = vsel %vm650, 1, 0
      %v653 = vsel %vm651, 1, 0
      %v654 = vcvt.s32.f32 %v652
      %v655 = vcvt.s32.f32 %v653
      %v656 = vadd.f32 %v654, %v655
      %657 = vadd.xlane.f32.xlu0 %v656
      %v658 = vpop.xlane.xlu0 %657
      %vm659 = vcmp.ge.f32.partialorder %v646, %v658
      %v660 = vor.u32 %v644, 512
      %v661 = vsel %vm659, %v660, %v644
      %v662 = vsub.f32 %v646, %v658
      %v663 = vsel %vm659, %v662, %v646
      %v664 = vshra.s32 %v273, 8
      %v665 = vshra.s32 %v274, 8
      %v666 = vshra.s32 %v661, 8
      %vm667 = vcmp.eq.s32.totalorder %v664, %v666
      %vm668 = vcmp.eq.s32.totalorder %v665, %v666
      %v669 = vsel %vm667, 1, 0
      %v670 = vsel %vm668, 1, 0
      %v671 = vcvt.s32.f32 %v669
      %v672 = vcvt.s32.f32 %v670
      %v673 = vadd.f32 %v671, %v672
      %674 = vadd.xlane.f32.xlu0 %v673
      %v675 = vpop.xlane.xlu0 %674
      %vm676 = vcmp.ge.f32.partialorder %v663, %v675
      %v677 = vor.u32 %v661, 256
      %v678 = vsel %vm676, %v677, %v661
      %v679 = vsub.f32 %v663, %v675
      %v680 = vsel %vm676, %v679, %v663
      %v681 = vshra.s32 %v273, 7
      %v682 = vshra.s32 %v274, 7
      %v683 = vshra.s32 %v678, 7
      %vm684 = vcmp.eq.s32.totalorder %v681, %v683
      %vm685 = vcmp.eq.s32.totalorder %v682, %v683
      %v686 = vsel %vm684, 1, 0
      %v687 = vsel %vm685, 1, 0
      %v688 = vcvt.s32.f32 %v686
      %v689 = vcvt.s32.f32 %v687
      %v690 = vadd.f32 %v688, %v689
      %691 = vadd.xlane.f32.xlu0 %v690
      %v692 = vpop.xlane.xlu0 %691
      %vm693 = vcmp.ge.f32.partialorder %v680, %v692
      %v694 = vor.u32 %v678, 128
      %v695 = vsel %vm693, %v694, %v678
      %v696 = vsub.f32 %v680, %v692
      %v697 = vsel %vm693, %v696, %v680
      %v698 = vshra.s32 %v273, 6
      %v699 = vshra.s32 %v274, 6
      %v700 = vshra.s32 %v695, 6
      %vm701 = vcmp.eq.s32.totalorder %v698, %v700
      %vm702 = vcmp.eq.s32.totalorder %v699, %v700
      %v703 = vsel %vm701, 1, 0
      %v704 = vsel %vm702, 1, 0
      %v705 = vcvt.s32.f32 %v703
      %v706 = vcvt.s32.f32 %v704
      %v707 = vadd.f32 %v705, %v706
      %708 = vadd.xlane.f32.xlu0 %v707
      %v709 = vpop.xlane.xlu0 %708
      %vm710 = vcmp.ge.f32.partialorder %v697, %v709
      %v711 = vor.u32 %v695, 64
      %v712 = vsel %vm710, %v711, %v695
      %v713 = vsub.f32 %v697, %v709
      %v714 = vsel %vm710, %v713, %v697
      %v715 = vshra.s32 %v273, 5
      %v716 = vshra.s32 %v274, 5
      %v717 = vshra.s32 %v712, 5
      %vm718 = vcmp.eq.s32.totalorder %v715, %v717
      %vm719 = vcmp.eq.s32.totalorder %v716, %v717
      %v720 = vsel %vm718, 1, 0
      %v721 = vsel %vm719, 1, 0
      %v722 = vcvt.s32.f32 %v720
      %v723 = vcvt.s32.f32 %v721
      %v724 = vadd.f32 %v722, %v723
      %725 = vadd.xlane.f32.xlu0 %v724
      %v726 = vpop.xlane.xlu0 %725
      %vm727 = vcmp.ge.f32.partialorder %v714, %v726
      %v728 = vor.u32 %v712, 32
      %v729 = vsel %vm727, %v728, %v712
      %v730 = vsub.f32 %v714, %v726
      %v731 = vsel %vm727, %v730, %v714
      %v732 = vshra.s32 %v273, 4
      %v733 = vshra.s32 %v274, 4
      %v734 = vshra.s32 %v729, 4
      %vm735 = vcmp.eq.s32.totalorder %v732, %v734
      %vm736 = vcmp.eq.s32.totalorder %v733, %v734
      %v737 = vsel %vm735, 1, 0
      %v738 = vsel %vm736, 1, 0
      %v739 = vcvt.s32.f32 %v737
      %v740 = vcvt.s32.f32 %v738
      %v741 = vadd.f32 %v739, %v740
      %742 = vadd.xlane.f32.xlu0 %v741
      %v743 = vpop.xlane.xlu0 %742
      %vm744 = vcmp.ge.f32.partialorder %v731, %v743
      %v745 = vor.u32 %v729, 16
      %v746 = vsel %vm744, %v745, %v729
      %v747 = vsub.f32 %v731, %v743
      %v748 = vsel %vm744, %v747, %v731
      %v749 = vshra.s32 %v273, 3
      %v750 = vshra.s32 %v274, 3
      %v751 = vshra.s32 %v746, 3
      %vm752 = vcmp.eq.s32.totalorder %v749, %v751
      %vm753 = vcmp.eq.s32.totalorder %v750, %v751
      %v754 = vsel %vm752, 1, 0
      %v755 = vsel %vm753, 1, 0
      %v756 = vcvt.s32.f32 %v754
      %v757 = vcvt.s32.f32 %v755
      %v758 = vadd.f32 %v756, %v757
      %759 = vadd.xlane.f32.xlu0 %v758
      %v760 = vpop.xlane.xlu0 %759
      %vm761 = vcmp.ge.f32.partialorder %v748, %v760
      %v762 = vor.u32 %v746, 8
      %v763 = vsel %vm761, %v762, %v746
      %v764 = vsub.f32 %v748, %v760
      %v765 = vsel %vm761, %v764, %v748
      %v766 = vshra.s32 %v273, 2
      %v767 = vshra.s32 %v274, 2
      %v768 = vshra.s32 %v763, 2
      %vm769 = vcmp.eq.s32.totalorder %v766, %v768
      %vm770 = vcmp.eq.s32.totalorder %v767, %v768
      %v771 = vsel %vm769, 1, 0
      %v772 = vsel %vm770, 1, 0
      %v773 = vcvt.s32.f32 %v771
      %v774 = vcvt.s32.f32 %v772
      %v775 = vadd.f32 %v773, %v774
      %776 = vadd.xlane.f32.xlu0 %v775
      %v777 = vpop.xlane.xlu0 %776
      %vm778 = vcmp.ge.f32.partialorder %v765, %v777
      %v779 = vor.u32 %v763, 4
      %v780 = vsel %vm778, %v779, %v763
      %v781 = vsub.f32 %v765, %v777
      %v782 = vsel %vm778, %v781, %v765
      %v783 = vshra.s32 %v273, 1
      %v784 = vshra.s32 %v274, 1
      %v785 = vshra.s32 %v780, 1
      %vm786 = vcmp.eq.s32.totalorder %v783, %v785
      %vm787 = vcmp.eq.s32.totalorder %v784, %v785
      %v788 = vsel %vm786, 1, 0
      %v789 = vsel %vm787, 1, 0
      %v790 = vcvt.s32.f32 %v788
      %v791 = vcvt.s32.f32 %v789
      %v792 = vadd.f32 %v790, %v791
      %793 = vadd.xlane.f32.xlu0 %v792
      %v794 = vpop.xlane.xlu0 %793
      %vm795 = vcmp.ge.f32.partialorder %v782, %v794
      %v796 = vor.u32 %v780, 2
      %v797 = vsel %vm795, %v796, %v780
      %v798 = vsub.f32 %v782, %v794
      %v799 = vsel %vm795, %v798, %v782
      %vm800 = vcmp.eq.s32.totalorder %v273, %v797
      %vm801 = vcmp.eq.s32.totalorder %v274, %v797
      %v802 = vsel %vm800, 1, 0
      %v803 = vsel %vm801, 1, 0
      %v804 = vcvt.s32.f32 %v802
      %v805 = vcvt.s32.f32 %v803
      %v806 = vadd.f32 %v804, %v805
      %807 = vadd.xlane.f32.xlu0 %v806
      %v808 = vpop.xlane.xlu0 %807
      %vm809 = vcmp.ge.f32.partialorder %v799, %v808
      %v810 = vor.u32 %v797, 1
      %v811 = vsel %vm809, %v810, %v797
      %vm812 = vcmp.lt.s32.totalorder %v811, 0
      %v813 = vxor.u32 %v811, 2147483648
      %v814 = vxor.u32 %v811, 4294967295
      %v815 = vsel %vm812, %v813, %v814
      %v817 = vsel %vm263, %v815, 0.0
      %v818 = vmul.f32 %v258, %v256
      %v819 = vmul.f32 %v259, %v257
      %vm822 = vcmp.lt.s32.totalorder %v818, 0
      %vm823 = vcmp.lt.s32.totalorder %v819, 0
      %v824 = vsel %vm822, 4294967295, 2147483648
      %v825 = vsel %vm823, 4294967295, 2147483648
      %v826 = vxor.u32 %v818, %v824
      %v827 = vxor.u32 %v819, %v825
      %v828 = vshra.s32 %v826, 31
      %v829 = vshra.s32 %v827, 31
      %vm830 = vcmp.eq.s32.totalorder %v828, 0
      %vm831 = vcmp.eq.s32.totalorder %v829, 0
      %v832 = vsel %vm830, 1, 0
      %v833 = vsel %vm831, 1, 0
      %v834 = vcvt.s32.f32 %v832
      %v835 = vcvt.s32.f32 %v833
      %v836 = vadd.f32 %v834, %v835
      %837 = vadd.xlane.f32.xlu0 %v836
      %v838 = vpop.xlane.xlu0 %837
      %vm839 = vcmp.ge.f32.partialorder 127.0, %v838
      %v840 = vsel %vm839, 2147483648, 0
      %v841 = vsub.f32 127.0, %v838
      %v842 = vsel %vm839, %v841, 127.0
      %v843 = vshra.s32 %v826, 30
      %v844 = vshra.s32 %v827, 30
      %v845 = vshra.s32 %v840, 30
      %vm846 = vcmp.eq.s32.totalorder %v843, %v845
      %vm847 = vcmp.eq.s32.totalorder %v844, %v845
      %v848 = vsel %vm846, 1, 0
      %v849 = vsel %vm847, 1, 0
      %v850 = vcvt.s32.f32 %v848
      %v851 = vcvt.s32.f32 %v849
      %v852 = vadd.f32 %v850, %v851
      %853 = vadd.xlane.f32.xlu0 %v852
      %v854 = vpop.xlane.xlu0 %853
      %vm855 = vcmp.ge.f32.partialorder %v842, %v854
      %v856 = vor.u32 %v840, 1073741824
      %v857 = vsel %vm855, %v856, %v840
      %v858 = vsub.f32 %v842, %v854
      %v859 = vsel %vm855, %v858, %v842
      %v860 = vshra.s32 %v826, 29
      %v861 = vshra.s32 %v827, 29
      %v862 = vshra.s32 %v857, 29
      %vm863 = vcmp.eq.s32.totalorder %v860, %v862
      %vm864 = vcmp.eq.s32.totalorder %v861, %v862
      %v865 = vsel %vm863, 1, 0
      %v866 = vsel %vm864, 1, 0
      %v867 = vcvt.s32.f32 %v865
      %v868 = vcvt.s32.f32 %v866
      %v869 = vadd.f32 %v867, %v868
      %870 = vadd.xlane.f32.xlu0 %v869
      %v871 = vpop.xlane.xlu0 %870
      %vm872 = vcmp.ge.f32.partialorder %v859, %v871
      %v873 = vor.u32 %v857, 536870912
      %v874 = vsel %vm872, %v873, %v857
      %v875 = vsub.f32 %v859, %v871
      %v876 = vsel %vm872, %v875, %v859
      %v877 = vshra.s32 %v826, 28
      %v878 = vshra.s32 %v827, 28
      %v879 = vshra.s32 %v874, 28
      %vm880 = vcmp.eq.s32.totalorder %v877, %v879
      %vm881 = vcmp.eq.s32.totalorder %v878, %v879
      %v882 = vsel %vm880, 1, 0
      %v883 = vsel %vm881, 1, 0
      %v884 = vcvt.s32.f32 %v882
      %v885 = vcvt.s32.f32 %v883
      %v886 = vadd.f32 %v884, %v885
      %887 = vadd.xlane.f32.xlu0 %v886
      %v888 = vpop.xlane.xlu0 %887
      %vm889 = vcmp.ge.f32.partialorder %v876, %v888
      %v890 = vor.u32 %v874, 268435456
      %v891 = vsel %vm889, %v890, %v874
      %v892 = vsub.f32 %v876, %v888
      %v893 = vsel %vm889, %v892, %v876
      %v894 = vshra.s32 %v826, 27
      %v895 = vshra.s32 %v827, 27
      %v896 = vshra.s32 %v891, 27
      %vm897 = vcmp.eq.s32.totalorder %v894, %v896
      %vm898 = vcmp.eq.s32.totalorder %v895, %v896
      %v899 = vsel %vm897, 1, 0
      %v900 = vsel %vm898, 1, 0
      %v901 = vcvt.s32.f32 %v899
      %v902 = vcvt.s32.f32 %v900
      %v903 = vadd.f32 %v901, %v902
      %904 = vadd.xlane.f32.xlu0 %v903
      %v905 = vpop.xlane.xlu0 %904
      %vm906 = vcmp.ge.f32.partialorder %v893, %v905
      %v907 = vor.u32 %v891, 134217728
      %v908 = vsel %vm906, %v907, %v891
      %v909 = vsub.f32 %v893, %v905
      %v910 = vsel %vm906, %v909, %v893
      %v911 = vshra.s32 %v826, 26
      %v912 = vshra.s32 %v827, 26
      %v913 = vshra.s32 %v908, 26
      %vm914 = vcmp.eq.s32.totalorder %v911, %v913
      %vm915 = vcmp.eq.s32.totalorder %v912, %v913
      %v916 = vsel %vm914, 1, 0
      %v917 = vsel %vm915, 1, 0
      %v918 = vcvt.s32.f32 %v916
      %v919 = vcvt.s32.f32 %v917
      %v920 = vadd.f32 %v918, %v919
      %921 = vadd.xlane.f32.xlu0 %v920
      %v922 = vpop.xlane.xlu0 %921
      %vm923 = vcmp.ge.f32.partialorder %v910, %v922
      %v924 = vor.u32 %v908, 67108864
      %v925 = vsel %vm923, %v924, %v908
      %v926 = vsub.f32 %v910, %v922
      %v927 = vsel %vm923, %v926, %v910
      %v928 = vshra.s32 %v826, 25
      %v929 = vshra.s32 %v827, 25
      %v930 = vshra.s32 %v925, 25
      %vm931 = vcmp.eq.s32.totalorder %v928, %v930
      %vm932 = vcmp.eq.s32.totalorder %v929, %v930
      %v933 = vsel %vm931, 1, 0
      %v934 = vsel %vm932, 1, 0
      %v935 = vcvt.s32.f32 %v933
      %v936 = vcvt.s32.f32 %v934
      %v937 = vadd.f32 %v935, %v936
      %938 = vadd.xlane.f32.xlu0 %v937
      %v939 = vpop.xlane.xlu0 %938
      %vm940 = vcmp.ge.f32.partialorder %v927, %v939
      %v941 = vor.u32 %v925, 33554432
      %v942 = vsel %vm940, %v941, %v925
      %v943 = vsub.f32 %v927, %v939
      %v944 = vsel %vm940, %v943, %v927
      %v945 = vshra.s32 %v826, 24
      %v946 = vshra.s32 %v827, 24
      %v947 = vshra.s32 %v942, 24
      %vm948 = vcmp.eq.s32.totalorder %v945, %v947
      %vm949 = vcmp.eq.s32.totalorder %v946, %v947
      %v950 = vsel %vm948, 1, 0
      %v951 = vsel %vm949, 1, 0
      %v952 = vcvt.s32.f32 %v950
      %v953 = vcvt.s32.f32 %v951
      %v954 = vadd.f32 %v952, %v953
      %955 = vadd.xlane.f32.xlu0 %v954
      %v956 = vpop.xlane.xlu0 %955
      %vm957 = vcmp.ge.f32.partialorder %v944, %v956
      %v958 = vor.u32 %v942, 16777216
      %v959 = vsel %vm957, %v958, %v942
      %v960 = vsub.f32 %v944, %v956
      %v961 = vsel %vm957, %v960, %v944
      %v962 = vshra.s32 %v826, 23
      %v963 = vshra.s32 %v827, 23
      %v964 = vshra.s32 %v959, 23
      %vm965 = vcmp.eq.s32.totalorder %v962, %v964
      %vm966 = vcmp.eq.s32.totalorder %v963, %v964
      %v967 = vsel %vm965, 1, 0
      %v968 = vsel %vm966, 1, 0
      %v969 = vcvt.s32.f32 %v967
      %v970 = vcvt.s32.f32 %v968
      %v971 = vadd.f32 %v969, %v970
      %972 = vadd.xlane.f32.xlu0 %v971
      %v973 = vpop.xlane.xlu0 %972
      %vm974 = vcmp.ge.f32.partialorder %v961, %v973
      %v975 = vor.u32 %v959, 8388608
      %v976 = vsel %vm974, %v975, %v959
      %v977 = vsub.f32 %v961, %v973
      %v978 = vsel %vm974, %v977, %v961
      %v979 = vshra.s32 %v826, 22
      %v980 = vshra.s32 %v827, 22
      %v981 = vshra.s32 %v976, 22
      %vm982 = vcmp.eq.s32.totalorder %v979, %v981
      %vm983 = vcmp.eq.s32.totalorder %v980, %v981
      %v984 = vsel %vm982, 1, 0
      %v985 = vsel %vm983, 1, 0
      %v986 = vcvt.s32.f32 %v984
      %v987 = vcvt.s32.f32 %v985
      %v988 = vadd.f32 %v986, %v987
      %989 = vadd.xlane.f32.xlu0 %v988
      %v990 = vpop.xlane.xlu0 %989
      %vm991 = vcmp.ge.f32.partialorder %v978, %v990
      %v992 = vor.u32 %v976, 4194304
      %v993 = vsel %vm991, %v992, %v976
      %v994 = vsub.f32 %v978, %v990
      %v995 = vsel %vm991, %v994, %v978
      %v996 = vshra.s32 %v826, 21
      %v997 = vshra.s32 %v827, 21
      %v998 = vshra.s32 %v993, 21
      %vm999 = vcmp.eq.s32.totalorder %v996, %v998
      %vm1000 = vcmp.eq.s32.totalorder %v997, %v998
      %v1001 = vsel %vm999, 1, 0
      %v1002 = vsel %vm1000, 1, 0
      %v1003 = vcvt.s32.f32 %v1001
      %v1004 = vcvt.s32.f32 %v1002
      %v1005 = vadd.f32 %v1003, %v1004
      %1006 = vadd.xlane.f32.xlu0 %v1005
      %v1007 = vpop.xlane.xlu0 %1006
      %vm1008 = vcmp.ge.f32.partialorder %v995, %v1007
      %v1009 = vor.u32 %v993, 2097152
      %v1010 = vsel %vm1008, %v1009, %v993
      %v1011 = vsub.f32 %v995, %v1007
      %v1012 = vsel %vm1008, %v1011, %v995
      %v1013 = vshra.s32 %v826, 20
      %v1014 = vshra.s32 %v827, 20
      %v1015 = vshra.s32 %v1010, 20
      %vm1016 = vcmp.eq.s32.totalorder %v1013, %v1015
      %vm1017 = vcmp.eq.s32.totalorder %v1014, %v1015
      %v1018 = vsel %vm1016, 1, 0
      %v1019 = vsel %vm1017, 1, 0
      %v1020 = vcvt.s32.f32 %v1018
      %v1021 = vcvt.s32.f32 %v1019
      %v1022 = vadd.f32 %v1020, %v1021
      %1023 = vadd.xlane.f32.xlu0 %v1022
      %v1024 = vpop.xlane.xlu0 %1023
      %vm1025 = vcmp.ge.f32.partialorder %v1012, %v1024
      %v1026 = vor.u32 %v1010, 1048576
      %v1027 = vsel %vm1025, %v1026, %v1010
      %v1028 = vsub.f32 %v1012, %v1024
      %v1029 = vsel %vm1025, %v1028, %v1012
      %v1030 = vshra.s32 %v826, 19
      %v1031 = vshra.s32 %v827, 19
      %v1032 = vshra.s32 %v1027, 19
      %vm1033 = vcmp.eq.s32.totalorder %v1030, %v1032
      %vm1034 = vcmp.eq.s32.totalorder %v1031, %v1032
      %v1035 = vsel %vm1033, 1, 0
      %v1036 = vsel %vm1034, 1, 0
      %v1037 = vcvt.s32.f32 %v1035
      %v1038 = vcvt.s32.f32 %v1036
      %v1039 = vadd.f32 %v1037, %v1038
      %1040 = vadd.xlane.f32.xlu0 %v1039
      %v1041 = vpop.xlane.xlu0 %1040
      %vm1042 = vcmp.ge.f32.partialorder %v1029, %v1041
      %v1043 = vor.u32 %v1027, 524288
      %v1044 = vsel %vm1042, %v1043, %v1027
      %v1045 = vsub.f32 %v1029, %v1041
      %v1046 = vsel %vm1042, %v1045, %v1029
      %v1047 = vshra.s32 %v826, 18
      %v1048 = vshra.s32 %v827, 18
      %v1049 = vshra.s32 %v1044, 18
      %vm1050 = vcmp.eq.s32.totalorder %v1047, %v1049
      %vm1051 = vcmp.eq.s32.totalorder %v1048, %v1049
      %v1052 = vsel %vm1050, 1, 0
      %v1053 = vsel %vm1051, 1, 0
      %v1054 = vcvt.s32.f32 %v1052
      %v1055 = vcvt.s32.f32 %v1053
      %v1056 = vadd.f32 %v1054, %v1055
      %1057 = vadd.xlane.f32.xlu0 %v1056
      %v1058 = vpop.xlane.xlu0 %1057
      %vm1059 = vcmp.ge.f32.partialorder %v1046, %v1058
      %v1060 = vor.u32 %v1044, 262144
      %v1061 = vsel %vm1059, %v1060, %v1044
      %v1062 = vsub.f32 %v1046, %v1058
      %v1063 = vsel %vm1059, %v1062, %v1046
      %v1064 = vshra.s32 %v826, 17
      %v1065 = vshra.s32 %v827, 17
      %v1066 = vshra.s32 %v1061, 17
      %vm1067 = vcmp.eq.s32.totalorder %v1064, %v1066
      %vm1068 = vcmp.eq.s32.totalorder %v1065, %v1066
      %v1069 = vsel %vm1067, 1, 0
      %v1070 = vsel %vm1068, 1, 0
      %v1071 = vcvt.s32.f32 %v1069
      %v1072 = vcvt.s32.f32 %v1070
      %v1073 = vadd.f32 %v1071, %v1072
      %1074 = vadd.xlane.f32.xlu0 %v1073
      %v1075 = vpop.xlane.xlu0 %1074
      %vm1076 = vcmp.ge.f32.partialorder %v1063, %v1075
      %v1077 = vor.u32 %v1061, 131072
      %v1078 = vsel %vm1076, %v1077, %v1061
      %v1079 = vsub.f32 %v1063, %v1075
      %v1080 = vsel %vm1076, %v1079, %v1063
      %v1081 = vshra.s32 %v826, 16
      %v1082 = vshra.s32 %v827, 16
      %v1083 = vshra.s32 %v1078, 16
      %vm1084 = vcmp.eq.s32.totalorder %v1081, %v1083
      %vm1085 = vcmp.eq.s32.totalorder %v1082, %v1083
      %v1086 = vsel %vm1084, 1, 0
      %v1087 = vsel %vm1085, 1, 0
      %v1088 = vcvt.s32.f32 %v1086
      %v1089 = vcvt.s32.f32 %v1087
      %v1090 = vadd.f32 %v1088, %v1089
      %1091 = vadd.xlane.f32.xlu0 %v1090
      %v1092 = vpop.xlane.xlu0 %1091
      %vm1093 = vcmp.ge.f32.partialorder %v1080, %v1092
      %v1094 = vor.u32 %v1078, 65536
      %v1095 = vsel %vm1093, %v1094, %v1078
      %v1096 = vsub.f32 %v1080, %v1092
      %v1097 = vsel %vm1093, %v1096, %v1080
      %v1098 = vshra.s32 %v826, 15
      %v1099 = vshra.s32 %v827, 15
      %v1100 = vshra.s32 %v1095, 15
      %vm1101 = vcmp.eq.s32.totalorder %v1098, %v1100
      %vm1102 = vcmp.eq.s32.totalorder %v1099, %v1100
      %v1103 = vsel %vm1101, 1, 0
      %v1104 = vsel %vm1102, 1, 0
      %v1105 = vcvt.s32.f32 %v1103
      %v1106 = vcvt.s32.f32 %v1104
      %v1107 = vadd.f32 %v1105, %v1106
      %1108 = vadd.xlane.f32.xlu0 %v1107
      %v1109 = vpop.xlane.xlu0 %1108
      %vm1110 = vcmp.ge.f32.partialorder %v1097, %v1109
      %v1111 = vor.u32 %v1095, 32768
      %v1112 = vsel %vm1110, %v1111, %v1095
      %v1113 = vsub.f32 %v1097, %v1109
      %v1114 = vsel %vm1110, %v1113, %v1097
      %v1115 = vshra.s32 %v826, 14
      %v1116 = vshra.s32 %v827, 14
      %v1117 = vshra.s32 %v1112, 14
      %vm1118 = vcmp.eq.s32.totalorder %v1115, %v1117
      %vm1119 = vcmp.eq.s32.totalorder %v1116, %v1117
      %v1120 = vsel %vm1118, 1, 0
      %v1121 = vsel %vm1119, 1, 0
      %v1122 = vcvt.s32.f32 %v1120
      %v1123 = vcvt.s32.f32 %v1121
      %v1124 = vadd.f32 %v1122, %v1123
      %1125 = vadd.xlane.f32.xlu0 %v1124
      %v1126 = vpop.xlane.xlu0 %1125
      %vm1127 = vcmp.ge.f32.partialorder %v1114, %v1126
      %v1128 = vor.u32 %v1112, 16384
      %v1129 = vsel %vm1127, %v1128, %v1112
      %v1130 = vsub.f32 %v1114, %v1126
      %v1131 = vsel %vm1127, %v1130, %v1114
      %v1132 = vshra.s32 %v826, 13
      %v1133 = vshra.s32 %v827, 13
      %v1134 = vshra.s32 %v1129, 13
      %vm1135 = vcmp.eq.s32.totalorder %v1132, %v1134
      %vm1136 = vcmp.eq.s32.totalorder %v1133, %v1134
      %v1137 = vsel %vm1135, 1, 0
      %v1138 = vsel %vm1136, 1, 0
      %v1139 = vcvt.s32.f32 %v1137
      %v1140 = vcvt.s32.f32 %v1138
      %v1141 = vadd.f32 %v1139, %v1140
      %1142 = vadd.xlane.f32.xlu0 %v1141
      %v1143 = vpop.xlane.xlu0 %1142
      %vm1144 = vcmp.ge.f32.partialorder %v1131, %v1143
      %v1145 = vor.u32 %v1129, 8192
      %v1146 = vsel %vm1144, %v1145, %v1129
      %v1147 = vsub.f32 %v1131, %v1143
      %v1148 = vsel %vm1144, %v1147, %v1131
      %v1149 = vshra.s32 %v826, 12
      %v1150 = vshra.s32 %v827, 12
      %v1151 = vshra.s32 %v1146, 12
      %vm1152 = vcmp.eq.s32.totalorder %v1149, %v1151
      %vm1153 = vcmp.eq.s32.totalorder %v1150, %v1151
      %v1154 = vsel %vm1152, 1, 0
      %v1155 = vsel %vm1153, 1, 0
      %v1156 = vcvt.s32.f32 %v1154
      %v1157 = vcvt.s32.f32 %v1155
      %v1158 = vadd.f32 %v1156, %v1157
      %1159 = vadd.xlane.f32.xlu0 %v1158
      %v1160 = vpop.xlane.xlu0 %1159
      %vm1161 = vcmp.ge.f32.partialorder %v1148, %v1160
      %v1162 = vor.u32 %v1146, 4096
      %v1163 = vsel %vm1161, %v1162, %v1146
      %v1164 = vsub.f32 %v1148, %v1160
      %v1165 = vsel %vm1161, %v1164, %v1148
      %v1166 = vshra.s32 %v826, 11
      %v1167 = vshra.s32 %v827, 11
      %v1168 = vshra.s32 %v1163, 11
      %vm1169 = vcmp.eq.s32.totalorder %v1166, %v1168
      %vm1170 = vcmp.eq.s32.totalorder %v1167, %v1168
      %v1171 = vsel %vm1169, 1, 0
      %v1172 = vsel %vm1170, 1, 0
      %v1173 = vcvt.s32.f32 %v1171
      %v1174 = vcvt.s32.f32 %v1172
      %v1175 = vadd.f32 %v1173, %v1174
      %1176 = vadd.xlane.f32.xlu0 %v1175
      %v1177 = vpop.xlane.xlu0 %1176
      %vm1178 = vcmp.ge.f32.partialorder %v1165, %v1177
      %v1179 = vor.u32 %v1163, 2048
      %v1180 = vsel %vm1178, %v1179, %v1163
      %v1181 = vsub.f32 %v1165, %v1177
      %v1182 = vsel %vm1178, %v1181, %v1165
      %v1183 = vshra.s32 %v826, 10
      %v1184 = vshra.s32 %v827, 10
      %v1185 = vshra.s32 %v1180, 10
      %vm1186 = vcmp.eq.s32.totalorder %v1183, %v1185
      %vm1187 = vcmp.eq.s32.totalorder %v1184, %v1185
      %v1188 = vsel %vm1186, 1, 0
      %v1189 = vsel %vm1187, 1, 0
      %v1190 = vcvt.s32.f32 %v1188
      %v1191 = vcvt.s32.f32 %v1189
      %v1192 = vadd.f32 %v1190, %v1191
      %1193 = vadd.xlane.f32.xlu0 %v1192
      %v1194 = vpop.xlane.xlu0 %1193
      %vm1195 = vcmp.ge.f32.partialorder %v1182, %v1194
      %v1196 = vor.u32 %v1180, 1024
      %v1197 = vsel %vm1195, %v1196, %v1180
      %v1198 = vsub.f32 %v1182, %v1194
      %v1199 = vsel %vm1195, %v1198, %v1182
      %v1200 = vshra.s32 %v826, 9
      %v1201 = vshra.s32 %v827, 9
      %v1202 = vshra.s32 %v1197, 9
      %vm1203 = vcmp.eq.s32.totalorder %v1200, %v1202
      %vm1204 = vcmp.eq.s32.totalorder %v1201, %v1202
      %v1205 = vsel %vm1203, 1, 0
      %v1206 = vsel %vm1204, 1, 0
      %v1207 = vcvt.s32.f32 %v1205
      %v1208 = vcvt.s32.f32 %v1206
      %v1209 = vadd.f32 %v1207, %v1208
      %1210 = vadd.xlane.f32.xlu0 %v1209
      %v1211 = vpop.xlane.xlu0 %1210
      %vm1212 = vcmp.ge.f32.partialorder %v1199, %v1211
      %v1213 = vor.u32 %v1197, 512
      %v1214 = vsel %vm1212, %v1213, %v1197
      %v1215 = vsub.f32 %v1199, %v1211
      %v1216 = vsel %vm1212, %v1215, %v1199
      %v1217 = vshra.s32 %v826, 8
      %v1218 = vshra.s32 %v827, 8
      %v1219 = vshra.s32 %v1214, 8
      %vm1220 = vcmp.eq.s32.totalorder %v1217, %v1219
      %vm1221 = vcmp.eq.s32.totalorder %v1218, %v1219
      %v1222 = vsel %vm1220, 1, 0
      %v1223 = vsel %vm1221, 1, 0
      %v1224 = vcvt.s32.f32 %v1222
      %v1225 = vcvt.s32.f32 %v1223
      %v1226 = vadd.f32 %v1224, %v1225
      %1227 = vadd.xlane.f32.xlu0 %v1226
      %v1228 = vpop.xlane.xlu0 %1227
      %vm1229 = vcmp.ge.f32.partialorder %v1216, %v1228
      %v1230 = vor.u32 %v1214, 256
      %v1231 = vsel %vm1229, %v1230, %v1214
      %v1232 = vsub.f32 %v1216, %v1228
      %v1233 = vsel %vm1229, %v1232, %v1216
      %v1234 = vshra.s32 %v826, 7
      %v1235 = vshra.s32 %v827, 7
      %v1236 = vshra.s32 %v1231, 7
      %vm1237 = vcmp.eq.s32.totalorder %v1234, %v1236
      %vm1238 = vcmp.eq.s32.totalorder %v1235, %v1236
      %v1239 = vsel %vm1237, 1, 0
      %v1240 = vsel %vm1238, 1, 0
      %v1241 = vcvt.s32.f32 %v1239
      %v1242 = vcvt.s32.f32 %v1240
      %v1243 = vadd.f32 %v1241, %v1242
      %1244 = vadd.xlane.f32.xlu0 %v1243
      %v1245 = vpop.xlane.xlu0 %1244
      %vm1246 = vcmp.ge.f32.partialorder %v1233, %v1245
      %v1247 = vor.u32 %v1231, 128
      %v1248 = vsel %vm1246, %v1247, %v1231
      %v1249 = vsub.f32 %v1233, %v1245
      %v1250 = vsel %vm1246, %v1249, %v1233
      %v1251 = vshra.s32 %v826, 6
      %v1252 = vshra.s32 %v827, 6
      %v1253 = vshra.s32 %v1248, 6
      %vm1254 = vcmp.eq.s32.totalorder %v1251, %v1253
      %vm1255 = vcmp.eq.s32.totalorder %v1252, %v1253
      %v1256 = vsel %vm1254, 1, 0
      %v1257 = vsel %vm1255, 1, 0
      %v1258 = vcvt.s32.f32 %v1256
      %v1259 = vcvt.s32.f32 %v1257
      %v1260 = vadd.f32 %v1258, %v1259
      %1261 = vadd.xlane.f32.xlu0 %v1260
      %v1262 = vpop.xlane.xlu0 %1261
      %vm1263 = vcmp.ge.f32.partialorder %v1250, %v1262
      %v1264 = vor.u32 %v1248, 64
      %v1265 = vsel %vm1263, %v1264, %v1248
      %v1266 = vsub.f32 %v1250, %v1262
      %v1267 = vsel %vm1263, %v1266, %v1250
      %v1268 = vshra.s32 %v826, 5
      %v1269 = vshra.s32 %v827, 5
      %v1270 = vshra.s32 %v1265, 5
      %vm1271 = vcmp.eq.s32.totalorder %v1268, %v1270
      %vm1272 = vcmp.eq.s32.totalorder %v1269, %v1270
      %v1273 = vsel %vm1271, 1, 0
      %v1274 = vsel %vm1272, 1, 0
      %v1275 = vcvt.s32.f32 %v1273
      %v1276 = vcvt.s32.f32 %v1274
      %v1277 = vadd.f32 %v1275, %v1276
      %1278 = vadd.xlane.f32.xlu0 %v1277
      %v1279 = vpop.xlane.xlu0 %1278
      %vm1280 = vcmp.ge.f32.partialorder %v1267, %v1279
      %v1281 = vor.u32 %v1265, 32
      %v1282 = vsel %vm1280, %v1281, %v1265
      %v1283 = vsub.f32 %v1267, %v1279
      %v1284 = vsel %vm1280, %v1283, %v1267
      %v1285 = vshra.s32 %v826, 4
      %v1286 = vshra.s32 %v827, 4
      %v1287 = vshra.s32 %v1282, 4
      %vm1288 = vcmp.eq.s32.totalorder %v1285, %v1287
      %vm1289 = vcmp.eq.s32.totalorder %v1286, %v1287
      %v1290 = vsel %vm1288, 1, 0
      %v1291 = vsel %vm1289, 1, 0
      %v1292 = vcvt.s32.f32 %v1290
      %v1293 = vcvt.s32.f32 %v1291
      %v1294 = vadd.f32 %v1292, %v1293
      %1295 = vadd.xlane.f32.xlu0 %v1294
      %v1296 = vpop.xlane.xlu0 %1295
      %vm1297 = vcmp.ge.f32.partialorder %v1284, %v1296
      %v1298 = vor.u32 %v1282, 16
      %v1299 = vsel %vm1297, %v1298, %v1282
      %v1300 = vsub.f32 %v1284, %v1296
      %v1301 = vsel %vm1297, %v1300, %v1284
      %v1302 = vshra.s32 %v826, 3
      %v1303 = vshra.s32 %v827, 3
      %v1304 = vshra.s32 %v1299, 3
      %vm1305 = vcmp.eq.s32.totalorder %v1302, %v1304
      %vm1306 = vcmp.eq.s32.totalorder %v1303, %v1304
      %v1307 = vsel %vm1305, 1, 0
      %v1308 = vsel %vm1306, 1, 0
      %v1309 = vcvt.s32.f32 %v1307
      %v1310 = vcvt.s32.f32 %v1308
      %v1311 = vadd.f32 %v1309, %v1310
      %1312 = vadd.xlane.f32.xlu0 %v1311
      %v1313 = vpop.xlane.xlu0 %1312
      %vm1314 = vcmp.ge.f32.partialorder %v1301, %v1313
      %v1315 = vor.u32 %v1299, 8
      %v1316 = vsel %vm1314, %v1315, %v1299
      %v1317 = vsub.f32 %v1301, %v1313
      %v1318 = vsel %vm1314, %v1317, %v1301
      %v1319 = vshra.s32 %v826, 2
      %v1320 = vshra.s32 %v827, 2
      %v1321 = vshra.s32 %v1316, 2
      %vm1322 = vcmp.eq.s32.totalorder %v1319, %v1321
      %vm1323 = vcmp.eq.s32.totalorder %v1320, %v1321
      %v1324 = vsel %vm1322, 1, 0
      %v1325 = vsel %vm1323, 1, 0
      %v1326 = vcvt.s32.f32 %v1324
      %v1327 = vcvt.s32.f32 %v1325
      %v1328 = vadd.f32 %v1326, %v1327
      %1329 = vadd.xlane.f32.xlu0 %v1328
      %v1330 = vpop.xlane.xlu0 %1329
      %vm1331 = vcmp.ge.f32.partialorder %v1318, %v1330
      %v1332 = vor.u32 %v1316, 4
      %v1333 = vsel %vm1331, %v1332, %v1316
      %v1334 = vsub.f32 %v1318, %v1330
      %v1335 = vsel %vm1331, %v1334, %v1318
      %v1336 = vshra.s32 %v826, 1
      %v1337 = vshra.s32 %v827, 1
      %v1338 = vshra.s32 %v1333, 1
      %vm1339 = vcmp.eq.s32.totalorder %v1336, %v1338
      %vm1340 = vcmp.eq.s32.totalorder %v1337, %v1338
      %v1341 = vsel %vm1339, 1, 0
      %v1342 = vsel %vm1340, 1, 0
      %v1343 = vcvt.s32.f32 %v1341
      %v1344 = vcvt.s32.f32 %v1342
      %v1345 = vadd.f32 %v1343, %v1344
      %1346 = vadd.xlane.f32.xlu0 %v1345
      %v1347 = vpop.xlane.xlu0 %1346
      %vm1348 = vcmp.ge.f32.partialorder %v1335, %v1347
      %v1349 = vor.u32 %v1333, 2
      %v1350 = vsel %vm1348, %v1349, %v1333
      %v1351 = vsub.f32 %v1335, %v1347
      %v1352 = vsel %vm1348, %v1351, %v1335
      %vm1353 = vcmp.eq.s32.totalorder %v826, %v1350
      %vm1354 = vcmp.eq.s32.totalorder %v827, %v1350
      %v1355 = vsel %vm1353, 1, 0
      %v1356 = vsel %vm1354, 1, 0
      %v1357 = vcvt.s32.f32 %v1355
      %v1358 = vcvt.s32.f32 %v1356
      %v1359 = vadd.f32 %v1357, %v1358
      %1360 = vadd.xlane.f32.xlu0 %v1359
      %v1361 = vpop.xlane.xlu0 %1360
      %vm1362 = vcmp.ge.f32.partialorder %v1352, %v1361
      %v1363 = vor.u32 %v1350, 1
      %v1364 = vsel %vm1362, %v1363, %v1350
      %vm1365 = vcmp.lt.s32.totalorder %v1364, 0
      %v1366 = vxor.u32 %v1364, 2147483648
      %v1367 = vxor.u32 %v1364, 4294967295
      %v1368 = vsel %vm1365, %v1366, %v1367
      %v1370 = vsel %vm263, %v1368, 0.0
      %v1371 = vsub.f32 %v254, %v817
      %v1372 = vsub.f32 %v255, %v817
      %v1373 = vsub.f32 %v256, %v1370
      %v1374 = vsub.f32 %v257, %v1370
      %v1375 = vand.u32 2147483647, %v1371
      %v1376 = vand.u32 2147483647, %v1372
      %v1377 = vmul.f32 %v258, %v1375
      %v1378 = vmul.f32 %v259, %v1376
      %v1379 = vadd.f32 %v1377, %v1378
      %1380 = vadd.xlane.f32.xlu0 %v1379
      %v1381 = vpop.xlane.xlu0 %1380
      %v1382 = vrcp.pop %v264
      %v1383 = vmul.f32 %v1381, %v1382
      %v1384 = vmax.f32 %v1383, 1e-06
      %v1385 = vsel %vm263, %v1384, 1.0
      %v1386 = vand.u32 2147483647, %v1373
      %v1387 = vand.u32 2147483647, %v1374
      %v1388 = vmul.f32 %v258, %v1386
      %v1389 = vmul.f32 %v259, %v1387
      %v1390 = vadd.f32 %v1388, %v1389
      %1391 = vadd.xlane.f32.xlu0 %v1390
      %v1392 = vpop.xlane.xlu0 %1391
      %v1393 = vmul.f32 %v1392, %v1382
      %v1394 = vmax.f32 %v1393, 1e-06
      %v1395 = vsel %vm263, %v1394, 1.0
      %v1396 = vrcp.pop %v1385
      %v1397 = vmul.f32 1.0, %v1396
      %v1398 = vmul.f32 %v1371, %v1397
      %v1399 = vmul.f32 %v1372, %v1397
      %v1400 = vrcp.pop %v1395
      %v1401 = vmul.f32 1.0, %v1400
      %v1402 = vmul.f32 %v1373, %v1401
      %v1403 = vmul.f32 %v1374, %v1401
      %v1404 = vsub.f32 %v1398, %v1402
      %v1405 = vsub.f32 %v1399, %v1403
      %v1406 = vand.u32 2147483647, %v1404
      %v1407 = vand.u32 2147483647, %v1405
      %v1408 = vmul.f32 %v258, %v1406
      %v1409 = vmul.f32 %v259, %v1407
      %v1410 = vadd.f32 %v1408, %v1409
      %1411 = vadd.xlane.f32.xlu0 %v1410
      %v1412 = vpop.xlane.xlu0 %1411
      %v1413 = vrot.slane %v1412, 4
      %v1414 = vadd.f32 %v1412, %v1413
      %v1415 = vrot.slane %v1414, 2
      %v1416 = vadd.f32 %v1414, %v1415
      %v1417 = vrot.slane %v1416, 1
      %v1418 = vadd.f32 %v1416, %v1417
      %s1419 = vtos %v1418
      %vm1420 = vcmask 7168
      %v1421 = vsel %vm1420, %v262, 0.0
      %1422 = vadd.xlane.f32.xlu0 %v1421
      %v1423 = vpop.xlane.xlu0 %1422
      %v1424 = vrot.slane %v1423, 4
      %v1425 = vadd.f32 %v1423, %v1424
      %v1426 = vrot.slane %v1425, 2
      %v1427 = vadd.f32 %v1425, %v1426
      %v1428 = vrot.slane %v1427, 1
      %v1429 = vadd.f32 %v1427, %v1428
      %s1430 = vtos %v1429
      %vm1431 = vcmp.gt.f32.partialorder %v1398, 0.0
      %vm1432 = vcmp.gt.f32.partialorder %v1399, 0.0
      %v1433 = vsel %vm1431, %v1398, 1.0
      %v1434 = vsel %vm1432, %v1399, 1.0
      %v1435 = vlog2.pop %v1433
      %v1436 = vmul.f32 %v1435, 0.6931472
      %v1437 = vlog2.pop %v1434
      %v1438 = vmul.f32 %v1437, 0.6931472
      %vm1439 = vcmp.gt.f32.partialorder %v1402, 0.0
      %vm1440 = vcmp.gt.f32.partialorder %v1403, 0.0
      %v1441 = vsel %vm1439, %v1402, 1.0
      %v1442 = vsel %vm1440, %v1403, 1.0
      %v1443 = vlog2.pop %v1441
      %v1444 = vmul.f32 %v1443, 0.6931472
      %v1445 = vlog2.pop %v1442
      %v1446 = vmul.f32 %v1445, 0.6931472
      %v1447 = vsub.f32 %v1436, %v1444
      %v1448 = vsub.f32 %v1438, %v1446
      %v1449 = vmul.f32 %v258, %v1447
      %v1450 = vmul.f32 %v259, %v1448
      %1451 = vrot.lane.b32.xlu0 %v1449, 127
      %v1452 = vpop.permute.xlu0 %1451
      %1453 = vrot.lane.b32.xlu0 %v1450, 127
      %v1454 = vpop.permute.xlu0 %1453
      %v1455 = vlaneseq
      %v1456 = vand.u32 %v1455, 127
      %vm1457 = vcmp.lt.s32.totalorder %v1456, 127
      %v1458 = vsel %vm1457, %v1452, %v1454
      %v1459 = vsel %vm1457, %v1454, %v1452
      %1460 = vrot.lane.b32.xlu0 %v258, 127
      %v1461 = vpop.permute.xlu0 %1460
      %1462 = vrot.lane.b32.xlu0 %v259, 127
      %v1463 = vpop.permute.xlu0 %1462
      %v1464 = vsel %vm1457, %v1461, %v1463
      %v1465 = vsel %vm1457, %v1463, %v1461
      %v1466 = vsub.f32 %v1458, %v1449
      %v1467 = vsub.f32 %v1459, %v1450
      %v1468 = vand.u32 2147483647, %v1466
      %v1469 = vand.u32 2147483647, %v1467
      %v1470 = vmul.f32 %v1464, %v258
      %v1471 = vmul.f32 %v1465, %v259
      %v1472 = vlaneseq
      %v1473 = vshrl.u32 %v1472, 7
      %v1474 = vsub.s32 0, %v1473
      %v1475 = vrot.slane %v242, %v1474
      %v1476 = vlaneseq
      %v1477 = vshrl.u32 %v1476, 7
      %v1478 = vsub.s32 0, %v1477
      %v1479 = vrot.slane %v243, %v1478
      %v1480 = vmul.f32 %v1470, %v1475
      %v1481 = vmul.f32 %v1471, %v1479
      %v1482 = vmul.f32 %v1468, %v1480
      %v1483 = vmul.f32 %v1469, %v1481
      %1484 = vrot.lane.b32.xlu0 %v1449, 112
      %v1485 = vpop.permute.xlu0 %1484
      %1486 = vrot.lane.b32.xlu0 %v1450, 112
      %v1487 = vpop.permute.xlu0 %1486
      %vm1488 = vcmp.lt.s32.totalorder %v1456, 112
      %v1489 = vsel %vm1488, %v1485, %v1487
      %v1490 = vsel %vm1488, %v1487, %v1485
      %1491 = vrot.lane.b32.xlu0 %v258, 112
      %v1492 = vpop.permute.xlu0 %1491
      %1493 = vrot.lane.b32.xlu0 %v259, 112
      %v1494 = vpop.permute.xlu0 %1493
      %v1495 = vsel %vm1488, %v1492, %v1494
      %v1496 = vsel %vm1488, %v1494, %v1492
      %v1497 = vsub.f32 %v1489, %v1449
      %v1498 = vsub.f32 %v1490, %v1450
      %v1499 = vand.u32 2147483647, %v1497
      %v1500 = vand.u32 2147483647, %v1498
      %v1501 = vmul.f32 %v1495, %v258
      %v1502 = vmul.f32 %v1496, %v259
      %v1503 = vlaneseq
      %v1504 = vshrl.u32 %v1503, 7
      %v1505 = vsub.s32 4, %v1504
      %v1506 = vrot.slane %v242, %v1505
      %v1507 = vlaneseq
      %v1508 = vshrl.u32 %v1507, 7
      %v1509 = vsub.s32 4, %v1508
      %v1510 = vrot.slane %v243, %v1509
      %v1511 = vmul.f32 %v1501, %v1506
      %v1512 = vmul.f32 %v1502, %v1510
      %v1513 = vmul.f32 %v1499, %v1511
      %v1514 = vmul.f32 %v1500, %v1512
      %v1515 = vadd.f32 %v1482, %v1513
      %v1516 = vadd.f32 %v1483, %v1514
      %v1517 = vadd.f32 %v1515, %v1516
      %1518 = vadd.xlane.f32.xlu0 %v1517
      %v1519 = vpop.xlane.xlu0 %1518
      %v1520 = vrot.slane %v1519, 4
      %v1521 = vadd.f32 %v1519, %v1520
      %v1522 = vrot.slane %v1521, 2
      %v1523 = vadd.f32 %v1521, %v1522
      %v1524 = vrot.slane %v1523, 1
      %v1525 = vadd.f32 %v1523, %v1524
      %s1526 = vtos %v1525
      %v1527 = vlaneseq
      %v1528 = vshrl.u32 %v1527, 7
      %v1529 = vsub.s32 1, %v1528
      %v1530 = vrot.slane %v244, %v1529
      %v1531 = vlaneseq
      %v1532 = vshrl.u32 %v1531, 7
      %v1533 = vsub.s32 1, %v1532
      %v1534 = vrot.slane %v245, %v1533
      %v1535 = vmul.f32 %v258, %v1530
      %v1536 = vmul.f32 %v259, %v1534
      %v1537 = vadd.f32 %v1535, %v1536
      %1538 = vadd.xlane.f32.xlu0 %v1537
      %v1539 = vpop.xlane.xlu0 %1538
      %v1540 = vrot.slane %v1539, 4
      %v1541 = vadd.f32 %v1539, %v1540
      %v1542 = vrot.slane %v1541, 2
      %v1543 = vadd.f32 %v1541, %v1542
      %v1544 = vrot.slane %v1543, 1
      %v1545 = vadd.f32 %v1543, %v1544
      %s1546 = vtos %v1545
      %1547 = vrot.lane.b32.xlu0 %v1449, 126
      %v1548 = vpop.permute.xlu0 %1547
      %1549 = vrot.lane.b32.xlu0 %v1450, 126
      %v1550 = vpop.permute.xlu0 %1549
      %vm1551 = vcmp.lt.s32.totalorder %v1456, 126
      %v1552 = vsel %vm1551, %v1548, %v1550
      %v1553 = vsel %vm1551, %v1550, %v1548
      %1554 = vrot.lane.b32.xlu0 %v258, 126
      %v1555 = vpop.permute.xlu0 %1554
      %1556 = vrot.lane.b32.xlu0 %v259, 126
      %v1557 = vpop.permute.xlu0 %1556
      %v1558 = vsel %vm1551, %v1555, %v1557
      %v1559 = vsel %vm1551, %v1557, %v1555
      %v1560 = vsub.f32 %v1552, %v1449
      %v1561 = vsub.f32 %v1553, %v1450
      %v1562 = vand.u32 2147483647, %v1560
      %v1563 = vand.u32 2147483647, %v1561
      %v1564 = vmul.f32 %v1558, %v258
      %v1565 = vmul.f32 %v1559, %v259
      %v1566 = vlaneseq
      %v1567 = vshrl.u32 %v1566, 7
      %v1568 = vsub.s32 1, %v1567
      %v1569 = vrot.slane %v242, %v1568
      %v1570 = vlaneseq
      %v1571 = vshrl.u32 %v1570, 7
      %v1572 = vsub.s32 1, %v1571
      %v1573 = vrot.slane %v243, %v1572
      %v1574 = vmul.f32 %v1564, %v1569
      %v1575 = vmul.f32 %v1565, %v1573
      %v1576 = vmul.f32 %v1562, %v1574
      %v1577 = vmul.f32 %v1563, %v1575
      %1578 = vrot.lane.b32.xlu0 %v1449, 96
      %v1579 = vpop.permute.xlu0 %1578
      %1580 = vrot.lane.b32.xlu0 %v1450, 96
      %v1581 = vpop.permute.xlu0 %1580
      %vm1582 = vcmp.lt.s32.totalorder %v1456, 96
      %v1583 = vsel %vm1582, %v1579, %v1581
      %v1584 = vsel %vm1582, %v1581, %v1579
      %1585 = vrot.lane.b32.xlu0 %v258, 96
      %v1586 = vpop.permute.xlu0 %1585
      %1587 = vrot.lane.b32.xlu0 %v259, 96
      %v1588 = vpop.permute.xlu0 %1587
      %v1589 = vsel %vm1582, %v1586, %v1588
      %v1590 = vsel %vm1582, %v1588, %v1586
      %v1591 = vsub.f32 %v1583, %v1449
      %v1592 = vsub.f32 %v1584, %v1450
      %v1593 = vand.u32 2147483647, %v1591
      %v1594 = vand.u32 2147483647, %v1592
      %v1595 = vmul.f32 %v1589, %v258
      %v1596 = vmul.f32 %v1590, %v259
      %v1597 = vlaneseq
      %v1598 = vshrl.u32 %v1597, 7
      %v1599 = vsub.s32 5, %v1598
      %v1600 = vrot.slane %v242, %v1599
      %v1601 = vlaneseq
      %v1602 = vshrl.u32 %v1601, 7
      %v1603 = vsub.s32 5, %v1602
      %v1604 = vrot.slane %v243, %v1603
      %v1605 = vmul.f32 %v1595, %v1600
      %v1606 = vmul.f32 %v1596, %v1604
      %v1607 = vmul.f32 %v1593, %v1605
      %v1608 = vmul.f32 %v1594, %v1606
      %v1609 = vadd.f32 %v1576, %v1607
      %v1610 = vadd.f32 %v1577, %v1608
      %v1611 = vadd.f32 %v1609, %v1610
      %1612 = vadd.xlane.f32.xlu0 %v1611
      %v1613 = vpop.xlane.xlu0 %1612
      %v1614 = vrot.slane %v1613, 4
      %v1615 = vadd.f32 %v1613, %v1614
      %v1616 = vrot.slane %v1615, 2
      %v1617 = vadd.f32 %v1615, %v1616
      %v1618 = vrot.slane %v1617, 1
      %v1619 = vadd.f32 %v1617, %v1618
      %s1620 = vtos %v1619
      %v1621 = vlaneseq
      %v1622 = vshrl.u32 %v1621, 7
      %v1623 = vsub.s32 2, %v1622
      %v1624 = vrot.slane %v244, %v1623
      %v1625 = vlaneseq
      %v1626 = vshrl.u32 %v1625, 7
      %v1627 = vsub.s32 2, %v1626
      %v1628 = vrot.slane %v245, %v1627
      %v1629 = vmul.f32 %v258, %v1624
      %v1630 = vmul.f32 %v259, %v1628
      %v1631 = vadd.f32 %v1629, %v1630
      %1632 = vadd.xlane.f32.xlu0 %v1631
      %v1633 = vpop.xlane.xlu0 %1632
      %v1634 = vrot.slane %v1633, 4
      %v1635 = vadd.f32 %v1633, %v1634
      %v1636 = vrot.slane %v1635, 2
      %v1637 = vadd.f32 %v1635, %v1636
      %v1638 = vrot.slane %v1637, 1
      %v1639 = vadd.f32 %v1637, %v1638
      %s1640 = vtos %v1639
      %1641 = vrot.lane.b32.xlu0 %v1449, 124
      %v1642 = vpop.permute.xlu0 %1641
      %1643 = vrot.lane.b32.xlu0 %v1450, 124
      %v1644 = vpop.permute.xlu0 %1643
      %vm1645 = vcmp.lt.s32.totalorder %v1456, 124
      %v1646 = vsel %vm1645, %v1642, %v1644
      %v1647 = vsel %vm1645, %v1644, %v1642
      %1648 = vrot.lane.b32.xlu0 %v258, 124
      %v1649 = vpop.permute.xlu0 %1648
      %1650 = vrot.lane.b32.xlu0 %v259, 124
      %v1651 = vpop.permute.xlu0 %1650
      %v1652 = vsel %vm1645, %v1649, %v1651
      %v1653 = vsel %vm1645, %v1651, %v1649
      %v1654 = vsub.f32 %v1646, %v1449
      %v1655 = vsub.f32 %v1647, %v1450
      %v1656 = vand.u32 2147483647, %v1654
      %v1657 = vand.u32 2147483647, %v1655
      %v1658 = vmul.f32 %v1652, %v258
      %v1659 = vmul.f32 %v1653, %v259
      %v1660 = vlaneseq
      %v1661 = vshrl.u32 %v1660, 7
      %v1662 = vsub.s32 2, %v1661
      %v1663 = vrot.slane %v242, %v1662
      %v1664 = vlaneseq
      %v1665 = vshrl.u32 %v1664, 7
      %v1666 = vsub.s32 2, %v1665
      %v1667 = vrot.slane %v243, %v1666
      %v1668 = vmul.f32 %v1658, %v1663
      %v1669 = vmul.f32 %v1659, %v1667
      %v1670 = vmul.f32 %v1656, %v1668
      %v1671 = vmul.f32 %v1657, %v1669
      %1672 = vrot.lane.b32.xlu0 %v1449, 64
      %v1673 = vpop.permute.xlu0 %1672
      %1674 = vrot.lane.b32.xlu0 %v1450, 64
      %v1675 = vpop.permute.xlu0 %1674
      %vm1676 = vcmp.lt.s32.totalorder %v1456, 64
      %v1677 = vsel %vm1676, %v1673, %v1675
      %v1678 = vsel %vm1676, %v1675, %v1673
      %1679 = vrot.lane.b32.xlu0 %v258, 64
      %v1680 = vpop.permute.xlu0 %1679
      %1681 = vrot.lane.b32.xlu0 %v259, 64
      %v1682 = vpop.permute.xlu0 %1681
      %v1683 = vsel %vm1676, %v1680, %v1682
      %v1684 = vsel %vm1676, %v1682, %v1680
      %v1685 = vsub.f32 %v1677, %v1449
      %v1686 = vsub.f32 %v1678, %v1450
      %v1687 = vand.u32 2147483647, %v1685
      %v1688 = vand.u32 2147483647, %v1686
      %v1689 = vmul.f32 %v1683, %v258
      %v1690 = vmul.f32 %v1684, %v259
      %v1691 = vlaneseq
      %v1692 = vshrl.u32 %v1691, 7
      %v1693 = vsub.s32 6, %v1692
      %v1694 = vrot.slane %v242, %v1693
      %v1695 = vlaneseq
      %v1696 = vshrl.u32 %v1695, 7
      %v1697 = vsub.s32 6, %v1696
      %v1698 = vrot.slane %v243, %v1697
      %v1699 = vmul.f32 %v1689, %v1694
      %v1700 = vmul.f32 %v1690, %v1698
      %v1701 = vmul.f32 %v1687, %v1699
      %v1702 = vmul.f32 %v1688, %v1700
      %v1703 = vadd.f32 %v1670, %v1701
      %v1704 = vadd.f32 %v1671, %v1702
      %v1705 = vadd.f32 %v1703, %v1704
      %1706 = vadd.xlane.f32.xlu0 %v1705
      %v1707 = vpop.xlane.xlu0 %1706
      %v1708 = vrot.slane %v1707, 4
      %v1709 = vadd.f32 %v1707, %v1708
      %v1710 = vrot.slane %v1709, 2
      %v1711 = vadd.f32 %v1709, %v1710
      %v1712 = vrot.slane %v1711, 1
      %v1713 = vadd.f32 %v1711, %v1712
      %s1714 = vtos %v1713
      %v1715 = vlaneseq
      %v1716 = vshrl.u32 %v1715, 7
      %v1717 = vsub.s32 3, %v1716
      %v1718 = vrot.slane %v244, %v1717
      %v1719 = vlaneseq
      %v1720 = vshrl.u32 %v1719, 7
      %v1721 = vsub.s32 3, %v1720
      %v1722 = vrot.slane %v245, %v1721
      %v1723 = vmul.f32 %v258, %v1718
      %v1724 = vmul.f32 %v259, %v1722
      %v1725 = vadd.f32 %v1723, %v1724
      %1726 = vadd.xlane.f32.xlu0 %v1725
      %v1727 = vpop.xlane.xlu0 %1726
      %v1728 = vrot.slane %v1727, 4
      %v1729 = vadd.f32 %v1727, %v1728
      %v1730 = vrot.slane %v1729, 2
      %v1731 = vadd.f32 %v1729, %v1730
      %v1732 = vrot.slane %v1731, 1
      %v1733 = vadd.f32 %v1731, %v1732
      %s1734 = vtos %v1733
      %1735 = vrot.lane.b32.xlu0 %v1449, 120
      %v1736 = vpop.permute.xlu0 %1735
      %1737 = vrot.lane.b32.xlu0 %v1450, 120
      %v1738 = vpop.permute.xlu0 %1737
      %vm1739 = vcmp.lt.s32.totalorder %v1456, 120
      %v1740 = vsel %vm1739, %v1736, %v1738
      %v1741 = vsel %vm1739, %v1738, %v1736
      %1742 = vrot.lane.b32.xlu0 %v258, 120
      %v1743 = vpop.permute.xlu0 %1742
      %1744 = vrot.lane.b32.xlu0 %v259, 120
      %v1745 = vpop.permute.xlu0 %1744
      %v1746 = vsel %vm1739, %v1743, %v1745
      %v1747 = vsel %vm1739, %v1745, %v1743
      %v1748 = vsub.f32 %v1740, %v1449
      %v1749 = vsub.f32 %v1741, %v1450
      %v1750 = vand.u32 2147483647, %v1748
      %v1751 = vand.u32 2147483647, %v1749
      %v1752 = vmul.f32 %v1746, %v258
      %v1753 = vmul.f32 %v1747, %v259
      %v1754 = vlaneseq
      %v1755 = vshrl.u32 %v1754, 7
      %v1756 = vsub.s32 3, %v1755
      %v1757 = vrot.slane %v242, %v1756
      %v1758 = vlaneseq
      %v1759 = vshrl.u32 %v1758, 7
      %v1760 = vsub.s32 3, %v1759
      %v1761 = vrot.slane %v243, %v1760
      %v1762 = vmul.f32 %v1752, %v1757
      %v1763 = vmul.f32 %v1753, %v1761
      %v1764 = vmul.f32 %v1750, %v1762
      %v1765 = vmul.f32 %v1751, %v1763
      %v1766 = vsub.f32 %v1450, %v1449
      %v1767 = vsub.f32 %v1449, %v1450
      %v1768 = vand.u32 2147483647, %v1766
      %v1769 = vand.u32 2147483647, %v1767
      %v1770 = vmul.f32 %v259, %v258
      %v1771 = vlaneseq
      %v1772 = vshrl.u32 %v1771, 7
      %v1773 = vsub.s32 7, %v1772
      %v1774 = vrot.slane %v242, %v1773
      %v1775 = vlaneseq
      %v1776 = vshrl.u32 %v1775, 7
      %v1777 = vsub.s32 7, %v1776
      %v1778 = vrot.slane %v243, %v1777
      %v1779 = vmul.f32 %v1770, %v1774
      %v1780 = vmul.f32 %v1770, %v1778
      %v1781 = vmul.f32 %v1768, %v1779
      %v1782 = vmul.f32 %v1769, %v1780
      %v1783 = vadd.f32 %v1764, %v1781
      %v1784 = vadd.f32 %v1765, %v1782
      %v1785 = vadd.f32 %v1783, %v1784
      %1786 = vadd.xlane.f32.xlu0 %v1785
      %v1787 = vpop.xlane.xlu0 %1786
      %v1788 = vrot.slane %v1787, 4
      %v1789 = vadd.f32 %v1787, %v1788
      %v1790 = vrot.slane %v1789, 2
      %v1791 = vadd.f32 %v1789, %v1790
      %v1792 = vrot.slane %v1791, 1
      %v1793 = vadd.f32 %v1791, %v1792
      %s1794 = vtos %v1793
      %vm1795 = vcmp.eq.s32.totalorder %v1456, 0
      %v1796 = vstv %s1419
      %v1797 = vsel %vm1795, %v1796, 0.0
      %vm1798 = vcmp.eq.s32.totalorder %v1456, 1
      %v1799 = vstv %s1430
      %v1800 = vsel %vm1798, %v1799, %v1797
      %vm1801 = vcmp.eq.s32.totalorder %v1456, 2
      %v1802 = vstv %s1526
      %v1803 = vsel %vm1801, %v1802, %v1800
      %vm1804 = vcmp.eq.s32.totalorder %v1456, 3
      %v1805 = vstv %s1620
      %v1806 = vsel %vm1804, %v1805, %v1803
      %vm1807 = vcmp.eq.s32.totalorder %v1456, 4
      %v1808 = vstv %s1714
      %v1809 = vsel %vm1807, %v1808, %v1806
      %vm1810 = vcmp.eq.s32.totalorder %v1456, 5
      %v1811 = vstv %s1794
      %v1812 = vsel %vm1810, %v1811, %v1809
      %vm1813 = vcmp.eq.s32.totalorder %v1456, 6
      %v1814 = vsel %vm1813, %v1799, %v1812
      %vm1815 = vcmp.eq.s32.totalorder %v1456, 7
      %v1816 = vstv %s1546
      %v1817 = vsel %vm1815, %v1816, %v1814
      %vm1818 = vcmp.eq.s32.totalorder %v1456, 8
      %v1819 = vstv %s1640
      %v1820 = vsel %vm1818, %v1819, %v1817
      %vm1821 = vcmp.eq.s32.totalorder %v1456, 9
      %v1822 = vstv %s1734
      %v1823 = vsel %vm1821, %v1822, %v1820
      %1824 = vst [vmem:[%s233] sm:$0x1] %v1823
      %p1825 = scmp.lt.s32.totalorder %s15, 2
      %s1826 = scalar_select %p1825, %s15, 2
      %s1827 = scalar_lea.vmem %s4, %s1826
      // Predicated region
      $region37: #{trimmed_procrustes_loss.1} parent=35 // pred_check
        %p1828 = pneg %p132
      $region38: #{trimmed_procrustes_loss.1} parent=35 // pred_check_branch
        %1830 = sbr.rel (%p1828) target = $region40
      $region39: #{trimmed_procrustes_loss.1} parent=35 // pred_region
        _
      $region40: #{trimmed_procrustes_loss.1} parent=35 // pred_fallthru
        _
    $region36: #{trimmed_procrustes_loss.1} parent=5 // pred_fallthru
      _
    %p1831 = scmp.le.s32.totalorder 2, %s10
    // Predicated region
    $region41: #{trimmed_procrustes_loss.1} parent=5 // pred_check
      %p1832 = pneg %p1831
    $region42: #{trimmed_procrustes_loss.1} parent=5 // pred_check_branch
      %1834 = sbr.rel (%p1832) target = $region44
    $region43: #{trimmed_procrustes_loss.1} parent=5 // pred_region
      %s1835 = ssub.s32 %s10, 2
      // Predicated region
      $region45: #{trimmed_procrustes_loss.1} parent=43 // pred_check
        %p1836 = pneg %p138
      $region46: #{trimmed_procrustes_loss.1} parent=43 // pred_check_branch
        %1838 = sbr.rel (%p1836) target = $region48
      $region47: #{trimmed_procrustes_loss.1} parent=43 // pred_region
        %p1839 = scmp.lt.s32.totalorder %s16, 2
        %s1840 = scalar_select %p1839, %s16, 2
        %s1841 = scalar_lea.vmem %s4, %s1840
      $region48: #{trimmed_procrustes_loss.1} parent=43 // pred_fallthru
        _
    $region44: #{trimmed_procrustes_loss.1} parent=5 // pred_fallthru
      _
  $region6: #{trimmed_procrustes_loss.1} parent=0 // loop_footer
    %s14 = sadd.s32 1, %s10
  $region7: #{trimmed_procrustes_loss.1} parent=0 // loop_footer_branch
    %9 = sbr.rel target = $region3
  $region8: #{trimmed_procrustes_loss.1} parent=0 // loop_exit
    _

</llo_original>
